<compile_context>
chip_gen: v7x
topology: tpu7x:2x2x1
jax: 0.10.0
libtpu: 0.0.40
codegen_flags: <defaults>
</compile_context>

<pallas_src>
import functools

import jax
import jax.numpy as jnp
from jax import lax
from jax.experimental import pallas as pl
from jax.experimental.pallas import tpu as pltpu

NEG_SLOPE = 0.01  # torch.nn.LeakyReLU() default


def _pick_td(d_out, L, max_cols):
    """Largest divisor Td of d_out such that the (Cout, Td*L) output block is legal
    (last dim multiple of 128 unless it equals the full d_out*L axis) and the
    (K, Td*L) col scratch stays within budget."""
    cands = [td for td in range(1, d_out + 1)
             if d_out % td == 0 and (td == d_out or (td * L) % 128 == 0)]
    small = [td for td in cands if td * L <= max_cols]
    return max(small) if small else min(cands)


def _make_kernel(H, W, Cin, Cin_p, Td):
    L = H * W
    n_pad = Cin_p - Cin

    def kernel(x_ref, w_ref, m_ref, o_ref, col_ref):
        # x_ref  : (D, Cin, Lp)      per-sample depth slab (resident across depth blocks)
        # w_ref  : (Cout, 27*Cin_p)  weight slab, col k = ((kd*3+kh)*3+kw)*Cin_p + ci
        # m_ref  : (9, L)            0/1 spatial validity masks, t9 = kh*3 + kw
        # o_ref  : (Cout, Td*L)      output slab for this (n, depth-block)
        # col_ref: (27*Cin_p, Td*L)  im2col scratch (persists across grid steps)
        db = pl.program_id(1)
        d0 = db * Td                                   # first input plane of this block

        # Zero ONLY the channel-padding rows (so 0*garbage can never inject NaN/Inf).
        # Must run every step: with a "parallel" grid axis, program_id==0 may never
        # execute on the second TensorCore, whose private scratch would stay garbage.
        if n_pad:
            zpad = jnp.zeros((n_pad, Td * L), col_ref.dtype)
            for blk in range(27):
                col_ref[pl.ds(blk * Cin_p + Cin, n_pad), :] = zpad

        # Hoist the sublane broadcast of each (1, L) mask to (Cin, L) once per tap.
        # Center tap (kh, kw) == (1, 1) is all-ones -> no multiply at all.
        mb = [None] * 9
        for t9 in range(9):
            if t9 != 4:
                mb[t9] = jnp.broadcast_to(m_ref[pl.ds(t9, 1), :], (Cin, L))

        # im2col: each of the Td+2 input planes in the window is loaded once, each
        # shifted+masked tap is computed once, then stored to every output depth
        # (td) column range that consumes it (up to 3 reuses per tap).
        for pofs in range(Td + 2):
            plane = x_ref[pl.ds(d0 + pofs, 1), :, :][0]            # (Cin, Lp)
            for kh in range(3):
                for kw in range(3):
                    t9 = kh * 3 + kw
                    # flat shift of tap (kh-1, kw-1), rebased by the W+1 left pad
                    off = (kh - 1) * W + (kw - 1) + (W + 1)        # static in [0, 2W+2]
                    tap = plane[:, off:off + L]                    # (Cin, L)
                    if t9 != 4:
                        tap = tap * mb[t9]                         # kill wrap / OOB-H terms
                    for kd in range(3):
                        td = pofs - kd                             # output plane using this tap
                        if 0 <= td < Td:
                            blk = kd * 9 + t9
                            col_ref[pl.ds(blk * Cin_p, Cin),
                                    pl.ds(td * L, L)] = tap        # 8/16-aligned row start

        # one big-K MXU matmul for all Td planes: (Cout, K) x (K, Td*L), f32 accumulate
        acc = jnp.dot(w_ref[...], col_ref[...],
                      preferred_element_type=jnp.float32)
        y = jnp.where(acc > 0, acc, NEG_SLOPE * acc)               # LeakyReLU in f32
        o_ref[...] = y.astype(o_ref.dtype)                         # lane-dense store

    return kernel


@functools.partial(jax.jit, static_argnames=("compute_dtype",))
def conv_bn_re_3dm(x_ncdhw, w_oidhw, *, compute_dtype=jnp.float32):
    """Conv3d(k=3, padding=(0,1,1), bias=False) + LeakyReLU, PyTorch NCDHW layout.

    compute_dtype=jnp.bfloat16 uses bf16 MXU operands with f32 accumulation
    (recommended on v6e/v7x; prefer float32 on v5e, which has no bf16 VPU).
    """
    N, Cin, D, H, W = x_ncdhw.shape
    Cout = w_oidhw.shape[0]
    D_out = D - 2
    assert D_out >= 1, "depth must be >= 3 (conv has no depth padding)"
    L = H * W
    Lp = L + 2 * (W + 1)
    itemsize = jnp.dtype(compute_dtype).itemsize
    sub_align = 32 // itemsize                 # packed-sublane tile: 8 rows f32, 16 rows bf16
    Cin_p = -(-Cin // sub_align) * sub_align
    K = 27 * Cin_p

    # Batch Td output planes per grid step; keep the col scratch under ~8 MiB.
    max_cols = max(L, ((8 << 20) // (K * itemsize)) // 128 * 128)
    Td = _pick_td(D_out, L, max_cols)
    num_db = D_out // Td

    # ---- glue: layout + flat zero-extension of the H*W axis (no 2-D spatial pad) ----
    x_flat = jnp.transpose(x_ncdhw, (0, 2, 1, 3, 4)).reshape(N, D, Cin, L)
    x_flat = jnp.pad(x_flat, ((0, 0), (0, 0), (0, 0), (W + 1, W + 1)))
    x_flat = x_flat.astype(compute_dtype)

    # weight slab (Cout, 27*Cin_p); column order = (kd, kh, kw, ci), ci zero-padded
    w_t = jnp.transpose(w_oidhw, (0, 2, 3, 4, 1))                  # (Cout, 3,3,3, Cin)
    w_t = jnp.pad(w_t, ((0, 0),) * 4 + ((0, Cin_p - Cin),))
    w2d = w_t.reshape(Cout, K).astype(compute_dtype)

    # per-tap validity masks: kill flattened row-wrap / out-of-range-in-H terms
    hh = jnp.arange(H)
    ww = jnp.arange(W)
    rows = []
    for kh in range(3):
        for kw in range(3):
            mh = (hh + kh - 1 >= 0) & (hh + kh - 1 < H)
            mw = (ww + kw - 1 >= 0) & (ww + kw - 1 < W)
            rows.append((mh[:, None] & mw[None, :]).reshape(L))
    masks9 = jnp.stack(rows).astype(compute_dtype)                 # (9, L)

    # VMEM budget: double-buffered I/O blocks + resident col scratch, with headroom.
    vmem_est = ((2 * D * Cin * Lp + 2 * Cout * K + 2 * 9 * L + K * Td * L) * itemsize
                + 2 * Cout * Td * L * 4)
    vmem_limit = int(min(max(2 * vmem_est, 16 << 20), 64 << 20))

    cost = pl.CostEstimate(
        flops=2 * N * D_out * Cout * L * 27 * Cin,
        transcendentals=0,
        bytes_accessed=(x_flat.size + w2d.size + masks9.size) * itemsize
                       + N * Cout * D_out * L * 4)

    out = pl.pallas_call(
        _make_kernel(H, W, Cin, Cin_p, Td),
        out_shape=jax.ShapeDtypeStruct((N, Cout, D_out * L), jnp.float32),
        grid=(N, num_db),
        in_specs=[
            # whole per-sample depth slab, resident across the depth-block axis:
            # every input plane is DMA'd from HBM exactly once per sample.
            # TODO(synk): for very large D*Cin*H*W switch to a manual 3-slot ring
            # buffer (memory_space=pl.ANY + make_async_copy) to bound VMEM on v7x.
            pl.BlockSpec((None, D, Cin, Lp), lambda n, db: (n, 0, 0, 0)),
            pl.BlockSpec((Cout, K), lambda n, db: (0, 0)),          # weights: resident
            pl.BlockSpec((9, L), lambda n, db: (0, 0)),             # masks: resident
        ],
        out_specs=pl.BlockSpec((None, Cout, Td * L), lambda n, db: (n, 0, db)),
        scratch_shapes=[pltpu.VMEM((K, Td * L), compute_dtype)],
        compiler_params=pltpu.CompilerParams(
            dimension_semantics=("parallel", "arbitrary"),
            vmem_limit_bytes=vmem_limit),
        cost_estimate=cost,
    )(x_flat, w2d, masks9)

    # (N, Cout, D_out*H*W) -> NCDHW is a metadata-only reshape (no transpose pass).
    return out.reshape(N, Cout, D_out, H, W)


def _reference(x_ncdhw, w_oidhw):
    y = lax.conv_general_dilated(
        x_ncdhw, w_oidhw,
        window_strides=(1, 1, 1),
        padding=((0, 0), (1, 1), (1, 1)),
        dimension_numbers=("NCDHW", "OIDHW", "NCDHW"))
    return jnp.where(y > 0, y, NEG_SLOPE * y)


if __name__ == "__main__":
    key = jax.random.PRNGKey(0)
    kx, kw = jax.random.split(key)

    N, Cin, Cout = 2, 4, 8
    D, H, W = 6, 16, 16

    x = jax.random.normal(kx, (N, Cin, D, H, W), dtype=jnp.float32)
    fan_in = Cin * 3 * 3 * 3
    w = jax.random.normal(kw, (Cout, Cin, 3, 3, 3), dtype=jnp.float32) / jnp.sqrt(fan_in)

    ref = _reference(x, w)

    out = jax.block_until_ready(conv_bn_re_3dm(x, w))
    assert out.shape == (N, Cout, D - 2, H, W), out.shape
    assert jnp.allclose(out, ref, atol=1e-4, rtol=1e-4), "f32 mismatch vs XLA reference"

    # bf16-operand / f32-accumulate path (recommended on v6e/v7x), looser tolerance
    out_bf16 = jax.block_until_ready(conv_bn_re_3dm(x, w, compute_dtype=jnp.bfloat16))
    assert out_bf16.shape == (N, Cout, D - 2, H, W), out_bf16.shape
    assert jnp.allclose(out_bf16, ref, atol=1e-1, rtol=1e-1), "bf16 mismatch vs reference"

    print("KERNEL_OK")
</pallas_src>

<mosaic_0001>
module attributes {stable_mosaic.version = 11 : i64} {
  func.func @kernel(%arg0: i32, %arg1: i32, %arg2: memref<1x6x4x290xf32, #tpu.memory_space<vmem>>, %arg3: memref<8x216xf32, #tpu.memory_space<vmem>>, %arg4: memref<9x256xf32, #tpu.memory_space<vmem>>, %arg5: memref<1x8x1024xf32, #tpu.memory_space<vmem>>, %arg6: memref<216x1024xf32, #tpu.memory_space<vmem>>) attributes {dimension_semantics = [#tpu.dimension_semantics<parallel>, #tpu.dimension_semantics<arbitrary>], iteration_bounds = array<i64: 2, 1>, scalar_prefetch = 0 : i64, scratch_operands = 1 : i64, tpu.core_type = #tpu.core_type<tc>, window_params = [{transform_indices = @transform_0, window_bounds = array<i64: 1, 6, 4, 290>}, {pipeline_mode = #tpu.pipeline_mode<synchronous>, transform_indices = @transform_1, window_bounds = array<i64: 8, 216>}, {pipeline_mode = #tpu.pipeline_mode<synchronous>, transform_indices = @transform_2, window_bounds = array<i64: 9, 256>}, {transform_indices = @transform_3, window_bounds = array<i64: 1, 8, 1024>}]} {
    %c4_i32 = arith.constant 4 : i32
    %0 = arith.muli %arg1, %c4_i32 : i32
    %cst = arith.constant 0.000000e+00 : f32
    %1 = vector.broadcast %cst : f32 to vector<4x1024xf32>
    %c4 = arith.constant 4 : index
    %c0 = arith.constant 0 : index
    %2 = vector.load %arg6[%c4, %c0] : memref<216x1024xf32, #tpu.memory_space<vmem>>, vector<4x1024xf32>
    tpu.vector_store %arg6[%c4, %c0], %1 {strides = array<i32>} : memref<216x1024xf32, #tpu.memory_space<vmem>>, vector<4x1024xf32>,
    %c12 = arith.constant 12 : index
    %c0_0 = arith.constant 0 : index
    %3 = vector.load %arg6[%c12, %c0_0] : memref<216x1024xf32, #tpu.memory_space<vmem>>, vector<4x1024xf32>
    tpu.vector_store %arg6[%c12, %c0_0], %1 {strides = array<i32>} : memref<216x1024xf32, #tpu.memory_space<vmem>>, vector<4x1024xf32>,
    %c20 = arith.constant 20 : index
    %c0_1 = arith.constant 0 : index
    %4 = vector.load %arg6[%c20, %c0_1] : memref<216x1024xf32, #tpu.memory_space<vmem>>, vector<4x1024xf32>
    tpu.vector_store %arg6[%c20, %c0_1], %1 {strides = array<i32>} : memref<216x1024xf32, #tpu.memory_space<vmem>>, vector<4x1024xf32>,
    %c28 = arith.constant 28 : index
    %c0_2 = arith.constant 0 : index
    %5 = vector.load %arg6[%c28, %c0_2] : memref<216x1024xf32, #tpu.memory_space<vmem>>, vector<4x1024xf32>
    tpu.vector_store %arg6[%c28, %c0_2], %1 {strides = array<i32>} : memref<216x1024xf32, #tpu.memory_space<vmem>>, vector<4x1024xf32>,
    %c36 = arith.constant 36 : index
    %c0_3 = arith.constant 0 : index
    %6 = vector.load %arg6[%c36, %c0_3] : memref<216x1024xf32, #tpu.memory_space<vmem>>, vector<4x1024xf32>
    tpu.vector_store %arg6[%c36, %c0_3], %1 {strides = array<i32>} : memref<216x1024xf32, #tpu.memory_space<vmem>>, vector<4x1024xf32>,
    %c44 = arith.constant 44 : index
    %c0_4 = arith.constant 0 : index
    %7 = vector.load %arg6[%c44, %c0_4] : memref<216x1024xf32, #tpu.memory_space<vmem>>, vector<4x1024xf32>
    tpu.vector_store %arg6[%c44, %c0_4], %1 {strides = array<i32>} : memref<216x1024xf32, #tpu.memory_space<vmem>>, vector<4x1024xf32>,
    %c52 = arith.constant 52 : index
    %c0_5 = arith.constant 0 : index
    %8 = vector.load %arg6[%c52, %c0_5] : memref<216x1024xf32, #tpu.memory_space<vmem>>, vector<4x1024xf32>
    tpu.vector_store %arg6[%c52, %c0_5], %1 {strides = array<i32>} : memref<216x1024xf32, #tpu.memory_space<vmem>>, vector<4x1024xf32>,
    %c60 = arith.constant 60 : index
    %c0_6 = arith.constant 0 : index
    %9 = vector.load %arg6[%c60, %c0_6] : memref<216x1024xf32, #tpu.memory_space<vmem>>, vector<4x1024xf32>
    tpu.vector_store %arg6[%c60, %c0_6], %1 {strides = array<i32>} : memref<216x1024xf32, #tpu.memory_space<vmem>>, vector<4x1024xf32>,
    %c68 = arith.constant 68 : index
    %c0_7 = arith.constant 0 : index
    %10 = vector.load %arg6[%c68, %c0_7] : memref<216x1024xf32, #tpu.memory_space<vmem>>, vector<4x1024xf32>
    tpu.vector_store %arg6[%c68, %c0_7], %1 {strides = array<i32>} : memref<216x1024xf32, #tpu.memory_space<vmem>>, vector<4x1024xf32>,
    %c76 = arith.constant 76 : index
    %c0_8 = arith.constant 0 : index
    %11 = vector.load %arg6[%c76, %c0_8] : memref<216x1024xf32, #tpu.memory_space<vmem>>, vector<4x1024xf32>
    tpu.vector_store %arg6[%c76, %c0_8], %1 {strides = array<i32>} : memref<216x1024xf32, #tpu.memory_space<vmem>>, vector<4x1024xf32>,
    %c84 = arith.constant 84 : index
    %c0_9 = arith.constant 0 : index
    %12 = vector.load %arg6[%c84, %c0_9] : memref<216x1024xf32, #tpu.memory_space<vmem>>, vector<4x1024xf32>
    tpu.vector_store %arg6[%c84, %c0_9], %1 {strides = array<i32>} : memref<216x1024xf32, #tpu.memory_space<vmem>>, vector<4x1024xf32>,
    %c92 = arith.constant 92 : index
    %c0_10 = arith.constant 0 : index
    %13 = vector.load %arg6[%c92, %c0_10] : memref<216x1024xf32, #tpu.memory_space<vmem>>, vector<4x1024xf32>
    tpu.vector_store %arg6[%c92, %c0_10], %1 {strides = array<i32>} : memref<216x1024xf32, #tpu.memory_space<vmem>>, vector<4x1024xf32>,
    %c100 = arith.constant 100 : index
    %c0_11 = arith.constant 0 : index
    %14 = vector.load %arg6[%c100, %c0_11] : memref<216x1024xf32, #tpu.memory_space<vmem>>, vector<4x1024xf32>
    tpu.vector_store %arg6[%c100, %c0_11], %1 {strides = array<i32>} : memref<216x1024xf32, #tpu.memory_space<vmem>>, vector<4x1024xf32>,
    %c108 = arith.constant 108 : index
    %c0_12 = arith.constant 0 : index
    %15 = vector.load %arg6[%c108, %c0_12] : memref<216x1024xf32, #tpu.memory_space<vmem>>, vector<4x1024xf32>
    tpu.vector_store %arg6[%c108, %c0_12], %1 {strides = array<i32>} : memref<216x1024xf32, #tpu.memory_space<vmem>>, vector<4x1024xf32>,
    %c116 = arith.constant 116 : index
    %c0_13 = arith.constant 0 : index
    %16 = vector.load %arg6[%c116, %c0_13] : memref<216x1024xf32, #tpu.memory_space<vmem>>, vector<4x1024xf32>
    tpu.vector_store %arg6[%c116, %c0_13], %1 {strides = array<i32>} : memref<216x1024xf32, #tpu.memory_space<vmem>>, vector<4x1024xf32>,
    %c124 = arith.constant 124 : index
    %c0_14 = arith.constant 0 : index
    %17 = vector.load %arg6[%c124, %c0_14] : memref<216x1024xf32, #tpu.memory_space<vmem>>, vector<4x1024xf32>
    tpu.vector_store %arg6[%c124, %c0_14], %1 {strides = array<i32>} : memref<216x1024xf32, #tpu.memory_space<vmem>>, vector<4x1024xf32>,
    %c132 = arith.constant 132 : index
    %c0_15 = arith.constant 0 : index
    %18 = vector.load %arg6[%c132, %c0_15] : memref<216x1024xf32, #tpu.memory_space<vmem>>, vector<4x1024xf32>
    tpu.vector_store %arg6[%c132, %c0_15], %1 {strides = array<i32>} : memref<216x1024xf32, #tpu.memory_space<vmem>>, vector<4x1024xf32>,
    %c140 = arith.constant 140 : index
    %c0_16 = arith.constant 0 : index
    %19 = vector.load %arg6[%c140, %c0_16] : memref<216x1024xf32, #tpu.memory_space<vmem>>, vector<4x1024xf32>
    tpu.vector_store %arg6[%c140, %c0_16], %1 {strides = array<i32>} : memref<216x1024xf32, #tpu.memory_space<vmem>>, vector<4x1024xf32>,
    %c148 = arith.constant 148 : index
    %c0_17 = arith.constant 0 : index
    %20 = vector.load %arg6[%c148, %c0_17] : memref<216x1024xf32, #tpu.memory_space<vmem>>, vector<4x1024xf32>
    tpu.vector_store %arg6[%c148, %c0_17], %1 {strides = array<i32>} : memref<216x1024xf32, #tpu.memory_space<vmem>>, vector<4x1024xf32>,
    %c156 = arith.constant 156 : index
    %c0_18 = arith.constant 0 : index
    %21 = vector.load %arg6[%c156, %c0_18] : memref<216x1024xf32, #tpu.memory_space<vmem>>, vector<4x1024xf32>
    tpu.vector_store %arg6[%c156, %c0_18], %1 {strides = array<i32>} : memref<216x1024xf32, #tpu.memory_space<vmem>>, vector<4x1024xf32>,
    %c164 = arith.constant 164 : index
    %c0_19 = arith.constant 0 : index
    %22 = vector.load %arg6[%c164, %c0_19] : memref<216x1024xf32, #tpu.memory_space<vmem>>, vector<4x1024xf32>
    tpu.vector_store %arg6[%c164, %c0_19], %1 {strides = array<i32>} : memref<216x1024xf32, #tpu.memory_space<vmem>>, vector<4x1024xf32>,
    %c172 = arith.constant 172 : index
    %c0_20 = arith.constant 0 : index
    %23 = vector.load %arg6[%c172, %c0_20] : memref<216x1024xf32, #tpu.memory_space<vmem>>, vector<4x1024xf32>
    tpu.vector_store %arg6[%c172, %c0_20], %1 {strides = array<i32>} : memref<216x1024xf32, #tpu.memory_space<vmem>>, vector<4x1024xf32>,
    %c180 = arith.constant 180 : index
    %c0_21 = arith.constant 0 : index
    %24 = vector.load %arg6[%c180, %c0_21] : memref<216x1024xf32, #tpu.memory_space<vmem>>, vector<4x1024xf32>
    tpu.vector_store %arg6[%c180, %c0_21], %1 {strides = array<i32>} : memref<216x1024xf32, #tpu.memory_space<vmem>>, vector<4x1024xf32>,
    %c188 = arith.constant 188 : index
    %c0_22 = arith.constant 0 : index
    %25 = vector.load %arg6[%c188, %c0_22] : memref<216x1024xf32, #tpu.memory_space<vmem>>, vector<4x1024xf32>
    tpu.vector_store %arg6[%c188, %c0_22], %1 {strides = array<i32>} : memref<216x1024xf32, #tpu.memory_space<vmem>>, vector<4x1024xf32>,
    %c196 = arith.constant 196 : index
    %c0_23 = arith.constant 0 : index
    %26 = vector.load %arg6[%c196, %c0_23] : memref<216x1024xf32, #tpu.memory_space<vmem>>, vector<4x1024xf32>
    tpu.vector_store %arg6[%c196, %c0_23], %1 {strides = array<i32>} : memref<216x1024xf32, #tpu.memory_space<vmem>>, vector<4x1024xf32>,
    %c204 = arith.constant 204 : index
    %c0_24 = arith.constant 0 : index
    %27 = vector.load %arg6[%c204, %c0_24] : memref<216x1024xf32, #tpu.memory_space<vmem>>, vector<4x1024xf32>
    tpu.vector_store %arg6[%c204, %c0_24], %1 {strides = array<i32>} : memref<216x1024xf32, #tpu.memory_space<vmem>>, vector<4x1024xf32>,
    %c212 = arith.constant 212 : index
    %c0_25 = arith.constant 0 : index
    %28 = vector.load %arg6[%c212, %c0_25] : memref<216x1024xf32, #tpu.memory_space<vmem>>, vector<4x1024xf32>
    tpu.vector_store %arg6[%c212, %c0_25], %1 {strides = array<i32>} : memref<216x1024xf32, #tpu.memory_space<vmem>>, vector<4x1024xf32>,
    %c0_26 = arith.constant 0 : index
    %c0_27 = arith.constant 0 : index
    %29 = vector.load %arg4[%c0_26, %c0_27] : memref<9x256xf32, #tpu.memory_space<vmem>>, vector<1x256xf32>
    %30 = vector.shape_cast %29 : vector<1x256xf32> to vector<1x256xf32>
    %31 = vector.broadcast %30 : vector<1x256xf32> to vector<4x256xf32>
    %c1 = arith.constant 1 : index
    %c0_28 = arith.constant 0 : index
    %32 = vector.load %arg4[%c1, %c0_28] : memref<9x256xf32, #tpu.memory_space<vmem>>, vector<1x256xf32>
    %33 = vector.shape_cast %32 : vector<1x256xf32> to vector<1x256xf32>
    %34 = vector.broadcast %33 : vector<1x256xf32> to vector<4x256xf32>
    %c2 = arith.constant 2 : index
    %c0_29 = arith.constant 0 : index
    %35 = vector.load %arg4[%c2, %c0_29] : memref<9x256xf32, #tpu.memory_space<vmem>>, vector<1x256xf32>
    %36 = vector.shape_cast %35 : vector<1x256xf32> to vector<1x256xf32>
    %37 = vector.broadcast %36 : vector<1x256xf32> to vector<4x256xf32>
    %c3 = arith.constant 3 : index
    %c0_30 = arith.constant 0 : index
    %38 = vector.load %arg4[%c3, %c0_30] : memref<9x256xf32, #tpu.memory_space<vmem>>, vector<1x256xf32>
    %39 = vector.shape_cast %38 : vector<1x256xf32> to vector<1x256xf32>
    %40 = vector.broadcast %39 : vector<1x256xf32> to vector<4x256xf32>
    %c5 = arith.constant 5 : index
    %c0_31 = arith.constant 0 : index
    %41 = vector.load %arg4[%c5, %c0_31] : memref<9x256xf32, #tpu.memory_space<vmem>>, vector<1x256xf32>
    %42 = vector.shape_cast %41 : vector<1x256xf32> to vector<1x256xf32>
    %43 = vector.broadcast %42 : vector<1x256xf32> to vector<4x256xf32>
    %c6 = arith.constant 6 : index
    %c0_32 = arith.constant 0 : index
    %44 = vector.load %arg4[%c6, %c0_32] : memref<9x256xf32, #tpu.memory_space<vmem>>, vector<1x256xf32>
    %45 = vector.shape_cast %44 : vector<1x256xf32> to vector<1x256xf32>
    %46 = vector.broadcast %45 : vector<1x256xf32> to vector<4x256xf32>
    %c7 = arith.constant 7 : index
    %c0_33 = arith.constant 0 : index
    %47 = vector.load %arg4[%c7, %c0_33] : memref<9x256xf32, #tpu.memory_space<vmem>>, vector<1x256xf32>
    %48 = vector.shape_cast %47 : vector<1x256xf32> to vector<1x256xf32>
    %49 = vector.broadcast %48 : vector<1x256xf32> to vector<4x256xf32>
    %c8 = arith.constant 8 : index
    %c0_34 = arith.constant 0 : index
    %50 = vector.load %arg4[%c8, %c0_34] : memref<9x256xf32, #tpu.memory_space<vmem>>, vector<1x256xf32>
    %51 = vector.shape_cast %50 : vector<1x256xf32> to vector<1x256xf32>
    %52 = vector.broadcast %51 : vector<1x256xf32> to vector<4x256xf32>
    %c0_i32 = arith.constant 0 : i32
    %53 = arith.addi %0, %c0_i32 : i32
    %c0_35 = arith.constant 0 : index
    %54 = arith.index_cast %53 : i32 to index
    %c0_36 = arith.constant 0 : index
    %c0_37 = arith.constant 0 : index
    %55 = vector.load %arg2[%c0_35, %54, %c0_36, %c0_37] : memref<1x6x4x290xf32, #tpu.memory_space<vmem>>, vector<1x1x4x290xf32>
    %56 = vector.shape_cast %55 : vector<1x1x4x290xf32> to vector<1x4x290xf32>
    %57 = vector.shape_cast %56 : vector<1x4x290xf32> to vector<4x290xf32>
    %58 = vector.extract_strided_slice %57 {offsets = [0, 0], sizes = [4, 256], strides = [1, 1]} : vector<4x290xf32> to vector<4x256xf32>
    %59 = arith.mulf %58, %31 : vector<4x256xf32>
    %c0_38 = arith.constant 0 : index
    %c0_39 = arith.constant 0 : index
    %60 = vector.load %arg6[%c0_38, %c0_39] : memref<216x1024xf32, #tpu.memory_space<vmem>>, vector<4x256xf32>
    tpu.vector_store %arg6[%c0_38, %c0_39], %59 {strides = array<i32>} : memref<216x1024xf32, #tpu.memory_space<vmem>>, vector<4x256xf32>,
    %61 = vector.extract_strided_slice %57 {offsets = [0, 1], sizes = [4, 256], strides = [1, 1]} : vector<4x290xf32> to vector<4x256xf32>
    %62 = arith.mulf %61, %34 : vector<4x256xf32>
    %c8_40 = arith.constant 8 : index
    %c0_41 = arith.constant 0 : index
    %63 = vector.load %arg6[%c8_40, %c0_41] : memref<216x1024xf32, #tpu.memory_space<vmem>>, vector<4x256xf32>
    tpu.vector_store %arg6[%c8_40, %c0_41], %62 {strides = array<i32>} : memref<216x1024xf32, #tpu.memory_space<vmem>>, vector<4x256xf32>,
    %64 = vector.extract_strided_slice %57 {offsets = [0, 2], sizes = [4, 256], strides = [1, 1]} : vector<4x290xf32> to vector<4x256xf32>
    %65 = arith.mulf %64, %37 : vector<4x256xf32>
    %c16 = arith.constant 16 : index
    %c0_42 = arith.constant 0 : index
    %66 = vector.load %arg6[%c16, %c0_42] : memref<216x1024xf32, #tpu.memory_space<vmem>>, vector<4x256xf32>
    tpu.vector_store %arg6[%c16, %c0_42], %65 {strides = array<i32>} : memref<216x1024xf32, #tpu.memory_space<vmem>>, vector<4x256xf32>,
    %67 = vector.extract_strided_slice %57 {offsets = [0, 16], sizes = [4, 256], strides = [1, 1]} : vector<4x290xf32> to vector<4x256xf32>
    %68 = arith.mulf %67, %40 : vector<4x256xf32>
    %c24 = arith.constant 24 : index
    %c0_43 = arith.constant 0 : index
    %69 = vector.load %arg6[%c24, %c0_43] : memref<216x1024xf32, #tpu.memory_space<vmem>>, vector<4x256xf32>
    tpu.vector_store %arg6[%c24, %c0_43], %68 {strides = array<i32>} : memref<216x1024xf32, #tpu.memory_space<vmem>>, vector<4x256xf32>,
    %70 = vector.extract_strided_slice %57 {offsets = [0, 17], sizes = [4, 256], strides = [1, 1]} : vector<4x290xf32> to vector<4x256xf32>
    %c32 = arith.constant 32 : index
    %c0_44 = arith.constant 0 : index
    %71 = vector.load %arg6[%c32, %c0_44] : memref<216x1024xf32, #tpu.memory_space<vmem>>, vector<4x256xf32>
    tpu.vector_store %arg6[%c32, %c0_44], %70 {strides = array<i32>} : memref<216x1024xf32, #tpu.memory_space<vmem>>, vector<4x256xf32>,
    %72 = vector.extract_strided_slice %57 {offsets = [0, 18], sizes = [4, 256], strides = [1, 1]} : vector<4x290xf32> to vector<4x256xf32>
    %73 = arith.mulf %72, %43 : vector<4x256xf32>
    %c40 = arith.constant 40 : index
    %c0_45 = arith.constant 0 : index
    %74 = vector.load %arg6[%c40, %c0_45] : memref<216x1024xf32, #tpu.memory_space<vmem>>, vector<4x256xf32>
    tpu.vector_store %arg6[%c40, %c0_45], %73 {strides = array<i32>} : memref<216x1024xf32, #tpu.memory_space<vmem>>, vector<4x256xf32>,
    %75 = vector.extract_strided_slice %57 {offsets = [0, 32], sizes = [4, 256], strides = [1, 1]} : vector<4x290xf32> to vector<4x256xf32>
    %76 = arith.mulf %75, %46 : vector<4x256xf32>
    %c48 = arith.constant 48 : index
    %c0_46 = arith.constant 0 : index
    %77 = vector.load %arg6[%c48, %c0_46] : memref<216x1024xf32, #tpu.memory_space<vmem>>, vector<4x256xf32>
    tpu.vector_store %arg6[%c48, %c0_46], %76 {strides = array<i32>} : memref<216x1024xf32, #tpu.memory_space<vmem>>, vector<4x256xf32>,
    %78 = vector.extract_strided_slice %57 {offsets = [0, 33], sizes = [4, 256], strides = [1, 1]} : vector<4x290xf32> to vector<4x256xf32>
    %79 = arith.mulf %78, %49 : vector<4x256xf32>
    %c56 = arith.constant 56 : index
    %c0_47 = arith.constant 0 : index
    %80 = vector.load %arg6[%c56, %c0_47] : memref<216x1024xf32, #tpu.memory_space<vmem>>, vector<4x256xf32>
    tpu.vector_store %arg6[%c56, %c0_47], %79 {strides = array<i32>} : memref<216x1024xf32, #tpu.memory_space<vmem>>, vector<4x256xf32>,
    %81 = vector.extract_strided_slice %57 {offsets = [0, 34], sizes = [4, 256], strides = [1, 1]} : vector<4x290xf32> to vector<4x256xf32>
    %82 = arith.mulf %81, %52 : vector<4x256xf32>
    %c64 = arith.constant 64 : index
    %c0_48 = arith.constant 0 : index
    %83 = vector.load %arg6[%c64, %c0_48] : memref<216x1024xf32, #tpu.memory_space<vmem>>, vector<4x256xf32>
    tpu.vector_store %arg6[%c64, %c0_48], %82 {strides = array<i32>} : memref<216x1024xf32, #tpu.memory_space<vmem>>, vector<4x256xf32>,
    %c1_i32 = arith.constant 1 : i32
    %84 = arith.addi %0, %c1_i32 : i32
    %c0_49 = arith.constant 0 : index
    %85 = arith.index_cast %84 : i32 to index
    %c0_50 = arith.constant 0 : index
    %c0_51 = arith.constant 0 : index
    %86 = vector.load %arg2[%c0_49, %85, %c0_50, %c0_51] : memref<1x6x4x290xf32, #tpu.memory_space<vmem>>, vector<1x1x4x290xf32>
    %87 = vector.shape_cast %86 : vector<1x1x4x290xf32> to vector<1x4x290xf32>
    %88 = vector.shape_cast %87 : vector<1x4x290xf32> to vector<4x290xf32>
    %89 = vector.extract_strided_slice %88 {offsets = [0, 0], sizes = [4, 256], strides = [1, 1]} : vector<4x290xf32> to vector<4x256xf32>
    %90 = arith.mulf %89, %31 : vector<4x256xf32>
    %c0_52 = arith.constant 0 : index
    %c256 = arith.constant 256 : index
    %91 = vector.load %arg6[%c0_52, %c256] : memref<216x1024xf32, #tpu.memory_space<vmem>>, vector<4x256xf32>
    tpu.vector_store %arg6[%c0_52, %c256], %90 {strides = array<i32>} : memref<216x1024xf32, #tpu.memory_space<vmem>>, vector<4x256xf32>,
    %c72 = arith.constant 72 : index
    %c0_53 = arith.constant 0 : index
    %92 = vector.load %arg6[%c72, %c0_53] : memref<216x1024xf32, #tpu.memory_space<vmem>>, vector<4x256xf32>
    tpu.vector_store %arg6[%c72, %c0_53], %90 {strides = array<i32>} : memref<216x1024xf32, #tpu.memory_space<vmem>>, vector<4x256xf32>,
    %93 = vector.extract_strided_slice %88 {offsets = [0, 1], sizes = [4, 256], strides = [1, 1]} : vector<4x290xf32> to vector<4x256xf32>
    %94 = arith.mulf %93, %34 : vector<4x256xf32>
    %c8_54 = arith.constant 8 : index
    %c256_55 = arith.constant 256 : index
    %95 = vector.load %arg6[%c8_54, %c256_55] : memref<216x1024xf32, #tpu.memory_space<vmem>>, vector<4x256xf32>
    tpu.vector_store %arg6[%c8_54, %c256_55], %94 {strides = array<i32>} : memref<216x1024xf32, #tpu.memory_space<vmem>>, vector<4x256xf32>,
    %c80 = arith.constant 80 : index
    %c0_56 = arith.constant 0 : index
    %96 = vector.load %arg6[%c80, %c0_56] : memref<216x1024xf32, #tpu.memory_space<vmem>>, vector<4x256xf32>
    tpu.vector_store %arg6[%c80, %c0_56], %94 {strides = array<i32>} : memref<216x1024xf32, #tpu.memory_space<vmem>>, vector<4x256xf32>,
    %97 = vector.extract_strided_slice %88 {offsets = [0, 2], sizes = [4, 256], strides = [1, 1]} : vector<4x290xf32> to vector<4x256xf32>
    %98 = arith.mulf %97, %37 : vector<4x256xf32>
    %c16_57 = arith.constant 16 : index
    %c256_58 = arith.constant 256 : index
    %99 = vector.load %arg6[%c16_57, %c256_58] : memref<216x1024xf32, #tpu.memory_space<vmem>>, vector<4x256xf32>
    tpu.vector_store %arg6[%c16_57, %c256_58], %98 {strides = array<i32>} : memref<216x1024xf32, #tpu.memory_space<vmem>>, vector<4x256xf32>,
    %c88 = arith.constant 88 : index
    %c0_59 = arith.constant 0 : index
    %100 = vector.load %arg6[%c88, %c0_59] : memref<216x1024xf32, #tpu.memory_space<vmem>>, vector<4x256xf32>
    tpu.vector_store %arg6[%c88, %c0_59], %98 {strides = array<i32>} : memref<216x1024xf32, #tpu.memory_space<vmem>>, vector<4x256xf32>,
    %101 = vector.extract_strided_slice %88 {offsets = [0, 16], sizes = [4, 256], strides = [1, 1]} : vector<4x290xf32> to vector<4x256xf32>
    %102 = arith.mulf %101, %40 : vector<4x256xf32>
    %c24_60 = arith.constant 24 : index
    %c256_61 = arith.constant 256 : index
    %103 = vector.load %arg6[%c24_60, %c256_61] : memref<216x1024xf32, #tpu.memory_space<vmem>>, vector<4x256xf32>
    tpu.vector_store %arg6[%c24_60, %c256_61], %102 {strides = array<i32>} : memref<216x1024xf32, #tpu.memory_space<vmem>>, vector<4x256xf32>,
    %c96 = arith.constant 96 : index
    %c0_62 = arith.constant 0 : index
    %104 = vector.load %arg6[%c96, %c0_62] : memref<216x1024xf32, #tpu.memory_space<vmem>>, vector<4x256xf32>
    tpu.vector_store %arg6[%c96, %c0_62], %102 {strides = array<i32>} : memref<216x1024xf32, #tpu.memory_space<vmem>>, vector<4x256xf32>,
    %105 = vector.extract_strided_slice %88 {offsets = [0, 17], sizes = [4, 256], strides = [1, 1]} : vector<4x290xf32> to vector<4x256xf32>
    %c32_63 = arith.constant 32 : index
    %c256_64 = arith.constant 256 : index
    %106 = vector.load %arg6[%c32_63, %c256_64] : memref<216x1024xf32, #tpu.memory_space<vmem>>, vector<4x256xf32>
    tpu.vector_store %arg6[%c32_63, %c256_64], %105 {strides = array<i32>} : memref<216x1024xf32, #tpu.memory_space<vmem>>, vector<4x256xf32>,
    %c104 = arith.constant 104 : index
    %c0_65 = arith.constant 0 : index
    %107 = vector.load %arg6[%c104, %c0_65] : memref<216x1024xf32, #tpu.memory_space<vmem>>, vector<4x256xf32>
    tpu.vector_store %arg6[%c104, %c0_65], %105 {strides = array<i32>} : memref<216x1024xf32, #tpu.memory_space<vmem>>, vector<4x256xf32>,
    %108 = vector.extract_strided_slice %88 {offsets = [0, 18], sizes = [4, 256], strides = [1, 1]} : vector<4x290xf32> to vector<4x256xf32>
    %109 = arith.mulf %108, %43 : vector<4x256xf32>
    %c40_66 = arith.constant 40 : index
    %c256_67 = arith.constant 256 : index
    %110 = vector.load %arg6[%c40_66, %c256_67] : memref<216x1024xf32, #tpu.memory_space<vmem>>, vector<4x256xf32>
    tpu.vector_store %arg6[%c40_66, %c256_67], %109 {strides = array<i32>} : memref<216x1024xf32, #tpu.memory_space<vmem>>, vector<4x256xf32>,
    %c112 = arith.constant 112 : index
    %c0_68 = arith.constant 0 : index
    %111 = vector.load %arg6[%c112, %c0_68] : memref<216x1024xf32, #tpu.memory_space<vmem>>, vector<4x256xf32>
    tpu.vector_store %arg6[%c112, %c0_68], %109 {strides = array<i32>} : memref<216x1024xf32, #tpu.memory_space<vmem>>, vector<4x256xf32>,
    %112 = vector.extract_strided_slice %88 {offsets = [0, 32], sizes = [4, 256], strides = [1, 1]} : vector<4x290xf32> to vector<4x256xf32>
    %113 = arith.mulf %112, %46 : vector<4x256xf32>
    %c48_69 = arith.constant 48 : index
    %c256_70 = arith.constant 256 : index
    %114 = vector.load %arg6[%c48_69, %c256_70] : memref<216x1024xf32, #tpu.memory_space<vmem>>, vector<4x256xf32>
    tpu.vector_store %arg6[%c48_69, %c256_70], %113 {strides = array<i32>} : memref<216x1024xf32, #tpu.memory_space<vmem>>, vector<4x256xf32>,
    %c120 = arith.constant 120 : index
    %c0_71 = arith.constant 0 : index
    %115 = vector.load %arg6[%c120, %c0_71] : memref<216x1024xf32, #tpu.memory_space<vmem>>, vector<4x256xf32>
    tpu.vector_store %arg6[%c120, %c0_71], %113 {strides = array<i32>} : memref<216x1024xf32, #tpu.memory_space<vmem>>, vector<4x256xf32>,
    %116 = vector.extract_strided_slice %88 {offsets = [0, 33], sizes = [4, 256], strides = [1, 1]} : vector<4x290xf32> to vector<4x256xf32>
    %117 = arith.mulf %116, %49 : vector<4x256xf32>
    %c56_72 = arith.constant 56 : index
    %c256_73 = arith.constant 256 : index
    %118 = vector.load %arg6[%c56_72, %c256_73] : memref<216x1024xf32, #tpu.memory_space<vmem>>, vector<4x256xf32>
    tpu.vector_store %arg6[%c56_72, %c256_73], %117 {strides = array<i32>} : memref<216x1024xf32, #tpu.memory_space<vmem>>, vector<4x256xf32>,
    %c128 = arith.constant 128 : index
    %c0_74 = arith.constant 0 : index
    %119 = vector.load %arg6[%c128, %c0_74] : memref<216x1024xf32, #tpu.memory_space<vmem>>, vector<4x256xf32>
    tpu.vector_store %arg6[%c128, %c0_74], %117 {strides = array<i32>} : memref<216x1024xf32, #tpu.memory_space<vmem>>, vector<4x256xf32>,
    %120 = vector.extract_strided_slice %88 {offsets = [0, 34], sizes = [4, 256], strides = [1, 1]} : vector<4x290xf32> to vector<4x256xf32>
    %121 = arith.mulf %120, %52 : vector<4x256xf32>
    %c64_75 = arith.constant 64 : index
    %c256_76 = arith.constant 256 : index
    %122 = vector.load %arg6[%c64_75, %c256_76] : memref<216x1024xf32, #tpu.memory_space<vmem>>, vector<4x256xf32>
    tpu.vector_store %arg6[%c64_75, %c256_76], %121 {strides = array<i32>} : memref<216x1024xf32, #tpu.memory_space<vmem>>, vector<4x256xf32>,
    %c136 = arith.constant 136 : index
    %c0_77 = arith.constant 0 : index
    %123 = vector.load %arg6[%c136, %c0_77] : memref<216x1024xf32, #tpu.memory_space<vmem>>, vector<4x256xf32>
    tpu.vector_store %arg6[%c136, %c0_77], %121 {strides = array<i32>} : memref<216x1024xf32, #tpu.memory_space<vmem>>, vector<4x256xf32>,
    %c2_i32 = arith.constant 2 : i32
    %124 = arith.addi %0, %c2_i32 : i32
    %c0_78 = arith.constant 0 : index
    %125 = arith.index_cast %124 : i32 to index
    %c0_79 = arith.constant 0 : index
    %c0_80 = arith.constant 0 : index
    %126 = vector.load %arg2[%c0_78, %125, %c0_79, %c0_80] : memref<1x6x4x290xf32, #tpu.memory_space<vmem>>, vector<1x1x4x290xf32>
    %127 = vector.shape_cast %126 : vector<1x1x4x290xf32> to vector<1x4x290xf32>
    %128 = vector.shape_cast %127 : vector<1x4x290xf32> to vector<4x290xf32>
    %129 = vector.extract_strided_slice %128 {offsets = [0, 0], sizes = [4, 256], strides = [1, 1]} : vector<4x290xf32> to vector<4x256xf32>
    %130 = arith.mulf %129, %31 : vector<4x256xf32>
    %c0_81 = arith.constant 0 : index
    %c512 = arith.constant 512 : index
    %131 = vector.load %arg6[%c0_81, %c512] : memref<216x1024xf32, #tpu.memory_space<vmem>>, vector<4x256xf32>
    tpu.vector_store %arg6[%c0_81, %c512], %130 {strides = array<i32>} : memref<216x1024xf32, #tpu.memory_space<vmem>>, vector<4x256xf32>,
    %c72_82 = arith.constant 72 : index
    %c256_83 = arith.constant 256 : index
    %132 = vector.load %arg6[%c72_82, %c256_83] : memref<216x1024xf32, #tpu.memory_space<vmem>>, vector<4x256xf32>
    tpu.vector_store %arg6[%c72_82, %c256_83], %130 {strides = array<i32>} : memref<216x1024xf32, #tpu.memory_space<vmem>>, vector<4x256xf32>,
    %c144 = arith.constant 144 : index
    %c0_84 = arith.constant 0 : index
    %133 = vector.load %arg6[%c144, %c0_84] : memref<216x1024xf32, #tpu.memory_space<vmem>>, vector<4x256xf32>
    tpu.vector_store %arg6[%c144, %c0_84], %130 {strides = array<i32>} : memref<216x1024xf32, #tpu.memory_space<vmem>>, vector<4x256xf32>,
    %134 = vector.extract_strided_slice %128 {offsets = [0, 1], sizes = [4, 256], strides = [1, 1]} : vector<4x290xf32> to vector<4x256xf32>
    %135 = arith.mulf %134, %34 : vector<4x256xf32>
    %c8_85 = arith.constant 8 : index
    %c512_86 = arith.constant 512 : index
    %136 = vector.load %arg6[%c8_85, %c512_86] : memref<216x1024xf32, #tpu.memory_space<vmem>>, vector<4x256xf32>
    tpu.vector_store %arg6[%c8_85, %c512_86], %135 {strides = array<i32>} : memref<216x1024xf32, #tpu.memory_space<vmem>>, vector<4x256xf32>,
    %c80_87 = arith.constant 80 : index
    %c256_88 = arith.constant 256 : index
    %137 = vector.load %arg6[%c80_87, %c256_88] : memref<216x1024xf32, #tpu.memory_space<vmem>>, vector<4x256xf32>
    tpu.vector_store %arg6[%c80_87, %c256_88], %135 {strides = array<i32>} : memref<216x1024xf32, #tpu.memory_space<vmem>>, vector<4x256xf32>,
    %c152 = arith.constant 152 : index
    %c0_89 = arith.constant 0 : index
    %138 = vector.load %arg6[%c152, %c0_89] : memref<216x1024xf32, #tpu.memory_space<vmem>>, vector<4x256xf32>
    tpu.vector_store %arg6[%c152, %c0_89], %135 {strides = array<i32>} : memref<216x1024xf32, #tpu.memory_space<vmem>>, vector<4x256xf32>,
    %139 = vector.extract_strided_slice %128 {offsets = [0, 2], sizes = [4, 256], strides = [1, 1]} : vector<4x290xf32> to vector<4x256xf32>
    %140 = arith.mulf %139, %37 : vector<4x256xf32>
    %c16_90 = arith.constant 16 : index
    %c512_91 = arith.constant 512 : index
    %141 = vector.load %arg6[%c16_90, %c512_91] : memref<216x1024xf32, #tpu.memory_space<vmem>>, vector<4x256xf32>
    tpu.vector_store %arg6[%c16_90, %c512_91], %140 {strides = array<i32>} : memref<216x1024xf32, #tpu.memory_space<vmem>>, vector<4x256xf32>,
    %c88_92 = arith.constant 88 : index
    %c256_93 = arith.constant 256 : index
    %142 = vector.load %arg6[%c88_92, %c256_93] : memref<216x1024xf32, #tpu.memory_space<vmem>>, vector<4x256xf32>
    tpu.vector_store %arg6[%c88_92, %c256_93], %140 {strides = array<i32>} : memref<216x1024xf32, #tpu.memory_space<vmem>>, vector<4x256xf32>,
    %c160 = arith.constant 160 : index
    %c0_94 = arith.constant 0 : index
    %143 = vector.load %arg6[%c160, %c0_94] : memref<216x1024xf32, #tpu.memory_space<vmem>>, vector<4x256xf32>
    tpu.vector_store %arg6[%c160, %c0_94], %140 {strides = array<i32>} : memref<216x1024xf32, #tpu.memory_space<vmem>>, vector<4x256xf32>,
    %144 = vector.extract_strided_slice %128 {offsets = [0, 16], sizes = [4, 256], strides = [1, 1]} : vector<4x290xf32> to vector<4x256xf32>
    %145 = arith.mulf %144, %40 : vector<4x256xf32>
    %c24_95 = arith.constant 24 : index
    %c512_96 = arith.constant 512 : index
    %146 = vector.load %arg6[%c24_95, %c512_96] : memref<216x1024xf32, #tpu.memory_space<vmem>>, vector<4x256xf32>
    tpu.vector_store %arg6[%c24_95, %c512_96], %145 {strides = array<i32>} : memref<216x1024xf32, #tpu.memory_space<vmem>>, vector<4x256xf32>,
    %c96_97 = arith.constant 96 : index
    %c256_98 = arith.constant 256 : index
    %147 = vector.load %arg6[%c96_97, %c256_98] : memref<216x1024xf32, #tpu.memory_space<vmem>>, vector<4x256xf32>
    tpu.vector_store %arg6[%c96_97, %c256_98], %145 {strides = array<i32>} : memref<216x1024xf32, #tpu.memory_space<vmem>>, vector<4x256xf32>,
    %c168 = arith.constant 168 : index
    %c0_99 = arith.constant 0 : index
    %148 = vector.load %arg6[%c168, %c0_99] : memref<216x1024xf32, #tpu.memory_space<vmem>>, vector<4x256xf32>
    tpu.vector_store %arg6[%c168, %c0_99], %145 {strides = array<i32>} : memref<216x1024xf32, #tpu.memory_space<vmem>>, vector<4x256xf32>,
    %149 = vector.extract_strided_slice %128 {offsets = [0, 17], sizes = [4, 256], strides = [1, 1]} : vector<4x290xf32> to vector<4x256xf32>
    %c32_100 = arith.constant 32 : index
    %c512_101 = arith.constant 512 : index
    %150 = vector.load %arg6[%c32_100, %c512_101] : memref<216x1024xf32, #tpu.memory_space<vmem>>, vector<4x256xf32>
    tpu.vector_store %arg6[%c32_100, %c512_101], %149 {strides = array<i32>} : memref<216x1024xf32, #tpu.memory_space<vmem>>, vector<4x256xf32>,
    %c104_102 = arith.constant 104 : index
    %c256_103 = arith.constant 256 : index
    %151 = vector.load %arg6[%c104_102, %c256_103] : memref<216x1024xf32, #tpu.memory_space<vmem>>, vector<4x256xf32>
    tpu.vector_store %arg6[%c104_102, %c256_103], %149 {strides = array<i32>} : memref<216x1024xf32, #tpu.memory_space<vmem>>, vector<4x256xf32>,
    %c176 = arith.constant 176 : index
    %c0_104 = arith.constant 0 : index
    %152 = vector.load %arg6[%c176, %c0_104] : memref<216x1024xf32, #tpu.memory_space<vmem>>, vector<4x256xf32>
    tpu.vector_store %arg6[%c176, %c0_104], %149 {strides = array<i32>} : memref<216x1024xf32, #tpu.memory_space<vmem>>, vector<4x256xf32>,
    %153 = vector.extract_strided_slice %128 {offsets = [0, 18], sizes = [4, 256], strides = [1, 1]} : vector<4x290xf32> to vector<4x256xf32>
    %154 = arith.mulf %153, %43 : vector<4x256xf32>
    %c40_105 = arith.constant 40 : index
    %c512_106 = arith.constant 512 : index
    %155 = vector.load %arg6[%c40_105, %c512_106] : memref<216x1024xf32, #tpu.memory_space<vmem>>, vector<4x256xf32>
    tpu.vector_store %arg6[%c40_105, %c512_106], %154 {strides = array<i32>} : memref<216x1024xf32, #tpu.memory_space<vmem>>, vector<4x256xf32>,
    %c112_107 = arith.constant 112 : index
    %c256_108 = arith.constant 256 : index
    %156 = vector.load %arg6[%c112_107, %c256_108] : memref<216x1024xf32, #tpu.memory_space<vmem>>, vector<4x256xf32>
    tpu.vector_store %arg6[%c112_107, %c256_108], %154 {strides = array<i32>} : memref<216x1024xf32, #tpu.memory_space<vmem>>, vector<4x256xf32>,
    %c184 = arith.constant 184 : index
    %c0_109 = arith.constant 0 : index
    %157 = vector.load %arg6[%c184, %c0_109] : memref<216x1024xf32, #tpu.memory_space<vmem>>, vector<4x256xf32>
    tpu.vector_store %arg6[%c184, %c0_109], %154 {strides = array<i32>} : memref<216x1024xf32, #tpu.memory_space<vmem>>, vector<4x256xf32>,
    %158 = vector.extract_strided_slice %128 {offsets = [0, 32], sizes = [4, 256], strides = [1, 1]} : vector<4x290xf32> to vector<4x256xf32>
    %159 = arith.mulf %158, %46 : vector<4x256xf32>
    %c48_110 = arith.constant 48 : index
    %c512_111 = arith.constant 512 : index
    %160 = vector.load %arg6[%c48_110, %c512_111] : memref<216x1024xf32, #tpu.memory_space<vmem>>, vector<4x256xf32>
    tpu.vector_store %arg6[%c48_110, %c512_111], %159 {strides = array<i32>} : memref<216x1024xf32, #tpu.memory_space<vmem>>, vector<4x256xf32>,
    %c120_112 = arith.constant 120 : index
    %c256_113 = arith.constant 256 : index
    %161 = vector.load %arg6[%c120_112, %c256_113] : memref<216x1024xf32, #tpu.memory_space<vmem>>, vector<4x256xf32>
    tpu.vector_store %arg6[%c120_112, %c256_113], %159 {strides = array<i32>} : memref<216x1024xf32, #tpu.memory_space<vmem>>, vector<4x256xf32>,
    %c192 = arith.constant 192 : index
    %c0_114 = arith.constant 0 : index
    %162 = vector.load %arg6[%c192, %c0_114] : memref<216x1024xf32, #tpu.memory_space<vmem>>, vector<4x256xf32>
    tpu.vector_store %arg6[%c192, %c0_114], %159 {strides = array<i32>} : memref<216x1024xf32, #tpu.memory_space<vmem>>, vector<4x256xf32>,
    %163 = vector.extract_strided_slice %128 {offsets = [0, 33], sizes = [4, 256], strides = [1, 1]} : vector<4x290xf32> to vector<4x256xf32>
    %164 = arith.mulf %163, %49 : vector<4x256xf32>
    %c56_115 = arith.constant 56 : index
    %c512_116 = arith.constant 512 : index
    %165 = vector.load %arg6[%c56_115, %c512_116] : memref<216x1024xf32, #tpu.memory_space<vmem>>, vector<4x256xf32>
    tpu.vector_store %arg6[%c56_115, %c512_116], %164 {strides = array<i32>} : memref<216x1024xf32, #tpu.memory_space<vmem>>, vector<4x256xf32>,
    %c128_117 = arith.constant 128 : index
    %c256_118 = arith.constant 256 : index
    %166 = vector.load %arg6[%c128_117, %c256_118] : memref<216x1024xf32, #tpu.memory_space<vmem>>, vector<4x256xf32>
    tpu.vector_store %arg6[%c128_117, %c256_118], %164 {strides = array<i32>} : memref<216x1024xf32, #tpu.memory_space<vmem>>, vector<4x256xf32>,
    %c200 = arith.constant 200 : index
    %c0_119 = arith.constant 0 : index
    %167 = vector.load %arg6[%c200, %c0_119] : memref<216x1024xf32, #tpu.memory_space<vmem>>, vector<4x256xf32>
    tpu.vector_store %arg6[%c200, %c0_119], %164 {strides = array<i32>} : memref<216x1024xf32, #tpu.memory_space<vmem>>, vector<4x256xf32>,
    %168 = vector.extract_strided_slice %128 {offsets = [0, 34], sizes = [4, 256], strides = [1, 1]} : vector<4x290xf32> to vector<4x256xf32>
    %169 = arith.mulf %168, %52 : vector<4x256xf32>
    %c64_120 = arith.constant 64 : index
    %c512_121 = arith.constant 512 : index
    %170 = vector.load %arg6[%c64_120, %c512_121] : memref<216x1024xf32, #tpu.memory_space<vmem>>, vector<4x256xf32>
    tpu.vector_store %arg6[%c64_120, %c512_121], %169 {strides = array<i32>} : memref<216x1024xf32, #tpu.memory_space<vmem>>, vector<4x256xf32>,
    %c136_122 = arith.constant 136 : index
    %c256_123 = arith.constant 256 : index
    %171 = vector.load %arg6[%c136_122, %c256_123] : memref<216x1024xf32, #tpu.memory_space<vmem>>, vector<4x256xf32>
    tpu.vector_store %arg6[%c136_122, %c256_123], %169 {strides = array<i32>} : memref<216x1024xf32, #tpu.memory_space<vmem>>, vector<4x256xf32>,
    %c208 = arith.constant 208 : index
    %c0_124 = arith.constant 0 : index
    %172 = vector.load %arg6[%c208, %c0_124] : memref<216x1024xf32, #tpu.memory_space<vmem>>, vector<4x256xf32>
    tpu.vector_store %arg6[%c208, %c0_124], %169 {strides = array<i32>} : memref<216x1024xf32, #tpu.memory_space<vmem>>, vector<4x256xf32>,
    %c3_i32 = arith.constant 3 : i32
    %173 = arith.addi %0, %c3_i32 : i32
    %c0_125 = arith.constant 0 : index
    %174 = arith.index_cast %173 : i32 to index
    %c0_126 = arith.constant 0 : index
    %c0_127 = arith.constant 0 : index
    %175 = vector.load %arg2[%c0_125, %174, %c0_126, %c0_127] : memref<1x6x4x290xf32, #tpu.memory_space<vmem>>, vector<1x1x4x290xf32>
    %176 = vector.shape_cast %175 : vector<1x1x4x290xf32> to vector<1x4x290xf32>
    %177 = vector.shape_cast %176 : vector<1x4x290xf32> to vector<4x290xf32>
    %178 = vector.extract_strided_slice %177 {offsets = [0, 0], sizes = [4, 256], strides = [1, 1]} : vector<4x290xf32> to vector<4x256xf32>
    %179 = arith.mulf %178, %31 : vector<4x256xf32>
    %c0_128 = arith.constant 0 : index
    %c768 = arith.constant 768 : index
    %180 = vector.load %arg6[%c0_128, %c768] : memref<216x1024xf32, #tpu.memory_space<vmem>>, vector<4x256xf32>
    tpu.vector_store %arg6[%c0_128, %c768], %179 {strides = array<i32>} : memref<216x1024xf32, #tpu.memory_space<vmem>>, vector<4x256xf32>,
    %c72_129 = arith.constant 72 : index
    %c512_130 = arith.constant 512 : index
    %181 = vector.load %arg6[%c72_129, %c512_130] : memref<216x1024xf32, #tpu.memory_space<vmem>>, vector<4x256xf32>
    tpu.vector_store %arg6[%c72_129, %c512_130], %179 {strides = array<i32>} : memref<216x1024xf32, #tpu.memory_space<vmem>>, vector<4x256xf32>,
    %c144_131 = arith.constant 144 : index
    %c256_132 = arith.constant 256 : index
    %182 = vector.load %arg6[%c144_131, %c256_132] : memref<216x1024xf32, #tpu.memory_space<vmem>>, vector<4x256xf32>
    tpu.vector_store %arg6[%c144_131, %c256_132], %179 {strides = array<i32>} : memref<216x1024xf32, #tpu.memory_space<vmem>>, vector<4x256xf32>,
    %183 = vector.extract_strided_slice %177 {offsets = [0, 1], sizes = [4, 256], strides = [1, 1]} : vector<4x290xf32> to vector<4x256xf32>
    %184 = arith.mulf %183, %34 : vector<4x256xf32>
    %c8_133 = arith.constant 8 : index
    %c768_134 = arith.constant 768 : index
    %185 = vector.load %arg6[%c8_133, %c768_134] : memref<216x1024xf32, #tpu.memory_space<vmem>>, vector<4x256xf32>
    tpu.vector_store %arg6[%c8_133, %c768_134], %184 {strides = array<i32>} : memref<216x1024xf32, #tpu.memory_space<vmem>>, vector<4x256xf32>,
    %c80_135 = arith.constant 80 : index
    %c512_136 = arith.constant 512 : index
    %186 = vector.load %arg6[%c80_135, %c512_136] : memref<216x1024xf32, #tpu.memory_space<vmem>>, vector<4x256xf32>
    tpu.vector_store %arg6[%c80_135, %c512_136], %184 {strides = array<i32>} : memref<216x1024xf32, #tpu.memory_space<vmem>>, vector<4x256xf32>,
    %c152_137 = arith.constant 152 : index
    %c256_138 = arith.constant 256 : index
    %187 = vector.load %arg6[%c152_137, %c256_138] : memref<216x1024xf32, #tpu.memory_space<vmem>>, vector<4x256xf32>
    tpu.vector_store %arg6[%c152_137, %c256_138], %184 {strides = array<i32>} : memref<216x1024xf32, #tpu.memory_space<vmem>>, vector<4x256xf32>,
    %188 = vector.extract_strided_slice %177 {offsets = [0, 2], sizes = [4, 256], strides = [1, 1]} : vector<4x290xf32> to vector<4x256xf32>
    %189 = arith.mulf %188, %37 : vector<4x256xf32>
    %c16_139 = arith.constant 16 : index
    %c768_140 = arith.constant 768 : index
    %190 = vector.load %arg6[%c16_139, %c768_140] : memref<216x1024xf32, #tpu.memory_space<vmem>>, vector<4x256xf32>
    tpu.vector_store %arg6[%c16_139, %c768_140], %189 {strides = array<i32>} : memref<216x1024xf32, #tpu.memory_space<vmem>>, vector<4x256xf32>,
    %c88_141 = arith.constant 88 : index
    %c512_142 = arith.constant 512 : index
    %191 = vector.load %arg6[%c88_141, %c512_142] : memref<216x1024xf32, #tpu.memory_space<vmem>>, vector<4x256xf32>
    tpu.vector_store %arg6[%c88_141, %c512_142], %189 {strides = array<i32>} : memref<216x1024xf32, #tpu.memory_space<vmem>>, vector<4x256xf32>,
    %c160_143 = arith.constant 160 : index
    %c256_144 = arith.constant 256 : index
    %192 = vector.load %arg6[%c160_143, %c256_144] : memref<216x1024xf32, #tpu.memory_space<vmem>>, vector<4x256xf32>
    tpu.vector_store %arg6[%c160_143, %c256_144], %189 {strides = array<i32>} : memref<216x1024xf32, #tpu.memory_space<vmem>>, vector<4x256xf32>,
    %193 = vector.extract_strided_slice %177 {offsets = [0, 16], sizes = [4, 256], strides = [1, 1]} : vector<4x290xf32> to vector<4x256xf32>
    %194 = arith.mulf %193, %40 : vector<4x256xf32>
    %c24_145 = arith.constant 24 : index
    %c768_146 = arith.constant 768 : index
    %195 = vector.load %arg6[%c24_145, %c768_146] : memref<216x1024xf32, #tpu.memory_space<vmem>>, vector<4x256xf32>
    tpu.vector_store %arg6[%c24_145, %c768_146], %194 {strides = array<i32>} : memref<216x1024xf32, #tpu.memory_space<vmem>>, vector<4x256xf32>,
    %c96_147 = arith.constant 96 : index
    %c512_148 = arith.constant 512 : index
    %196 = vector.load %arg6[%c96_147, %c512_148] : memref<216x1024xf32, #tpu.memory_space<vmem>>, vector<4x256xf32>
    tpu.vector_store %arg6[%c96_147, %c512_148], %194 {strides = array<i32>} : memref<216x1024xf32, #tpu.memory_space<vmem>>, vector<4x256xf32>,
    %c168_149 = arith.constant 168 : index
    %c256_150 = arith.constant 256 : index
    %197 = vector.load %arg6[%c168_149, %c256_150] : memref<216x1024xf32, #tpu.memory_space<vmem>>, vector<4x256xf32>
    tpu.vector_store %arg6[%c168_149, %c256_150], %194 {strides = array<i32>} : memref<216x1024xf32, #tpu.memory_space<vmem>>, vector<4x256xf32>,
    %198 = vector.extract_strided_slice %177 {offsets = [0, 17], sizes = [4, 256], strides = [1, 1]} : vector<4x290xf32> to vector<4x256xf32>
    %c32_151 = arith.constant 32 : index
    %c768_152 = arith.constant 768 : index
    %199 = vector.load %arg6[%c32_151, %c768_152] : memref<216x1024xf32, #tpu.memory_space<vmem>>, vector<4x256xf32>
    tpu.vector_store %arg6[%c32_151, %c768_152], %198 {strides = array<i32>} : memref<216x1024xf32, #tpu.memory_space<vmem>>, vector<4x256xf32>,
    %c104_153 = arith.constant 104 : index
    %c512_154 = arith.constant 512 : index
    %200 = vector.load %arg6[%c104_153, %c512_154] : memref<216x1024xf32, #tpu.memory_space<vmem>>, vector<4x256xf32>
    tpu.vector_store %arg6[%c104_153, %c512_154], %198 {strides = array<i32>} : memref<216x1024xf32, #tpu.memory_space<vmem>>, vector<4x256xf32>,
    %c176_155 = arith.constant 176 : index
    %c256_156 = arith.constant 256 : index
    %201 = vector.load %arg6[%c176_155, %c256_156] : memref<216x1024xf32, #tpu.memory_space<vmem>>, vector<4x256xf32>
    tpu.vector_store %arg6[%c176_155, %c256_156], %198 {strides = array<i32>} : memref<216x1024xf32, #tpu.memory_space<vmem>>, vector<4x256xf32>,
    %202 = vector.extract_strided_slice %177 {offsets = [0, 18], sizes = [4, 256], strides = [1, 1]} : vector<4x290xf32> to vector<4x256xf32>
    %203 = arith.mulf %202, %43 : vector<4x256xf32>
    %c40_157 = arith.constant 40 : index
    %c768_158 = arith.constant 768 : index
    %204 = vector.load %arg6[%c40_157, %c768_158] : memref<216x1024xf32, #tpu.memory_space<vmem>>, vector<4x256xf32>
    tpu.vector_store %arg6[%c40_157, %c768_158], %203 {strides = array<i32>} : memref<216x1024xf32, #tpu.memory_space<vmem>>, vector<4x256xf32>,
    %c112_159 = arith.constant 112 : index
    %c512_160 = arith.constant 512 : index
    %205 = vector.load %arg6[%c112_159, %c512_160] : memref<216x1024xf32, #tpu.memory_space<vmem>>, vector<4x256xf32>
    tpu.vector_store %arg6[%c112_159, %c512_160], %203 {strides = array<i32>} : memref<216x1024xf32, #tpu.memory_space<vmem>>, vector<4x256xf32>,
    %c184_161 = arith.constant 184 : index
    %c256_162 = arith.constant 256 : index
    %206 = vector.load %arg6[%c184_161, %c256_162] : memref<216x1024xf32, #tpu.memory_space<vmem>>, vector<4x256xf32>
    tpu.vector_store %arg6[%c184_161, %c256_162], %203 {strides = array<i32>} : memref<216x1024xf32, #tpu.memory_space<vmem>>, vector<4x256xf32>,
    %207 = vector.extract_strided_slice %177 {offsets = [0, 32], sizes = [4, 256], strides = [1, 1]} : vector<4x290xf32> to vector<4x256xf32>
    %208 = arith.mulf %207, %46 : vector<4x256xf32>
    %c48_163 = arith.constant 48 : index
    %c768_164 = arith.constant 768 : index
    %209 = vector.load %arg6[%c48_163, %c768_164] : memref<216x1024xf32, #tpu.memory_space<vmem>>, vector<4x256xf32>
    tpu.vector_store %arg6[%c48_163, %c768_164], %208 {strides = array<i32>} : memref<216x1024xf32, #tpu.memory_space<vmem>>, vector<4x256xf32>,
    %c120_165 = arith.constant 120 : index
    %c512_166 = arith.constant 512 : index
    %210 = vector.load %arg6[%c120_165, %c512_166] : memref<216x1024xf32, #tpu.memory_space<vmem>>, vector<4x256xf32>
    tpu.vector_store %arg6[%c120_165, %c512_166], %208 {strides = array<i32>} : memref<216x1024xf32, #tpu.memory_space<vmem>>, vector<4x256xf32>,
    %c192_167 = arith.constant 192 : index
    %c256_168 = arith.constant 256 : index
    %211 = vector.load %arg6[%c192_167, %c256_168] : memref<216x1024xf32, #tpu.memory_space<vmem>>, vector<4x256xf32>
    tpu.vector_store %arg6[%c192_167, %c256_168], %208 {strides = array<i32>} : memref<216x1024xf32, #tpu.memory_space<vmem>>, vector<4x256xf32>,
    %212 = vector.extract_strided_slice %177 {offsets = [0, 33], sizes = [4, 256], strides = [1, 1]} : vector<4x290xf32> to vector<4x256xf32>
    %213 = arith.mulf %212, %49 : vector<4x256xf32>
    %c56_169 = arith.constant 56 : index
    %c768_170 = arith.constant 768 : index
    %214 = vector.load %arg6[%c56_169, %c768_170] : memref<216x1024xf32, #tpu.memory_space<vmem>>, vector<4x256xf32>
    tpu.vector_store %arg6[%c56_169, %c768_170], %213 {strides = array<i32>} : memref<216x1024xf32, #tpu.memory_space<vmem>>, vector<4x256xf32>,
    %c128_171 = arith.constant 128 : index
    %c512_172 = arith.constant 512 : index
    %215 = vector.load %arg6[%c128_171, %c512_172] : memref<216x1024xf32, #tpu.memory_space<vmem>>, vector<4x256xf32>
    tpu.vector_store %arg6[%c128_171, %c512_172], %213 {strides = array<i32>} : memref<216x1024xf32, #tpu.memory_space<vmem>>, vector<4x256xf32>,
    %c200_173 = arith.constant 200 : index
    %c256_174 = arith.constant 256 : index
    %216 = vector.load %arg6[%c200_173, %c256_174] : memref<216x1024xf32, #tpu.memory_space<vmem>>, vector<4x256xf32>
    tpu.vector_store %arg6[%c200_173, %c256_174], %213 {strides = array<i32>} : memref<216x1024xf32, #tpu.memory_space<vmem>>, vector<4x256xf32>,
    %217 = vector.extract_strided_slice %177 {offsets = [0, 34], sizes = [4, 256], strides = [1, 1]} : vector<4x290xf32> to vector<4x256xf32>
    %218 = arith.mulf %217, %52 : vector<4x256xf32>
    %c64_175 = arith.constant 64 : index
    %c768_176 = arith.constant 768 : index
    %219 = vector.load %arg6[%c64_175, %c768_176] : memref<216x1024xf32, #tpu.memory_space<vmem>>, vector<4x256xf32>
    tpu.vector_store %arg6[%c64_175, %c768_176], %218 {strides = array<i32>} : memref<216x1024xf32, #tpu.memory_space<vmem>>, vector<4x256xf32>,
    %c136_177 = arith.constant 136 : index
    %c512_178 = arith.constant 512 : index
    %220 = vector.load %arg6[%c136_177, %c512_178] : memref<216x1024xf32, #tpu.memory_space<vmem>>, vector<4x256xf32>
    tpu.vector_store %arg6[%c136_177, %c512_178], %218 {strides = array<i32>} : memref<216x1024xf32, #tpu.memory_space<vmem>>, vector<4x256xf32>,
    %c208_179 = arith.constant 208 : index
    %c256_180 = arith.constant 256 : index
    %221 = vector.load %arg6[%c208_179, %c256_180] : memref<216x1024xf32, #tpu.memory_space<vmem>>, vector<4x256xf32>
    tpu.vector_store %arg6[%c208_179, %c256_180], %218 {strides = array<i32>} : memref<216x1024xf32, #tpu.memory_space<vmem>>, vector<4x256xf32>,
    %c4_i32_181 = arith.constant 4 : i32
    %222 = arith.addi %0, %c4_i32_181 : i32
    %c0_182 = arith.constant 0 : index
    %223 = arith.index_cast %222 : i32 to index
    %c0_183 = arith.constant 0 : index
    %c0_184 = arith.constant 0 : index
    %224 = vector.load %arg2[%c0_182, %223, %c0_183, %c0_184] : memref<1x6x4x290xf32, #tpu.memory_space<vmem>>, vector<1x1x4x290xf32>
    %225 = vector.shape_cast %224 : vector<1x1x4x290xf32> to vector<1x4x290xf32>
    %226 = vector.shape_cast %225 : vector<1x4x290xf32> to vector<4x290xf32>
    %227 = vector.extract_strided_slice %226 {offsets = [0, 0], sizes = [4, 256], strides = [1, 1]} : vector<4x290xf32> to vector<4x256xf32>
    %228 = arith.mulf %227, %31 : vector<4x256xf32>
    %c72_185 = arith.constant 72 : index
    %c768_186 = arith.constant 768 : index
    %229 = vector.load %arg6[%c72_185, %c768_186] : memref<216x1024xf32, #tpu.memory_space<vmem>>, vector<4x256xf32>
    tpu.vector_store %arg6[%c72_185, %c768_186], %228 {strides = array<i32>} : memref<216x1024xf32, #tpu.memory_space<vmem>>, vector<4x256xf32>,
    %c144_187 = arith.constant 144 : index
    %c512_188 = arith.constant 512 : index
    %230 = vector.load %arg6[%c144_187, %c512_188] : memref<216x1024xf32, #tpu.memory_space<vmem>>, vector<4x256xf32>
    tpu.vector_store %arg6[%c144_187, %c512_188], %228 {strides = array<i32>} : memref<216x1024xf32, #tpu.memory_space<vmem>>, vector<4x256xf32>,
    %231 = vector.extract_strided_slice %226 {offsets = [0, 1], sizes = [4, 256], strides = [1, 1]} : vector<4x290xf32> to vector<4x256xf32>
    %232 = arith.mulf %231, %34 : vector<4x256xf32>
    %c80_189 = arith.constant 80 : index
    %c768_190 = arith.constant 768 : index
    %233 = vector.load %arg6[%c80_189, %c768_190] : memref<216x1024xf32, #tpu.memory_space<vmem>>, vector<4x256xf32>
    tpu.vector_store %arg6[%c80_189, %c768_190], %232 {strides = array<i32>} : memref<216x1024xf32, #tpu.memory_space<vmem>>, vector<4x256xf32>,
    %c152_191 = arith.constant 152 : index
    %c512_192 = arith.constant 512 : index
    %234 = vector.load %arg6[%c152_191, %c512_192] : memref<216x1024xf32, #tpu.memory_space<vmem>>, vector<4x256xf32>
    tpu.vector_store %arg6[%c152_191, %c512_192], %232 {strides = array<i32>} : memref<216x1024xf32, #tpu.memory_space<vmem>>, vector<4x256xf32>,
    %235 = vector.extract_strided_slice %226 {offsets = [0, 2], sizes = [4, 256], strides = [1, 1]} : vector<4x290xf32> to vector<4x256xf32>
    %236 = arith.mulf %235, %37 : vector<4x256xf32>
    %c88_193 = arith.constant 88 : index
    %c768_194 = arith.constant 768 : index
    %237 = vector.load %arg6[%c88_193, %c768_194] : memref<216x1024xf32, #tpu.memory_space<vmem>>, vector<4x256xf32>
    tpu.vector_store %arg6[%c88_193, %c768_194], %236 {strides = array<i32>} : memref<216x1024xf32, #tpu.memory_space<vmem>>, vector<4x256xf32>,
    %c160_195 = arith.constant 160 : index
    %c512_196 = arith.constant 512 : index
    %238 = vector.load %arg6[%c160_195, %c512_196] : memref<216x1024xf32, #tpu.memory_space<vmem>>, vector<4x256xf32>
    tpu.vector_store %arg6[%c160_195, %c512_196], %236 {strides = array<i32>} : memref<216x1024xf32, #tpu.memory_space<vmem>>, vector<4x256xf32>,
    %239 = vector.extract_strided_slice %226 {offsets = [0, 16], sizes = [4, 256], strides = [1, 1]} : vector<4x290xf32> to vector<4x256xf32>
    %240 = arith.mulf %239, %40 : vector<4x256xf32>
    %c96_197 = arith.constant 96 : index
    %c768_198 = arith.constant 768 : index
    %241 = vector.load %arg6[%c96_197, %c768_198] : memref<216x1024xf32, #tpu.memory_space<vmem>>, vector<4x256xf32>
    tpu.vector_store %arg6[%c96_197, %c768_198], %240 {strides = array<i32>} : memref<216x1024xf32, #tpu.memory_space<vmem>>, vector<4x256xf32>,
    %c168_199 = arith.constant 168 : index
    %c512_200 = arith.constant 512 : index
    %242 = vector.load %arg6[%c168_199, %c512_200] : memref<216x1024xf32, #tpu.memory_space<vmem>>, vector<4x256xf32>
    tpu.vector_store %arg6[%c168_199, %c512_200], %240 {strides = array<i32>} : memref<216x1024xf32, #tpu.memory_space<vmem>>, vector<4x256xf32>,
    %243 = vector.extract_strided_slice %226 {offsets = [0, 17], sizes = [4, 256], strides = [1, 1]} : vector<4x290xf32> to vector<4x256xf32>
    %c104_201 = arith.constant 104 : index
    %c768_202 = arith.constant 768 : index
    %244 = vector.load %arg6[%c104_201, %c768_202] : memref<216x1024xf32, #tpu.memory_space<vmem>>, vector<4x256xf32>
    tpu.vector_store %arg6[%c104_201, %c768_202], %243 {strides = array<i32>} : memref<216x1024xf32, #tpu.memory_space<vmem>>, vector<4x256xf32>,
    %c176_203 = arith.constant 176 : index
    %c512_204 = arith.constant 512 : index
    %245 = vector.load %arg6[%c176_203, %c512_204] : memref<216x1024xf32, #tpu.memory_space<vmem>>, vector<4x256xf32>
    tpu.vector_store %arg6[%c176_203, %c512_204], %243 {strides = array<i32>} : memref<216x1024xf32, #tpu.memory_space<vmem>>, vector<4x256xf32>,
    %246 = vector.extract_strided_slice %226 {offsets = [0, 18], sizes = [4, 256], strides = [1, 1]} : vector<4x290xf32> to vector<4x256xf32>
    %247 = arith.mulf %246, %43 : vector<4x256xf32>
    %c112_205 = arith.constant 112 : index
    %c768_206 = arith.constant 768 : index
    %248 = vector.load %arg6[%c112_205, %c768_206] : memref<216x1024xf32, #tpu.memory_space<vmem>>, vector<4x256xf32>
    tpu.vector_store %arg6[%c112_205, %c768_206], %247 {strides = array<i32>} : memref<216x1024xf32, #tpu.memory_space<vmem>>, vector<4x256xf32>,
    %c184_207 = arith.constant 184 : index
    %c512_208 = arith.constant 512 : index
    %249 = vector.load %arg6[%c184_207, %c512_208] : memref<216x1024xf32, #tpu.memory_space<vmem>>, vector<4x256xf32>
    tpu.vector_store %arg6[%c184_207, %c512_208], %247 {strides = array<i32>} : memref<216x1024xf32, #tpu.memory_space<vmem>>, vector<4x256xf32>,
    %250 = vector.extract_strided_slice %226 {offsets = [0, 32], sizes = [4, 256], strides = [1, 1]} : vector<4x290xf32> to vector<4x256xf32>
    %251 = arith.mulf %250, %46 : vector<4x256xf32>
    %c120_209 = arith.constant 120 : index
    %c768_210 = arith.constant 768 : index
    %252 = vector.load %arg6[%c120_209, %c768_210] : memref<216x1024xf32, #tpu.memory_space<vmem>>, vector<4x256xf32>
    tpu.vector_store %arg6[%c120_209, %c768_210], %251 {strides = array<i32>} : memref<216x1024xf32, #tpu.memory_space<vmem>>, vector<4x256xf32>,
    %c192_211 = arith.constant 192 : index
    %c512_212 = arith.constant 512 : index
    %253 = vector.load %arg6[%c192_211, %c512_212] : memref<216x1024xf32, #tpu.memory_space<vmem>>, vector<4x256xf32>
    tpu.vector_store %arg6[%c192_211, %c512_212], %251 {strides = array<i32>} : memref<216x1024xf32, #tpu.memory_space<vmem>>, vector<4x256xf32>,
    %254 = vector.extract_strided_slice %226 {offsets = [0, 33], sizes = [4, 256], strides = [1, 1]} : vector<4x290xf32> to vector<4x256xf32>
    %255 = arith.mulf %254, %49 : vector<4x256xf32>
    %c128_213 = arith.constant 128 : index
    %c768_214 = arith.constant 768 : index
    %256 = vector.load %arg6[%c128_213, %c768_214] : memref<216x1024xf32, #tpu.memory_space<vmem>>, vector<4x256xf32>
    tpu.vector_store %arg6[%c128_213, %c768_214], %255 {strides = array<i32>} : memref<216x1024xf32, #tpu.memory_space<vmem>>, vector<4x256xf32>,
    %c200_215 = arith.constant 200 : index
    %c512_216 = arith.constant 512 : index
    %257 = vector.load %arg6[%c200_215, %c512_216] : memref<216x1024xf32, #tpu.memory_space<vmem>>, vector<4x256xf32>
    tpu.vector_store %arg6[%c200_215, %c512_216], %255 {strides = array<i32>} : memref<216x1024xf32, #tpu.memory_space<vmem>>, vector<4x256xf32>,
    %258 = vector.extract_strided_slice %226 {offsets = [0, 34], sizes = [4, 256], strides = [1, 1]} : vector<4x290xf32> to vector<4x256xf32>
    %259 = arith.mulf %258, %52 : vector<4x256xf32>
    %c136_217 = arith.constant 136 : index
    %c768_218 = arith.constant 768 : index
    %260 = vector.load %arg6[%c136_217, %c768_218] : memref<216x1024xf32, #tpu.memory_space<vmem>>, vector<4x256xf32>
    tpu.vector_store %arg6[%c136_217, %c768_218], %259 {strides = array<i32>} : memref<216x1024xf32, #tpu.memory_space<vmem>>, vector<4x256xf32>,
    %c208_219 = arith.constant 208 : index
    %c512_220 = arith.constant 512 : index
    %261 = vector.load %arg6[%c208_219, %c512_220] : memref<216x1024xf32, #tpu.memory_space<vmem>>, vector<4x256xf32>
    tpu.vector_store %arg6[%c208_219, %c512_220], %259 {strides = array<i32>} : memref<216x1024xf32, #tpu.memory_space<vmem>>, vector<4x256xf32>,
    %c5_i32 = arith.constant 5 : i32
    %262 = arith.addi %0, %c5_i32 : i32
    %c0_221 = arith.constant 0 : index
    %263 = arith.index_cast %262 : i32 to index
    %c0_222 = arith.constant 0 : index
    %c0_223 = arith.constant 0 : index
    %264 = vector.load %arg2[%c0_221, %263, %c0_222, %c0_223] : memref<1x6x4x290xf32, #tpu.memory_space<vmem>>, vector<1x1x4x290xf32>
    %265 = vector.shape_cast %264 : vector<1x1x4x290xf32> to vector<1x4x290xf32>
    %266 = vector.shape_cast %265 : vector<1x4x290xf32> to vector<4x290xf32>
    %267 = vector.extract_strided_slice %266 {offsets = [0, 0], sizes = [4, 256], strides = [1, 1]} : vector<4x290xf32> to vector<4x256xf32>
    %268 = arith.mulf %267, %31 : vector<4x256xf32>
    %c144_224 = arith.constant 144 : index
    %c768_225 = arith.constant 768 : index
    %269 = vector.load %arg6[%c144_224, %c768_225] : memref<216x1024xf32, #tpu.memory_space<vmem>>, vector<4x256xf32>
    tpu.vector_store %arg6[%c144_224, %c768_225], %268 {strides = array<i32>} : memref<216x1024xf32, #tpu.memory_space<vmem>>, vector<4x256xf32>,
    %270 = vector.extract_strided_slice %266 {offsets = [0, 1], sizes = [4, 256], strides = [1, 1]} : vector<4x290xf32> to vector<4x256xf32>
    %271 = arith.mulf %270, %34 : vector<4x256xf32>
    %c152_226 = arith.constant 152 : index
    %c768_227 = arith.constant 768 : index
    %272 = vector.load %arg6[%c152_226, %c768_227] : memref<216x1024xf32, #tpu.memory_space<vmem>>, vector<4x256xf32>
    tpu.vector_store %arg6[%c152_226, %c768_227], %271 {strides = array<i32>} : memref<216x1024xf32, #tpu.memory_space<vmem>>, vector<4x256xf32>,
    %273 = vector.extract_strided_slice %266 {offsets = [0, 2], sizes = [4, 256], strides = [1, 1]} : vector<4x290xf32> to vector<4x256xf32>
    %274 = arith.mulf %273, %37 : vector<4x256xf32>
    %c160_228 = arith.constant 160 : index
    %c768_229 = arith.constant 768 : index
    %275 = vector.load %arg6[%c160_228, %c768_229] : memref<216x1024xf32, #tpu.memory_space<vmem>>, vector<4x256xf32>
    tpu.vector_store %arg6[%c160_228, %c768_229], %274 {strides = array<i32>} : memref<216x1024xf32, #tpu.memory_space<vmem>>, vector<4x256xf32>,
    %276 = vector.extract_strided_slice %266 {offsets = [0, 16], sizes = [4, 256], strides = [1, 1]} : vector<4x290xf32> to vector<4x256xf32>
    %277 = arith.mulf %276, %40 : vector<4x256xf32>
    %c168_230 = arith.constant 168 : index
    %c768_231 = arith.constant 768 : index
    %278 = vector.load %arg6[%c168_230, %c768_231] : memref<216x1024xf32, #tpu.memory_space<vmem>>, vector<4x256xf32>
    tpu.vector_store %arg6[%c168_230, %c768_231], %277 {strides = array<i32>} : memref<216x1024xf32, #tpu.memory_space<vmem>>, vector<4x256xf32>,
    %279 = vector.extract_strided_slice %266 {offsets = [0, 17], sizes = [4, 256], strides = [1, 1]} : vector<4x290xf32> to vector<4x256xf32>
    %c176_232 = arith.constant 176 : index
    %c768_233 = arith.constant 768 : index
    %280 = vector.load %arg6[%c176_232, %c768_233] : memref<216x1024xf32, #tpu.memory_space<vmem>>, vector<4x256xf32>
    tpu.vector_store %arg6[%c176_232, %c768_233], %279 {strides = array<i32>} : memref<216x1024xf32, #tpu.memory_space<vmem>>, vector<4x256xf32>,
    %281 = vector.extract_strided_slice %266 {offsets = [0, 18], sizes = [4, 256], strides = [1, 1]} : vector<4x290xf32> to vector<4x256xf32>
    %282 = arith.mulf %281, %43 : vector<4x256xf32>
    %c184_234 = arith.constant 184 : index
    %c768_235 = arith.constant 768 : index
    %283 = vector.load %arg6[%c184_234, %c768_235] : memref<216x1024xf32, #tpu.memory_space<vmem>>, vector<4x256xf32>
    tpu.vector_store %arg6[%c184_234, %c768_235], %282 {strides = array<i32>} : memref<216x1024xf32, #tpu.memory_space<vmem>>, vector<4x256xf32>,
    %284 = vector.extract_strided_slice %266 {offsets = [0, 32], sizes = [4, 256], strides = [1, 1]} : vector<4x290xf32> to vector<4x256xf32>
    %285 = arith.mulf %284, %46 : vector<4x256xf32>
    %c192_236 = arith.constant 192 : index
    %c768_237 = arith.constant 768 : index
    %286 = vector.load %arg6[%c192_236, %c768_237] : memref<216x1024xf32, #tpu.memory_space<vmem>>, vector<4x256xf32>
    tpu.vector_store %arg6[%c192_236, %c768_237], %285 {strides = array<i32>} : memref<216x1024xf32, #tpu.memory_space<vmem>>, vector<4x256xf32>,
    %287 = vector.extract_strided_slice %266 {offsets = [0, 33], sizes = [4, 256], strides = [1, 1]} : vector<4x290xf32> to vector<4x256xf32>
    %288 = arith.mulf %287, %49 : vector<4x256xf32>
    %c200_238 = arith.constant 200 : index
    %c768_239 = arith.constant 768 : index
    %289 = vector.load %arg6[%c200_238, %c768_239] : memref<216x1024xf32, #tpu.memory_space<vmem>>, vector<4x256xf32>
    tpu.vector_store %arg6[%c200_238, %c768_239], %288 {strides = array<i32>} : memref<216x1024xf32, #tpu.memory_space<vmem>>, vector<4x256xf32>,
    %290 = vector.extract_strided_slice %266 {offsets = [0, 34], sizes = [4, 256], strides = [1, 1]} : vector<4x290xf32> to vector<4x256xf32>
    %291 = arith.mulf %290, %52 : vector<4x256xf32>
    %c208_240 = arith.constant 208 : index
    %c768_241 = arith.constant 768 : index
    %292 = vector.load %arg6[%c208_240, %c768_241] : memref<216x1024xf32, #tpu.memory_space<vmem>>, vector<4x256xf32>
    tpu.vector_store %arg6[%c208_240, %c768_241], %291 {strides = array<i32>} : memref<216x1024xf32, #tpu.memory_space<vmem>>, vector<4x256xf32>,
    %c0_242 = arith.constant 0 : index
    %c0_243 = arith.constant 0 : index
    %293 = vector.load %arg3[%c0_242, %c0_243] : memref<8x216xf32, #tpu.memory_space<vmem>>, vector<8x216xf32>
    %c0_244 = arith.constant 0 : index
    %c0_245 = arith.constant 0 : index
    %294 = vector.load %arg6[%c0_244, %c0_245] : memref<216x1024xf32, #tpu.memory_space<vmem>>, vector<216x1024xf32>
    %cst_246 = arith.constant dense<0.000000e+00> : vector<8x1024xf32>
    %295 = tpu.matmul %293, %294, %cst_246 {dimension_numbers = #tpu.dot_dimension_numbers<[1], [0], [0], [1], [0, 0, 1, 1], [], []>} : vector<8x216xf32>, vector<216x1024xf32>, vector<8x1024xf32> -> vector<8x1024xf32>
    %cst_247 = arith.constant 0.000000e+00 : f32
    %296 = vector.broadcast %cst_247 : f32 to vector<8x1024xf32>
    %297 = arith.cmpf ogt, %295, %296 : vector<8x1024xf32>
    %cst_248 = arith.constant 0.00999999977 : f32
    %298 = vector.broadcast %cst_248 : f32 to vector<8x1024xf32>
    %299 = arith.mulf %298, %295 : vector<8x1024xf32>
    %300 = arith.select %297, %295, %299 : vector<8x1024xi1>, vector<8x1024xf32>
    %c0_249 = arith.constant 0 : index
    %c0_250 = arith.constant 0 : index
    %c0_251 = arith.constant 0 : index
    %301 = vector.load %arg5[%c0_249, %c0_250, %c0_251] : memref<1x8x1024xf32, #tpu.memory_space<vmem>>, vector<1x8x1024xf32>
    %302 = vector.shape_cast %301 : vector<1x8x1024xf32> to vector<8x1024xf32>
    %303 = vector.shape_cast %300 : vector<8x1024xf32> to vector<1x8x1024xf32>
    tpu.vector_store %arg5[%c0_249, %c0_250, %c0_251], %303 {strides = array<i32>} : memref<1x8x1024xf32, #tpu.memory_space<vmem>>, vector<1x8x1024xf32>,
    return
  }
  func.func @transform_0(%arg0: i32, %arg1: i32) -> (i32, i32, i32, i32) {
    %c0_i32 = arith.constant 0 : i32
    %c0_i32_0 = arith.constant 0 : i32
    %c0_i32_1 = arith.constant 0 : i32
    %c0_i32_2 = arith.constant 0 : i32
    return %arg0, %c0_i32, %c0_i32_0, %c0_i32_1 : i32, i32, i32, i32
  }
  func.func @transform_1(%arg0: i32, %arg1: i32) -> (i32, i32) {
    %c0_i32 = arith.constant 0 : i32
    %c0_i32_0 = arith.constant 0 : i32
    %c0_i32_1 = arith.constant 0 : i32
    return %c0_i32, %c0_i32_0 : i32, i32
  }
  func.func @transform_2(%arg0: i32, %arg1: i32) -> (i32, i32) {
    %c0_i32 = arith.constant 0 : i32
    %c0_i32_0 = arith.constant 0 : i32
    %c0_i32_1 = arith.constant 0 : i32
    return %c0_i32, %c0_i32_0 : i32, i32
  }
  func.func @transform_3(%arg0: i32, %arg1: i32) -> (i32, i32, i32) {
    %c0_i32 = arith.constant 0 : i32
    %c0_i32_0 = arith.constant 0 : i32
    return %arg0, %c0_i32, %arg1 : i32, i32, i32
  }
}

</mosaic_0001>

<llo_original>
// kernel: conv_bn_re_3dm.1
$region0: #{conv_bn_re_3dm.1}
  #allocation0 [shape = 'u32[]', space=smem, size = 0x4, offset = 0x4, fixed_abs, tag = 'smem constant byte address 0x4 - core index']
  #allocation1 [shape = 'u32[144,128]{1,0:T(1,128)}', space=vmem, size = 0x12000, scoped, tag = 'internal scratch']
  #allocation2 [shape = 'f32[216,1024]{1,0:T(8,128)}', space=vmem, size = 0xd8000, scoped, tag = 'scratch operand']
  %s0 = inlined_call_operand.vmem [shape: f32[2,6,4,290], index: 0, kind: input, shape index: {}]
  %s1 = inlined_call_operand.vmem [shape: f32[8,216], index: 1, kind: input, shape index: {}]
  %s2 = inlined_call_operand.vmem [shape: f32[9,256], index: 2, kind: input, shape index: {}]
  %s3 = inlined_call_operand.vmem [shape: f32[2,8,1024], index: 3, kind: output, shape index: {}]
  %s4 = sld [smem:[#allocation0]]
  $region45: #{conv_bn_re_3dm.1} parent=0
    _
  %s6 = ssub.s32 1, %s4
  %s7 = scalar_select 0, %s6, %s4
  loop: start=0, step=1, limit=4
  $region2: #{conv_bn_re_3dm.1} parent=0 // loop_pre_header
    _
  $region3: #{conv_bn_re_3dm.1} parent=0 // loop_header
    %s9 = sphi 0, %s13
    %p10 = scmp.ge.s32.totalorder %s9, 4
    %s16 = sphi 0, %s28
    %s17 = sphi 0, %s24
    %s18 = sphi 0, %s16
    %s19 = sphi 0, %s17
    %s20 = sphi 0, %s18
    %s21 = sphi 0, %s19
    %s31 = sphi 0, %s33
    %s34 = sphi 0, %s31
    %s35 = sphi 0, %s34
    %s51 = sphi 0, %s35
    %s55 = sphi 0, %s55
    %s57 = sphi 0, %s55
    %s58 = sphi 0, %s57
    %s72 = sphi 0, %s58
    %s76 = sphi 0, %s76
    %s78 = sphi 0, %s76
    %s79 = sphi 0, %s78
    %s93 = sphi 0, %s79
    %s101 = sphi 0, %s103
    %s104 = sphi 0, %s101
    %s105 = sphi 0, %s104
    %s121 = sphi 0, %s105
  $region4: #{conv_bn_re_3dm.1} parent=0 // loop_header_branch
    %12 = sbr.rel (%p10) target = $region8
  $region5: #{conv_bn_re_3dm.1} parent=0 // loop_body
    %s14 = ssub.s32 %s9, 1
    %s15 = ssub.s32 %s9, 2
    %s22 = sadd.s32 1, %s17
    %p23 = scmp.ge.s32.totalorder %s22, 1
    %s24 = scalar_select %p23, 0, %s22
    %s25 = sadd.s32 1, %s16
    %s26 = scalar_select %p23, %s25, %s16
    %p27 = scmp.ge.s32.totalorder %s26, 2
    %s28 = scalar_select %p27, 0, %s26
    %s29 = ssub.s32 %s16, %s28
    %p30 = scmp.eq.s32.totalorder %s29, 0
    %s32 = sadd.s32 %s31, 1
    %s33 = scalar_select %p30, %s31, %s32
    %p36 = pneg %p30
    %p37 = scmp.eq.s32.totalorder %s9, 1
    %p38 = por %p36, %p37
    %p39 = scmp.ne.s32.totalorder %s31, %s34
    %p40 = scmp.eq.s32.totalorder %s9, 0
    %p41 = por %p39, %p40
    %p42 = scmp.ne.s32.totalorder %s31, %s34
    %p43 = scmp.eq.s32.totalorder %s14, 1
    %p44 = por %p42, %p43
    %p45 = scmp.ne.s32.totalorder %s34, %s35
    %p46 = scmp.eq.s32.totalorder %s14, 0
    %p47 = por %p45, %p46
    %p48 = scmp.ne.s32.totalorder %s34, %s35
    %p49 = scmp.eq.s32.totalorder %s15, 1
    %p50 = por %p48, %p49
    %p52 = scmp.ne.s32.totalorder %s35, %s51
    %p53 = scmp.eq.s32.totalorder %s15, 0
    %p54 = por %p52, %p53
    %s56 = sadd.s32 %s55, 1
    %p59 = scmp.eq.s32.totalorder %s9, 1
    %p60 = scmp.ne.s32.totalorder %s55, %s57
    %p61 = scmp.eq.s32.totalorder %s9, 0
    %p62 = por %p60, %p61
    %p63 = scmp.ne.s32.totalorder %s55, %s57
    %p64 = scmp.eq.s32.totalorder %s14, 1
    %p65 = por %p63, %p64
    %p66 = scmp.ne.s32.totalorder %s57, %s58
    %p67 = scmp.eq.s32.totalorder %s14, 0
    %p68 = por %p66, %p67
    %p69 = scmp.ne.s32.totalorder %s57, %s58
    %p70 = scmp.eq.s32.totalorder %s15, 1
    %p71 = por %p69, %p70
    %p73 = scmp.ne.s32.totalorder %s58, %s72
    %p74 = scmp.eq.s32.totalorder %s15, 0
    %p75 = por %p73, %p74
    %s77 = sadd.s32 %s76, 1
    %p80 = scmp.eq.s32.totalorder %s9, 1
    %p81 = scmp.ne.s32.totalorder %s76, %s78
    %p82 = scmp.eq.s32.totalorder %s9, 0
    %p83 = por %p81, %p82
    %p84 = scmp.ne.s32.totalorder %s76, %s78
    %p85 = scmp.eq.s32.totalorder %s14, 1
    %p86 = por %p84, %p85
    %p87 = scmp.ne.s32.totalorder %s78, %s79
    %p88 = scmp.eq.s32.totalorder %s14, 0
    %p89 = por %p87, %p88
    %p90 = scmp.ne.s32.totalorder %s78, %s79
    %p91 = scmp.eq.s32.totalorder %s15, 1
    %p92 = por %p90, %p91
    %p94 = scmp.ne.s32.totalorder %s79, %s93
    %p95 = scmp.eq.s32.totalorder %s15, 0
    %p96 = por %p94, %p95
    %s97 = ssub.s32 %s16, %s28
    %s98 = ssub.s32 %s17, %s24
    %s99 = sor.u32 %s97, %s98
    %p100 = scmp.eq.s32.totalorder %s99, 0
    %s102 = sadd.s32 %s101, 1
    %s103 = scalar_select %p100, %s101, %s102
    %p106 = pneg %p100
    %p107 = scmp.eq.s32.totalorder %s9, 1
    %p108 = por %p106, %p107
    %p109 = scmp.ne.s32.totalorder %s101, %s104
    %p110 = scmp.eq.s32.totalorder %s9, 0
    %p111 = por %p109, %p110
    %p112 = scmp.ne.s32.totalorder %s101, %s104
    %p113 = scmp.eq.s32.totalorder %s14, 1
    %p114 = por %p112, %p113
    %p115 = scmp.ne.s32.totalorder %s104, %s105
    %p116 = scmp.eq.s32.totalorder %s14, 0
    %p117 = por %p115, %p116
    %p118 = scmp.ne.s32.totalorder %s104, %s105
    %p119 = scmp.eq.s32.totalorder %s15, 1
    %p120 = por %p118, %p119
    %p122 = scmp.ne.s32.totalorder %s105, %s121
    %p123 = scmp.eq.s32.totalorder %s15, 0
    %p124 = por %p122, %p123
    %p125 = scmp.le.s32.totalorder 1, %s9
    %p126 = scmp.lt.s32.totalorder %s9, 3
    %p127 = pnand %p125, %p126
    %p128 = pneg %p127
    // Predicated region
    $region9: #{conv_bn_re_3dm.1} parent=5 // pred_check
      _
    $region10: #{conv_bn_re_3dm.1} parent=5 // pred_check_branch
      %130 = sbr.rel (%p127) target = $region12
    $region11: #{conv_bn_re_3dm.1} parent=5 // pred_region
      %s131 = ssub.s32 %s9, 1
      // Predicated region
      $region13: #{conv_bn_re_3dm.1} parent=11 // pred_check
        %p132 = pneg %p68
      $region14: #{conv_bn_re_3dm.1} parent=11 // pred_check_branch
        %134 = sbr.rel (%p132) target = $region16
      $region15: #{conv_bn_re_3dm.1} parent=11 // pred_region
        _
      $region16: #{conv_bn_re_3dm.1} parent=11 // pred_fallthru
        _
      // Predicated region
      $region17: #{conv_bn_re_3dm.1} parent=11 // pred_check
        %p135 = pneg %p89
      $region18: #{conv_bn_re_3dm.1} parent=11 // pred_check_branch
        %137 = sbr.rel (%p135) target = $region20
      $region19: #{conv_bn_re_3dm.1} parent=11 // pred_region
        _
      $region20: #{conv_bn_re_3dm.1} parent=11 // pred_fallthru
        _
    $region12: #{conv_bn_re_3dm.1} parent=5 // pred_fallthru
      _
    %p138 = scmp.lt.s32.totalorder %s9, 2
    // Predicated region
    $region21: #{conv_bn_re_3dm.1} parent=5 // pred_check
      %p139 = pneg %p138
    $region22: #{conv_bn_re_3dm.1} parent=5 // pred_check_branch
      %141 = sbr.rel (%p139) target = $region24
    $region23: #{conv_bn_re_3dm.1} parent=5 // pred_region
      // Predicated region
      $region25: #{conv_bn_re_3dm.1} parent=23 // pred_check
        %p142 = pneg %p41
      $region26: #{conv_bn_re_3dm.1} parent=23 // pred_check_branch
        %144 = sbr.rel (%p142) target = $region28
      $region27: #{conv_bn_re_3dm.1} parent=23 // pred_region
        %p145 = scmp.lt.s32.totalorder %s16, 1
        %s146 = scalar_select %p145, %s16, 1
        %s147 = smul.addr %s146, 18
        %s148 = smul.addr %s147, 4
        %s149 = scalar_lea.vmem %s0, %s148
      $region28: #{conv_bn_re_3dm.1} parent=23 // pred_fallthru
        _
    $region24: #{conv_bn_re_3dm.1} parent=5 // pred_fallthru
      _
    %p150 = scmp.le.s32.totalorder 1, %s9
    %p151 = scmp.lt.s32.totalorder %s9, 3
    %p152 = pnand %p150, %p151
    %p153 = pneg %p152
    // Predicated region
    $region29: #{conv_bn_re_3dm.1} parent=5 // pred_check
      _
    $region30: #{conv_bn_re_3dm.1} parent=5 // pred_check_branch
      %155 = sbr.rel (%p152) target = $region32
    $region31: #{conv_bn_re_3dm.1} parent=5 // pred_region
      %s156 = ssub.s32 %s9, 1
      %p157 = scmp.lt.s32.totalorder %s18, 1
      %s158 = scalar_select %p157, %s18, 1
      %s159 = smul.addr %s158, 18
      %s160 = smul.addr %s159, 4
      %s161 = scalar_lea.vmem %s0, %s160
      %p162 = pneg %p47
      %p163 = pneg %p44
      %p164 = pneg %p68
      %p165 = pneg %p65
      %p166 = pneg %p89
      %p167 = pneg %p86
      %p168 = pneg %p117
      %p169 = pneg %p114
      %s170 = smul.u32 8, %s19
      %p171 = scmp.lt.s32.totalorder %s18, 1
      %s172 = scalar_select %p171, %s18, 1
      %p173 = scmp.lt.s32.totalorder %s170, 7
      %s174 = scalar_select %p173, %s170, 7
      %s175 = smul.addr %s172, 8
      %s176 = sadd.s32 %s174, %s175
      %s177 = smul.addr %s176, 8
      %s178 = scalar_lea.vmem %s3, %s177
      %p179 = scmp.lt.s32.totalorder %s18, 1
      %s180 = scalar_select %p179, %s18, 1
      %s181 = smul.addr %s180, 18
      %s182 = smul.addr %s181, 4
      %s183 = scalar_lea.vmem %s0, %s182
      %s184 = smul.u32 8, %s19
      %p185 = scmp.lt.s32.totalorder %s18, 1
      %s186 = scalar_select %p185, %s18, 1
      %p187 = scmp.lt.s32.totalorder %s184, 7
      %s188 = scalar_select %p187, %s184, 7
      %s189 = smul.addr %s186, 8
      %s190 = sadd.s32 %s188, %s189
      %s191 = smul.addr %s190, 8
      %s192 = scalar_lea.vmem %s3, %s191
      %s193 = smul.u32 8, %s19
      %s194 = smul.u32 %s19, 4
      %195 = vst [vmem:[#allocation2] sm:$0xf0] 0.0
      %196 = vst [vmem:[#allocation2 + $0x8] sm:$0xf0] 0.0
      %197 = vst [vmem:[#allocation2 + $0x10] sm:$0xf0] 0.0
      %198 = vst [vmem:[#allocation2 + $0x18] sm:$0xf0] 0.0
      %199 = vst [vmem:[#allocation2 + $0x20] sm:$0xf0] 0.0
      %200 = vst [vmem:[#allocation2 + $0x28] sm:$0xf0] 0.0
      %201 = vst [vmem:[#allocation2 + $0x30] sm:$0xf0] 0.0
      %202 = vst [vmem:[#allocation2 + $0x38] sm:$0xf0] 0.0
      %203 = vst [vmem:[#allocation2 + $0x40] sm:$0xf0] 0.0
      %204 = vst [vmem:[#allocation2 + $0x48] sm:$0xf0] 0.0
      %205 = vst [vmem:[#allocation2 + $0x50] sm:$0xf0] 0.0
      %206 = vst [vmem:[#allocation2 + $0x58] sm:$0xf0] 0.0
      %207 = vst [vmem:[#allocation2 + $0x60] sm:$0xf0] 0.0
      %208 = vst [vmem:[#allocation2 + $0x68] sm:$0xf0] 0.0
      %209 = vst [vmem:[#allocation2 + $0x70] sm:$0xf0] 0.0
      %210 = vst [vmem:[#allocation2 + $0x78] sm:$0xf0] 0.0
      %211 = vst [vmem:[#allocation2 + $0x80] sm:$0xf0] 0.0
      %212 = vst [vmem:[#allocation2 + $0x88] sm:$0xf0] 0.0
      %213 = vst [vmem:[#allocation2 + $0x90] sm:$0xf0] 0.0
      %214 = vst [vmem:[#allocation2 + $0x98] sm:$0xf0] 0.0
      %215 = vst [vmem:[#allocation2 + $0xa0] sm:$0xf0] 0.0
      %216 = vst [vmem:[#allocation2 + $0xa8] sm:$0xf0] 0.0
      %217 = vst [vmem:[#allocation2 + $0xb0] sm:$0xf0] 0.0
      %218 = vst [vmem:[#allocation2 + $0xb8] sm:$0xf0] 0.0
      %219 = vst [vmem:[#allocation2 + $0xc0] sm:$0xf0] 0.0
      %220 = vst [vmem:[#allocation2 + $0xc8] sm:$0xf0] 0.0
      %221 = vst [vmem:[#allocation2 + $0xd0] sm:$0xf0] 0.0
      %222 = vst [vmem:[#allocation2 + $0xd8] sm:$0xf0] 0.0
      %223 = vst [vmem:[#allocation2 + $0xe0] sm:$0xf0] 0.0
      %224 = vst [vmem:[#allocation2 + $0xe8] sm:$0xf0] 0.0
      %225 = vst [vmem:[#allocation2 + $0xf0] sm:$0xf0] 0.0
      %226 = vst [vmem:[#allocation2 + $0xf8] sm:$0xf0] 0.0
      %227 = vst [vmem:[#allocation2 + $0x100] sm:$0xf0] 0.0
      %228 = vst [vmem:[#allocation2 + $0x108] sm:$0xf0] 0.0
      %229 = vst [vmem:[#allocation2 + $0x110] sm:$0xf0] 0.0
      %230 = vst [vmem:[#allocation2 + $0x118] sm:$0xf0] 0.0
      %231 = vst [vmem:[#allocation2 + $0x120] sm:$0xf0] 0.0
      %232 = vst [vmem:[#allocation2 + $0x128] sm:$0xf0] 0.0
      %233 = vst [vmem:[#allocation2 + $0x130] sm:$0xf0] 0.0
      %234 = vst [vmem:[#allocation2 + $0x138] sm:$0xf0] 0.0
      %235 = vst [vmem:[#allocation2 + $0x140] sm:$0xf0] 0.0
      %236 = vst [vmem:[#allocation2 + $0x148] sm:$0xf0] 0.0
      %237 = vst [vmem:[#allocation2 + $0x150] sm:$0xf0] 0.0
      %238 = vst [vmem:[#allocation2 + $0x158] sm:$0xf0] 0.0
      %239 = vst [vmem:[#allocation2 + $0x160] sm:$0xf0] 0.0
      %240 = vst [vmem:[#allocation2 + $0x168] sm:$0xf0] 0.0
      %241 = vst [vmem:[#allocation2 + $0x170] sm:$0xf0] 0.0
      %242 = vst [vmem:[#allocation2 + $0x178] sm:$0xf0] 0.0
      %243 = vst [vmem:[#allocation2 + $0x180] sm:$0xf0] 0.0
      %244 = vst [vmem:[#allocation2 + $0x188] sm:$0xf0] 0.0
      %245 = vst [vmem:[#allocation2 + $0x190] sm:$0xf0] 0.0
      %246 = vst [vmem:[#allocation2 + $0x198] sm:$0xf0] 0.0
      %247 = vst [vmem:[#allocation2 + $0x1a0] sm:$0xf0] 0.0
      %248 = vst [vmem:[#allocation2 + $0x1a8] sm:$0xf0] 0.0
      %249 = vst [vmem:[#allocation2 + $0x1b0] sm:$0xf0] 0.0
      %250 = vst [vmem:[#allocation2 + $0x1b8] sm:$0xf0] 0.0
      %251 = vst [vmem:[#allocation2 + $0x1c0] sm:$0xf0] 0.0
      %252 = vst [vmem:[#allocation2 + $0x1c8] sm:$0xf0] 0.0
      %253 = vst [vmem:[#allocation2 + $0x1d0] sm:$0xf0] 0.0
      %254 = vst [vmem:[#allocation2 + $0x1d8] sm:$0xf0] 0.0
      %255 = vst [vmem:[#allocation2 + $0x1e0] sm:$0xf0] 0.0
      %256 = vst [vmem:[#allocation2 + $0x1e8] sm:$0xf0] 0.0
      %257 = vst [vmem:[#allocation2 + $0x1f0] sm:$0xf0] 0.0
      %258 = vst [vmem:[#allocation2 + $0x1f8] sm:$0xf0] 0.0
      %259 = vst [vmem:[#allocation2 + $0x200] sm:$0xf0] 0.0
      %260 = vst [vmem:[#allocation2 + $0x208] sm:$0xf0] 0.0
      %261 = vst [vmem:[#allocation2 + $0x210] sm:$0xf0] 0.0
      %262 = vst [vmem:[#allocation2 + $0x218] sm:$0xf0] 0.0
      %263 = vst [vmem:[#allocation2 + $0x220] sm:$0xf0] 0.0
      %264 = vst [vmem:[#allocation2 + $0x228] sm:$0xf0] 0.0
      %265 = vst [vmem:[#allocation2 + $0x230] sm:$0xf0] 0.0
      %266 = vst [vmem:[#allocation2 + $0x238] sm:$0xf0] 0.0
      %267 = vst [vmem:[#allocation2 + $0x240] sm:$0xf0] 0.0
      %268 = vst [vmem:[#allocation2 + $0x248] sm:$0xf0] 0.0
      %269 = vst [vmem:[#allocation2 + $0x250] sm:$0xf0] 0.0
      %270 = vst [vmem:[#allocation2 + $0x258] sm:$0xf0] 0.0
      %271 = vst [vmem:[#allocation2 + $0x260] sm:$0xf0] 0.0
      %272 = vst [vmem:[#allocation2 + $0x268] sm:$0xf0] 0.0
      %273 = vst [vmem:[#allocation2 + $0x270] sm:$0xf0] 0.0
      %274 = vst [vmem:[#allocation2 + $0x278] sm:$0xf0] 0.0
      %275 = vst [vmem:[#allocation2 + $0x280] sm:$0xf0] 0.0
      %276 = vst [vmem:[#allocation2 + $0x288] sm:$0xf0] 0.0
      %277 = vst [vmem:[#allocation2 + $0x290] sm:$0xf0] 0.0
      %278 = vst [vmem:[#allocation2 + $0x298] sm:$0xf0] 0.0
      %279 = vst [vmem:[#allocation2 + $0x2a0] sm:$0xf0] 0.0
      %280 = vst [vmem:[#allocation2 + $0x2a8] sm:$0xf0] 0.0
      %281 = vst [vmem:[#allocation2 + $0x2b0] sm:$0xf0] 0.0
      %282 = vst [vmem:[#allocation2 + $0x2b8] sm:$0xf0] 0.0
      %283 = vst [vmem:[#allocation2 + $0x2c0] sm:$0xf0] 0.0
      %284 = vst [vmem:[#allocation2 + $0x2c8] sm:$0xf0] 0.0
      %285 = vst [vmem:[#allocation2 + $0x2d0] sm:$0xf0] 0.0
      %286 = vst [vmem:[#allocation2 + $0x2d8] sm:$0xf0] 0.0
      %287 = vst [vmem:[#allocation2 + $0x2e0] sm:$0xf0] 0.0
      %288 = vst [vmem:[#allocation2 + $0x2e8] sm:$0xf0] 0.0
      %289 = vst [vmem:[#allocation2 + $0x2f0] sm:$0xf0] 0.0
      %290 = vst [vmem:[#allocation2 + $0x2f8] sm:$0xf0] 0.0
      %291 = vst [vmem:[#allocation2 + $0x300] sm:$0xf0] 0.0
      %292 = vst [vmem:[#allocation2 + $0x308] sm:$0xf0] 0.0
      %293 = vst [vmem:[#allocation2 + $0x310] sm:$0xf0] 0.0
      %294 = vst [vmem:[#allocation2 + $0x318] sm:$0xf0] 0.0
      %295 = vst [vmem:[#allocation2 + $0x320] sm:$0xf0] 0.0
      %296 = vst [vmem:[#allocation2 + $0x328] sm:$0xf0] 0.0
      %297 = vst [vmem:[#allocation2 + $0x330] sm:$0xf0] 0.0
      %298 = vst [vmem:[#allocation2 + $0x338] sm:$0xf0] 0.0
      %299 = vst [vmem:[#allocation2 + $0x340] sm:$0xf0] 0.0
      %300 = vst [vmem:[#allocation2 + $0x348] sm:$0xf0] 0.0
      %301 = vst [vmem:[#allocation2 + $0x350] sm:$0xf0] 0.0
      %302 = vst [vmem:[#allocation2 + $0x358] sm:$0xf0] 0.0
      %303 = vst [vmem:[#allocation2 + $0x360] sm:$0xf0] 0.0
      %304 = vst [vmem:[#allocation2 + $0x368] sm:$0xf0] 0.0
      %305 = vst [vmem:[#allocation2 + $0x370] sm:$0xf0] 0.0
      %306 = vst [vmem:[#allocation2 + $0x378] sm:$0xf0] 0.0
      %307 = vst [vmem:[#allocation2 + $0x380] sm:$0xf0] 0.0
      %308 = vst [vmem:[#allocation2 + $0x388] sm:$0xf0] 0.0
      %309 = vst [vmem:[#allocation2 + $0x390] sm:$0xf0] 0.0
      %310 = vst [vmem:[#allocation2 + $0x398] sm:$0xf0] 0.0
      %311 = vst [vmem:[#allocation2 + $0x3a0] sm:$0xf0] 0.0
      %312 = vst [vmem:[#allocation2 + $0x3a8] sm:$0xf0] 0.0
      %313 = vst [vmem:[#allocation2 + $0x3b0] sm:$0xf0] 0.0
      %314 = vst [vmem:[#allocation2 + $0x3b8] sm:$0xf0] 0.0
      %315 = vst [vmem:[#allocation2 + $0x3c0] sm:$0xf0] 0.0
      %316 = vst [vmem:[#allocation2 + $0x3c8] sm:$0xf0] 0.0
      %317 = vst [vmem:[#allocation2 + $0x3d0] sm:$0xf0] 0.0
      %318 = vst [vmem:[#allocation2 + $0x3d8] sm:$0xf0] 0.0
      %319 = vst [vmem:[#allocation2 + $0x3e0] sm:$0xf0] 0.0
      %320 = vst [vmem:[#allocation2 + $0x3e8] sm:$0xf0] 0.0
      %321 = vst [vmem:[#allocation2 + $0x3f0] sm:$0xf0] 0.0
      %322 = vst [vmem:[#allocation2 + $0x3f8] sm:$0xf0] 0.0
      %323 = vst [vmem:[#allocation2 + $0x400] sm:$0xf0] 0.0
      %324 = vst [vmem:[#allocation2 + $0x408] sm:$0xf0] 0.0
      %325 = vst [vmem:[#allocation2 + $0x410] sm:$0xf0] 0.0
      %326 = vst [vmem:[#allocation2 + $0x418] sm:$0xf0] 0.0
      %327 = vst [vmem:[#allocation2 + $0x420] sm:$0xf0] 0.0
      %328 = vst [vmem:[#allocation2 + $0x428] sm:$0xf0] 0.0
      %329 = vst [vmem:[#allocation2 + $0x430] sm:$0xf0] 0.0
      %330 = vst [vmem:[#allocation2 + $0x438] sm:$0xf0] 0.0
      %331 = vst [vmem:[#allocation2 + $0x440] sm:$0xf0] 0.0
      %332 = vst [vmem:[#allocation2 + $0x448] sm:$0xf0] 0.0
      %333 = vst [vmem:[#allocation2 + $0x450] sm:$0xf0] 0.0
      %334 = vst [vmem:[#allocation2 + $0x458] sm:$0xf0] 0.0
      %335 = vst [vmem:[#allocation2 + $0x460] sm:$0xf0] 0.0
      %336 = vst [vmem:[#allocation2 + $0x468] sm:$0xf0] 0.0
      %337 = vst [vmem:[#allocation2 + $0x470] sm:$0xf0] 0.0
      %338 = vst [vmem:[#allocation2 + $0x478] sm:$0xf0] 0.0
      %339 = vst [vmem:[#allocation2 + $0x480] sm:$0xf0] 0.0
      %340 = vst [vmem:[#allocation2 + $0x488] sm:$0xf0] 0.0
      %341 = vst [vmem:[#allocation2 + $0x490] sm:$0xf0] 0.0
      %342 = vst [vmem:[#allocation2 + $0x498] sm:$0xf0] 0.0
      %343 = vst [vmem:[#allocation2 + $0x4a0] sm:$0xf0] 0.0
      %344 = vst [vmem:[#allocation2 + $0x4a8] sm:$0xf0] 0.0
      %345 = vst [vmem:[#allocation2 + $0x4b0] sm:$0xf0] 0.0
      %346 = vst [vmem:[#allocation2 + $0x4b8] sm:$0xf0] 0.0
      %347 = vst [vmem:[#allocation2 + $0x4c0] sm:$0xf0] 0.0
      %348 = vst [vmem:[#allocation2 + $0x4c8] sm:$0xf0] 0.0
      %349 = vst [vmem:[#allocation2 + $0x4d0] sm:$0xf0] 0.0
      %350 = vst [vmem:[#allocation2 + $0x4d8] sm:$0xf0] 0.0
      %351 = vst [vmem:[#allocation2 + $0x4e0] sm:$0xf0] 0.0
      %352 = vst [vmem:[#allocation2 + $0x4e8] sm:$0xf0] 0.0
      %353 = vst [vmem:[#allocation2 + $0x4f0] sm:$0xf0] 0.0
      %354 = vst [vmem:[#allocation2 + $0x4f8] sm:$0xf0] 0.0
      %355 = vst [vmem:[#allocation2 + $0x500] sm:$0xf0] 0.0
      %356 = vst [vmem:[#allocation2 + $0x508] sm:$0xf0] 0.0
      %357 = vst [vmem:[#allocation2 + $0x510] sm:$0xf0] 0.0
      %358 = vst [vmem:[#allocation2 + $0x518] sm:$0xf0] 0.0
      %359 = vst [vmem:[#allocation2 + $0x520] sm:$0xf0] 0.0
      %360 = vst [vmem:[#allocation2 + $0x528] sm:$0xf0] 0.0
      %361 = vst [vmem:[#allocation2 + $0x530] sm:$0xf0] 0.0
      %362 = vst [vmem:[#allocation2 + $0x538] sm:$0xf0] 0.0
      %363 = vst [vmem:[#allocation2 + $0x540] sm:$0xf0] 0.0
      %364 = vst [vmem:[#allocation2 + $0x548] sm:$0xf0] 0.0
      %365 = vst [vmem:[#allocation2 + $0x550] sm:$0xf0] 0.0
      %366 = vst [vmem:[#allocation2 + $0x558] sm:$0xf0] 0.0
      %367 = vst [vmem:[#allocation2 + $0x560] sm:$0xf0] 0.0
      %368 = vst [vmem:[#allocation2 + $0x568] sm:$0xf0] 0.0
      %369 = vst [vmem:[#allocation2 + $0x570] sm:$0xf0] 0.0
      %370 = vst [vmem:[#allocation2 + $0x578] sm:$0xf0] 0.0
      %371 = vst [vmem:[#allocation2 + $0x580] sm:$0xf0] 0.0
      %372 = vst [vmem:[#allocation2 + $0x588] sm:$0xf0] 0.0
      %373 = vst [vmem:[#allocation2 + $0x590] sm:$0xf0] 0.0
      %374 = vst [vmem:[#allocation2 + $0x598] sm:$0xf0] 0.0
      %375 = vst [vmem:[#allocation2 + $0x5a0] sm:$0xf0] 0.0
      %376 = vst [vmem:[#allocation2 + $0x5a8] sm:$0xf0] 0.0
      %377 = vst [vmem:[#allocation2 + $0x5b0] sm:$0xf0] 0.0
      %378 = vst [vmem:[#allocation2 + $0x5b8] sm:$0xf0] 0.0
      %379 = vst [vmem:[#allocation2 + $0x5c0] sm:$0xf0] 0.0
      %380 = vst [vmem:[#allocation2 + $0x5c8] sm:$0xf0] 0.0
      %381 = vst [vmem:[#allocation2 + $0x5d0] sm:$0xf0] 0.0
      %382 = vst [vmem:[#allocation2 + $0x5d8] sm:$0xf0] 0.0
      %383 = vst [vmem:[#allocation2 + $0x5e0] sm:$0xf0] 0.0
      %384 = vst [vmem:[#allocation2 + $0x5e8] sm:$0xf0] 0.0
      %385 = vst [vmem:[#allocation2 + $0x5f0] sm:$0xf0] 0.0
      %386 = vst [vmem:[#allocation2 + $0x5f8] sm:$0xf0] 0.0
      %387 = vst [vmem:[#allocation2 + $0x600] sm:$0xf0] 0.0
      %388 = vst [vmem:[#allocation2 + $0x608] sm:$0xf0] 0.0
      %389 = vst [vmem:[#allocation2 + $0x610] sm:$0xf0] 0.0
      %390 = vst [vmem:[#allocation2 + $0x618] sm:$0xf0] 0.0
      %391 = vst [vmem:[#allocation2 + $0x620] sm:$0xf0] 0.0
      %392 = vst [vmem:[#allocation2 + $0x628] sm:$0xf0] 0.0
      %393 = vst [vmem:[#allocation2 + $0x630] sm:$0xf0] 0.0
      %394 = vst [vmem:[#allocation2 + $0x638] sm:$0xf0] 0.0
      %395 = vst [vmem:[#allocation2 + $0x640] sm:$0xf0] 0.0
      %396 = vst [vmem:[#allocation2 + $0x648] sm:$0xf0] 0.0
      %397 = vst [vmem:[#allocation2 + $0x650] sm:$0xf0] 0.0
      %398 = vst [vmem:[#allocation2 + $0x658] sm:$0xf0] 0.0
      %399 = vst [vmem:[#allocation2 + $0x660] sm:$0xf0] 0.0
      %400 = vst [vmem:[#allocation2 + $0x668] sm:$0xf0] 0.0
      %401 = vst [vmem:[#allocation2 + $0x670] sm:$0xf0] 0.0
      %402 = vst [vmem:[#allocation2 + $0x678] sm:$0xf0] 0.0
      %403 = vst [vmem:[#allocation2 + $0x680] sm:$0xf0] 0.0
      %404 = vst [vmem:[#allocation2 + $0x688] sm:$0xf0] 0.0
      %405 = vst [vmem:[#allocation2 + $0x690] sm:$0xf0] 0.0
      %406 = vst [vmem:[#allocation2 + $0x698] sm:$0xf0] 0.0
      %407 = vst [vmem:[#allocation2 + $0x6a0] sm:$0xf0] 0.0
      %408 = vst [vmem:[#allocation2 + $0x6a8] sm:$0xf0] 0.0
      %409 = vst [vmem:[#allocation2 + $0x6b0] sm:$0xf0] 0.0
      %410 = vst [vmem:[#allocation2 + $0x6b8] sm:$0xf0] 0.0
      %v411 = vld [vmem:[%s2] ss:$8 sm:$0x3]
      %v413 = vlaneseq
      %v414 = vshrl.u32 %v413, 7
      %v415 = vsub.s32 0, %v414
      %v416 = vrot.slane %v411, %v415
      %v417 = vlaneseq
      %v418 = vshrl.u32 %v417, 7
      %v419 = vsub.s32 1, %v418
      %v420 = vrot.slane %v411, %v419
      %s421 = scalar_lea.vmem %s2, 1
      %v422 = vld [vmem:[%s421] ss:$8 sm:$0x3]
      %v424 = vlaneseq
      %v425 = vshrl.u32 %v424, 7
      %v426 = vsub.s32 0, %v425
      %v427 = vrot.slane %v422, %v426
      %v428 = vlaneseq
      %v429 = vshrl.u32 %v428, 7
      %v430 = vsub.s32 1, %v429
      %v431 = vrot.slane %v422, %v430
      %s432 = scalar_lea.vmem %s2, 2
      %v433 = vld [vmem:[%s432] ss:$8 sm:$0x3]
      %v435 = vlaneseq
      %v436 = vshrl.u32 %v435, 7
      %v437 = vsub.s32 0, %v436
      %v438 = vrot.slane %v433, %v437
      %v439 = vlaneseq
      %v440 = vshrl.u32 %v439, 7
      %v441 = vsub.s32 1, %v440
      %v442 = vrot.slane %v433, %v441
      %s443 = scalar_lea.vmem %s2, 3
      %v444 = vld [vmem:[%s443] ss:$8 sm:$0x3]
      %v446 = vlaneseq
      %v447 = vshrl.u32 %v446, 7
      %v448 = vsub.s32 0, %v447
      %v449 = vrot.slane %v444, %v448
      %v450 = vlaneseq
      %v451 = vshrl.u32 %v450, 7
      %v452 = vsub.s32 1, %v451
      %v453 = vrot.slane %v444, %v452
      %s454 = scalar_lea.vmem %s2, 5
      %v455 = vld [vmem:[%s454] ss:$8 sm:$0x3]
      %v457 = vlaneseq
      %v458 = vshrl.u32 %v457, 7
      %v459 = vsub.s32 0, %v458
      %v460 = vrot.slane %v455, %v459
      %v461 = vlaneseq
      %v462 = vshrl.u32 %v461, 7
      %v463 = vsub.s32 1, %v462
      %v464 = vrot.slane %v455, %v463
      %s465 = scalar_lea.vmem %s2, 6
      %v466 = vld [vmem:[%s465] ss:$8 sm:$0x3]
      %v468 = vlaneseq
      %v469 = vshrl.u32 %v468, 7
      %v470 = vsub.s32 0, %v469
      %v471 = vrot.slane %v466, %v470
      %v472 = vlaneseq
      %v473 = vshrl.u32 %v472, 7
      %v474 = vsub.s32 1, %v473
      %v475 = vrot.slane %v466, %v474
      %s476 = scalar_lea.vmem %s2, 7
      %v477 = vld [vmem:[%s476] ss:$8 sm:$0x3]
      %v479 = vlaneseq
      %v480 = vshrl.u32 %v479, 7
      %v481 = vsub.s32 0, %v480
      %v482 = vrot.slane %v477, %v481
      %v483 = vlaneseq
      %v484 = vshrl.u32 %v483, 7
      %v485 = vsub.s32 1, %v484
      %v486 = vrot.slane %v477, %v485
      %s487 = scalar_lea.vmem %s2, 16
      %v488 = vld [vmem:[%s487] ss:$8 sm:$0x3]
      %v490 = vlaneseq
      %v491 = vshrl.u32 %v490, 7
      %v492 = vsub.s32 0, %v491
      %v493 = vrot.slane %v488, %v492
      %v494 = vlaneseq
      %v495 = vshrl.u32 %v494, 7
      %v496 = vsub.s32 1, %v495
      %v497 = vrot.slane %v488, %v496
      %s498 = smul.u32 %s194, 3
      %s499 = smul.addr %s498, 4
      %s500 = scalar_lea.vmem %s183, %s499
      %v501 = vld [vmem:[%s500] sm:$0xff]
      %v502 = vld [vmem:[%s500 + $0x8] sm:$0xf]
      %v503 = vcombine.low %v416, %v420
      %v505 = vmul.f32 %v501, %v503
      %v507 = vcombine.high %v505, %v505
      %509 = vst [vmem:[#allocation2] sm:$0xf] %v505
      %510 = vst [vmem:[#allocation2 + $0x8] sm:$0xf] %v507
      %v511 = vcombine.low %v427, %v431
      %512 = vrot.lane.b32.xlu0 %v511, 1
      %v513 = vpop.permute.xlu0 %512
      %v514 = vrot.slane %v513, 4
      %vm515 = vcmask 7168
      %v516 = vsel %vm515, %v514, %v513
      %v519 = vmul.f32 %v501, %v516
      %v520 = vmul.f32 %v502, %v514
      %v523 = vcombine.high %v519, %v519
      %524 = vrot.lane.b32.xlu0 %v519, 127
      %v525 = vpop.permute.xlu0 %524
      %526 = vrot.lane.b32.xlu0 %v523, 127
      %v527 = vpop.permute.xlu0 %526
      %528 = vrot.lane.b32.xlu0 %v520, 127
      %v529 = vpop.permute.xlu0 %528
      %vm530 = vcmask 1039360
      %v531 = vsel %vm530, %v525, %v527
      %v532 = vsel %vm530, %v527, %v529
      %535 = vst [vmem:[#allocation2 + $0x40] sm:$0xf] %v531
      %536 = vst [vmem:[#allocation2 + $0x48] sm:$0xf] %v532
      %v537 = vcombine.low %v438, %v442
      %538 = vrot.lane.b32.xlu0 %v537, 2
      %v539 = vpop.permute.xlu0 %538
      %v540 = vrot.slane %v539, 4
      %vm541 = vcmask 15360
      %v542 = vsel %vm541, %v540, %v539
      %v545 = vmul.f32 %v501, %v542
      %v546 = vmul.f32 %v502, %v540
      %v549 = vcombine.high %v545, %v545
      %550 = vrot.lane.b32.xlu0 %v545, 126
      %v551 = vpop.permute.xlu0 %550
      %552 = vrot.lane.b32.xlu0 %v549, 126
      %v553 = vpop.permute.xlu0 %552
      %554 = vrot.lane.b32.xlu0 %v546, 126
      %v555 = vpop.permute.xlu0 %554
      %vm556 = vcmask 1031168
      %v557 = vsel %vm556, %v551, %v553
      %v558 = vsel %vm556, %v553, %v555
      %561 = vst [vmem:[#allocation2 + $0x80] sm:$0xf] %v557
      %562 = vst [vmem:[#allocation2 + $0x88] sm:$0xf] %v558
      %v563 = vcombine.low %v449, %v453
      %564 = vrot.lane.b32.xlu0 %v563, 16
      %v565 = vpop.permute.xlu0 %564
      %v566 = vrot.slane %v565, 4
      %vm567 = vcmask 130048
      %v568 = vsel %vm567, %v566, %v565
      %v571 = vmul.f32 %v501, %v568
      %v572 = vmul.f32 %v502, %v566
      %v575 = vcombine.high %v571, %v571
      %576 = vrot.lane.b32.xlu0 %v571, 112
      %v577 = vpop.permute.xlu0 %576
      %578 = vrot.lane.b32.xlu0 %v575, 112
      %v579 = vpop.permute.xlu0 %578
      %580 = vrot.lane.b32.xlu0 %v572, 112
      %v581 = vpop.permute.xlu0 %580
      %vm582 = vcmask 916480
      %v583 = vsel %vm582, %v577, %v579
      %v584 = vsel %vm582, %v579, %v581
      %587 = vst [vmem:[#allocation2 + $0xc0] sm:$0xf] %v583
      %588 = vst [vmem:[#allocation2 + $0xc8] sm:$0xf] %v584
      %v591 = vcombine.high %v501, %v501
      %592 = vrot.lane.b32.xlu0 %v501, 111
      %v593 = vpop.permute.xlu0 %592
      %594 = vrot.lane.b32.xlu0 %v591, 111
      %v595 = vpop.permute.xlu0 %594
      %596 = vrot.lane.b32.xlu0 %v502, 111
      %v597 = vpop.permute.xlu0 %596
      %vm598 = vcmask 908288
      %v599 = vsel %vm598, %v593, %v595
      %v600 = vsel %vm598, %v595, %v597
      %603 = vst [vmem:[#allocation2 + $0x100] sm:$0xf] %v599
      %604 = vst [vmem:[#allocation2 + $0x108] sm:$0xf] %v600
      %v605 = vcombine.low %v460, %v464
      %606 = vrot.lane.b32.xlu0 %v605, 18
      %v607 = vpop.permute.xlu0 %606
      %v608 = vrot.slane %v607, 4
      %vm609 = vcmask 146432
      %v610 = vsel %vm609, %v608, %v607
      %v613 = vmul.f32 %v501, %v610
      %v614 = vmul.f32 %v502, %v608
      %v617 = vcombine.high %v613, %v613
      %618 = vrot.lane.b32.xlu0 %v613, 110
      %v619 = vpop.permute.xlu0 %618
      %620 = vrot.lane.b32.xlu0 %v617, 110
      %v621 = vpop.permute.xlu0 %620
      %622 = vrot.lane.b32.xlu0 %v614, 110
      %v623 = vpop.permute.xlu0 %622
      %vm624 = vcmask 900096
      %v625 = vsel %vm624, %v619, %v621
      %v626 = vsel %vm624, %v621, %v623
      %629 = vst [vmem:[#allocation2 + $0x140] sm:$0xf] %v625
      %630 = vst [vmem:[#allocation2 + $0x148] sm:$0xf] %v626
      %v631 = vcombine.low %v471, %v475
      %632 = vrot.lane.b32.xlu0 %v631, 32
      %v633 = vpop.permute.xlu0 %632
      %v634 = vrot.slane %v633, 4
      %vm635 = vcmask 261120
      %v636 = vsel %vm635, %v634, %v633
      %v639 = vmul.f32 %v501, %v636
      %v640 = vmul.f32 %v502, %v634
      %v643 = vcombine.high %v639, %v639
      %644 = vrot.lane.b32.xlu0 %v639, 96
      %v645 = vpop.permute.xlu0 %644
      %646 = vrot.lane.b32.xlu0 %v643, 96
      %v647 = vpop.permute.xlu0 %646
      %648 = vrot.lane.b32.xlu0 %v640, 96
      %v649 = vpop.permute.xlu0 %648
      %vm650 = vcmask 785408
      %v651 = vsel %vm650, %v645, %v647
      %v652 = vsel %vm650, %v647, %v649
      %655 = vst [vmem:[#allocation2 + $0x180] sm:$0xf] %v651
      %656 = vst [vmem:[#allocation2 + $0x188] sm:$0xf] %v652
      %v657 = vcombine.low %v482, %v486
      %658 = vrot.lane.b32.xlu0 %v657, 33
      %v659 = vpop.permute.xlu0 %658
      %v660 = vrot.slane %v659, 4
      %vm661 = vcmask 269312
      %v662 = vsel %vm661, %v660, %v659
      %v665 = vmul.f32 %v501, %v662
      %v666 = vmul.f32 %v502, %v660
      %v669 = vcombine.high %v665, %v665
      %670 = vrot.lane.b32.xlu0 %v665, 95
      %v671 = vpop.permute.xlu0 %670
      %672 = vrot.lane.b32.xlu0 %v669, 95
      %v673 = vpop.permute.xlu0 %672
      %674 = vrot.lane.b32.xlu0 %v666, 95
      %v675 = vpop.permute.xlu0 %674
      %vm676 = vcmask 777216
      %v677 = vsel %vm676, %v671, %v673
      %v678 = vsel %vm676, %v673, %v675
      %681 = vst [vmem:[#allocation2 + $0x1c0] sm:$0xf] %v677
      %682 = vst [vmem:[#allocation2 + $0x1c8] sm:$0xf] %v678
      %v683 = vcombine.low %v493, %v497
      %684 = vrot.lane.b32.xlu0 %v683, 34
      %v685 = vpop.permute.xlu0 %684
      %v686 = vrot.slane %v685, 4
      %vm687 = vcmask 277504
      %v688 = vsel %vm687, %v686, %v685
      %v691 = vmul.f32 %v501, %v688
      %v692 = vmul.f32 %v502, %v686
      %v695 = vcombine.high %v691, %v691
      %696 = vrot.lane.b32.xlu0 %v691, 94
      %v697 = vpop.permute.xlu0 %696
      %698 = vrot.lane.b32.xlu0 %v695, 94
      %v699 = vpop.permute.xlu0 %698
      %700 = vrot.lane.b32.xlu0 %v692, 94
      %v701 = vpop.permute.xlu0 %700
      %vm702 = vcmask 769024
      %v703 = vsel %vm702, %v697, %v699
      %v704 = vsel %vm702, %v699, %v701
      %707 = vst [vmem:[#allocation2 + $0x200] sm:$0xf] %v703
      %708 = vst [vmem:[#allocation2 + $0x208] sm:$0xf] %v704
      %s709 = sadd.s32 %s194, 1
      %s710 = smul.u32 %s709, 3
      %s711 = smul.addr %s710, 4
      %s712 = scalar_lea.vmem %s183, %s711
      %v713 = vld [vmem:[%s712] sm:$0xff]
      %v714 = vld [vmem:[%s712 + $0x8] sm:$0xf]
      %v715 = vmul.f32 %v713, %v503
      %v717 = vcombine.high %v715, %v715
      %719 = vst [vmem:[#allocation2 + $0x10] sm:$0xf] %v715
      %720 = vst [vmem:[#allocation2 + $0x18] sm:$0xf] %v717
      %721 = vst [vmem:[#allocation2 + $0x240] sm:$0xf] %v715
      %722 = vst [vmem:[#allocation2 + $0x248] sm:$0xf] %v717
      %v723 = vmul.f32 %v713, %v516
      %v724 = vmul.f32 %v714, %v514
      %v727 = vcombine.high %v723, %v723
      %728 = vrot.lane.b32.xlu0 %v723, 127
      %v729 = vpop.permute.xlu0 %728
      %730 = vrot.lane.b32.xlu0 %v727, 127
      %v731 = vpop.permute.xlu0 %730
      %732 = vrot.lane.b32.xlu0 %v724, 127
      %v733 = vpop.permute.xlu0 %732
      %v734 = vsel %vm530, %v729, %v731
      %v735 = vsel %vm530, %v731, %v733
      %738 = vst [vmem:[#allocation2 + $0x50] sm:$0xf] %v734
      %739 = vst [vmem:[#allocation2 + $0x58] sm:$0xf] %v735
      %740 = vst [vmem:[#allocation2 + $0x280] sm:$0xf] %v734
      %741 = vst [vmem:[#allocation2 + $0x288] sm:$0xf] %v735
      %v742 = vmul.f32 %v713, %v542
      %v743 = vmul.f32 %v714, %v540
      %v746 = vcombine.high %v742, %v742
      %747 = vrot.lane.b32.xlu0 %v742, 126
      %v748 = vpop.permute.xlu0 %747
      %749 = vrot.lane.b32.xlu0 %v746, 126
      %v750 = vpop.permute.xlu0 %749
      %751 = vrot.lane.b32.xlu0 %v743, 126
      %v752 = vpop.permute.xlu0 %751
      %v753 = vsel %vm556, %v748, %v750
      %v754 = vsel %vm556, %v750, %v752
      %757 = vst [vmem:[#allocation2 + $0x90] sm:$0xf] %v753
      %758 = vst [vmem:[#allocation2 + $0x98] sm:$0xf] %v754
      %759 = vst [vmem:[#allocation2 + $0x2c0] sm:$0xf] %v753
      %760 = vst [vmem:[#allocation2 + $0x2c8] sm:$0xf] %v754
      %v761 = vmul.f32 %v713, %v568
      %v762 = vmul.f32 %v714, %v566
      %v765 = vcombine.high %v761, %v761
      %766 = vrot.lane.b32.xlu0 %v761, 112
      %v767 = vpop.permute.xlu0 %766
      %768 = vrot.lane.b32.xlu0 %v765, 112
      %v769 = vpop.permute.xlu0 %768
      %770 = vrot.lane.b32.xlu0 %v762, 112
      %v771 = vpop.permute.xlu0 %770
      %v772 = vsel %vm582, %v767, %v769
      %v773 = vsel %vm582, %v769, %v771
      %776 = vst [vmem:[#allocation2 + $0xd0] sm:$0xf] %v772
      %777 = vst [vmem:[#allocation2 + $0xd8] sm:$0xf] %v773
      %778 = vst [vmem:[#allocation2 + $0x300] sm:$0xf] %v772
      %779 = vst [vmem:[#allocation2 + $0x308] sm:$0xf] %v773
      %v782 = vcombine.high %v713, %v713
      %783 = vrot.lane.b32.xlu0 %v713, 111
      %v784 = vpop.permute.xlu0 %783
      %785 = vrot.lane.b32.xlu0 %v782, 111
      %v786 = vpop.permute.xlu0 %785
      %787 = vrot.lane.b32.xlu0 %v714, 111
      %v788 = vpop.permute.xlu0 %787
      %v789 = vsel %vm598, %v784, %v786
      %v790 = vsel %vm598, %v786, %v788
      %793 = vst [vmem:[#allocation2 + $0x110] sm:$0xf] %v789
      %794 = vst [vmem:[#allocation2 + $0x118] sm:$0xf] %v790
      %795 = vst [vmem:[#allocation2 + $0x340] sm:$0xf] %v789
      %796 = vst [vmem:[#allocation2 + $0x348] sm:$0xf] %v790
      %v797 = vmul.f32 %v713, %v610
      %v798 = vmul.f32 %v714, %v608
      %v801 = vcombine.high %v797, %v797
      %802 = vrot.lane.b32.xlu0 %v797, 110
      %v803 = vpop.permute.xlu0 %802
      %804 = vrot.lane.b32.xlu0 %v801, 110
      %v805 = vpop.permute.xlu0 %804
      %806 = vrot.lane.b32.xlu0 %v798, 110
      %v807 = vpop.permute.xlu0 %806
      %v808 = vsel %vm624, %v803, %v805
      %v809 = vsel %vm624, %v805, %v807
      %812 = vst [vmem:[#allocation2 + $0x150] sm:$0xf] %v808
      %813 = vst [vmem:[#allocation2 + $0x158] sm:$0xf] %v809
      %814 = vst [vmem:[#allocation2 + $0x380] sm:$0xf] %v808
      %815 = vst [vmem:[#allocation2 + $0x388] sm:$0xf] %v809
      %v816 = vmul.f32 %v713, %v636
      %v817 = vmul.f32 %v714, %v634
      %v820 = vcombine.high %v816, %v816
      %821 = vrot.lane.b32.xlu0 %v816, 96
      %v822 = vpop.permute.xlu0 %821
      %823 = vrot.lane.b32.xlu0 %v820, 96
      %v824 = vpop.permute.xlu0 %823
      %825 = vrot.lane.b32.xlu0 %v817, 96
      %v826 = vpop.permute.xlu0 %825
      %v827 = vsel %vm650, %v822, %v824
      %v828 = vsel %vm650, %v824, %v826
      %831 = vst [vmem:[#allocation2 + $0x190] sm:$0xf] %v827
      %832 = vst [vmem:[#allocation2 + $0x198] sm:$0xf] %v828
      %833 = vst [vmem:[#allocation2 + $0x3c0] sm:$0xf] %v827
      %834 = vst [vmem:[#allocation2 + $0x3c8] sm:$0xf] %v828
      %v835 = vmul.f32 %v713, %v662
      %v836 = vmul.f32 %v714, %v660
      %v839 = vcombine.high %v835, %v835
      %840 = vrot.lane.b32.xlu0 %v835, 95
      %v841 = vpop.permute.xlu0 %840
      %842 = vrot.lane.b32.xlu0 %v839, 95
      %v843 = vpop.permute.xlu0 %842
      %844 = vrot.lane.b32.xlu0 %v836, 95
      %v845 = vpop.permute.xlu0 %844
      %v846 = vsel %vm676, %v841, %v843
      %v847 = vsel %vm676, %v843, %v845
      %850 = vst [vmem:[#allocation2 + $0x1d0] sm:$0xf] %v846
      %851 = vst [vmem:[#allocation2 + $0x1d8] sm:$0xf] %v847
      %852 = vst [vmem:[#allocation2 + $0x400] sm:$0xf] %v846
      %853 = vst [vmem:[#allocation2 + $0x408] sm:$0xf] %v847
      %v854 = vmul.f32 %v713, %v688
      %v855 = vmul.f32 %v714, %v686
      %v858 = vcombine.high %v854, %v854
      %859 = vrot.lane.b32.xlu0 %v854, 94
      %v860 = vpop.permute.xlu0 %859
      %861 = vrot.lane.b32.xlu0 %v858, 94
      %v862 = vpop.permute.xlu0 %861
      %863 = vrot.lane.b32.xlu0 %v855, 94
      %v864 = vpop.permute.xlu0 %863
      %v865 = vsel %vm702, %v860, %v862
      %v866 = vsel %vm702, %v862, %v864
      %869 = vst [vmem:[#allocation2 + $0x210] sm:$0xf] %v865
      %870 = vst [vmem:[#allocation2 + $0x218] sm:$0xf] %v866
      %871 = vst [vmem:[#allocation2 + $0x440] sm:$0xf] %v865
      %872 = vst [vmem:[#allocation2 + $0x448] sm:$0xf] %v866
      %s873 = sadd.s32 %s194, 2
      %s874 = smul.u32 %s873, 3
      %s875 = smul.addr %s874, 4
      %s876 = scalar_lea.vmem %s183, %s875
      %v877 = vld [vmem:[%s876] sm:$0xff]
      %v878 = vld [vmem:[%s876 + $0x8] sm:$0xf]
      %v879 = vmul.f32 %v877, %v503
      %v881 = vcombine.high %v879, %v879
      %883 = vst [vmem:[#allocation2 + $0x20] sm:$0xf] %v879
      %884 = vst [vmem:[#allocation2 + $0x28] sm:$0xf] %v881
      %885 = vst [vmem:[#allocation2 + $0x250] sm:$0xf] %v879
      %886 = vst [vmem:[#allocation2 + $0x258] sm:$0xf] %v881
      %887 = vst [vmem:[#allocation2 + $0x480] sm:$0xf] %v879
      %888 = vst [vmem:[#allocation2 + $0x488] sm:$0xf] %v881
      %v889 = vmul.f32 %v877, %v516
      %v890 = vmul.f32 %v878, %v514
      %v893 = vcombine.high %v889, %v889
      %894 = vrot.lane.b32.xlu0 %v889, 127
      %v895 = vpop.permute.xlu0 %894
      %896 = vrot.lane.b32.xlu0 %v893, 127
      %v897 = vpop.permute.xlu0 %896
      %898 = vrot.lane.b32.xlu0 %v890, 127
      %v899 = vpop.permute.xlu0 %898
      %v900 = vsel %vm530, %v895, %v897
      %v901 = vsel %vm530, %v897, %v899
      %904 = vst [vmem:[#allocation2 + $0x60] sm:$0xf] %v900
      %905 = vst [vmem:[#allocation2 + $0x68] sm:$0xf] %v901
      %906 = vst [vmem:[#allocation2 + $0x290] sm:$0xf] %v900
      %907 = vst [vmem:[#allocation2 + $0x298] sm:$0xf] %v901
      %908 = vst [vmem:[#allocation2 + $0x4c0] sm:$0xf] %v900
      %909 = vst [vmem:[#allocation2 + $0x4c8] sm:$0xf] %v901
      %v910 = vmul.f32 %v877, %v542
      %v911 = vmul.f32 %v878, %v540
      %v914 = vcombine.high %v910, %v910
      %915 = vrot.lane.b32.xlu0 %v910, 126
      %v916 = vpop.permute.xlu0 %915
      %917 = vrot.lane.b32.xlu0 %v914, 126
      %v918 = vpop.permute.xlu0 %917
      %919 = vrot.lane.b32.xlu0 %v911, 126
      %v920 = vpop.permute.xlu0 %919
      %v921 = vsel %vm556, %v916, %v918
      %v922 = vsel %vm556, %v918, %v920
      %925 = vst [vmem:[#allocation2 + $0xa0] sm:$0xf] %v921
      %926 = vst [vmem:[#allocation2 + $0xa8] sm:$0xf] %v922
      %927 = vst [vmem:[#allocation2 + $0x2d0] sm:$0xf] %v921
      %928 = vst [vmem:[#allocation2 + $0x2d8] sm:$0xf] %v922
      %929 = vst [vmem:[#allocation2 + $0x500] sm:$0xf] %v921
      %930 = vst [vmem:[#allocation2 + $0x508] sm:$0xf] %v922
      %v931 = vmul.f32 %v877, %v568
      %v932 = vmul.f32 %v878, %v566
      %v935 = vcombine.high %v931, %v931
      %936 = vrot.lane.b32.xlu0 %v931, 112
      %v937 = vpop.permute.xlu0 %936
      %938 = vrot.lane.b32.xlu0 %v935, 112
      %v939 = vpop.permute.xlu0 %938
      %940 = vrot.lane.b32.xlu0 %v932, 112
      %v941 = vpop.permute.xlu0 %940
      %v942 = vsel %vm582, %v937, %v939
      %v943 = vsel %vm582, %v939, %v941
      %946 = vst [vmem:[#allocation2 + $0xe0] sm:$0xf] %v942
      %947 = vst [vmem:[#allocation2 + $0xe8] sm:$0xf] %v943
      %948 = vst [vmem:[#allocation2 + $0x310] sm:$0xf] %v942
      %949 = vst [vmem:[#allocation2 + $0x318] sm:$0xf] %v943
      %950 = vst [vmem:[#allocation2 + $0x540] sm:$0xf] %v942
      %951 = vst [vmem:[#allocation2 + $0x548] sm:$0xf] %v943
      %v954 = vcombine.high %v877, %v877
      %955 = vrot.lane.b32.xlu0 %v877, 111
      %v956 = vpop.permute.xlu0 %955
      %957 = vrot.lane.b32.xlu0 %v954, 111
      %v958 = vpop.permute.xlu0 %957
      %959 = vrot.lane.b32.xlu0 %v878, 111
      %v960 = vpop.permute.xlu0 %959
      %v961 = vsel %vm598, %v956, %v958
      %v962 = vsel %vm598, %v958, %v960
      %965 = vst [vmem:[#allocation2 + $0x120] sm:$0xf] %v961
      %966 = vst [vmem:[#allocation2 + $0x128] sm:$0xf] %v962
      %967 = vst [vmem:[#allocation2 + $0x350] sm:$0xf] %v961
      %968 = vst [vmem:[#allocation2 + $0x358] sm:$0xf] %v962
      %969 = vst [vmem:[#allocation2 + $0x580] sm:$0xf] %v961
      %970 = vst [vmem:[#allocation2 + $0x588] sm:$0xf] %v962
      %v971 = vmul.f32 %v877, %v610
      %v972 = vmul.f32 %v878, %v608
      %v975 = vcombine.high %v971, %v971
      %976 = vrot.lane.b32.xlu0 %v971, 110
      %v977 = vpop.permute.xlu0 %976
      %978 = vrot.lane.b32.xlu0 %v975, 110
      %v979 = vpop.permute.xlu0 %978
      %980 = vrot.lane.b32.xlu0 %v972, 110
      %v981 = vpop.permute.xlu0 %980
      %v982 = vsel %vm624, %v977, %v979
      %v983 = vsel %vm624, %v979, %v981
      %986 = vst [vmem:[#allocation2 + $0x160] sm:$0xf] %v982
      %987 = vst [vmem:[#allocation2 + $0x168] sm:$0xf] %v983
      %988 = vst [vmem:[#allocation2 + $0x390] sm:$0xf] %v982
      %989 = vst [vmem:[#allocation2 + $0x398] sm:$0xf] %v983
      %990 = vst [vmem:[#allocation2 + $0x5c0] sm:$0xf] %v982
      %991 = vst [vmem:[#allocation2 + $0x5c8] sm:$0xf] %v983
      %v992 = vmul.f32 %v877, %v636
      %v993 = vmul.f32 %v878, %v634
      %v996 = vcombine.high %v992, %v992
      %997 = vrot.lane.b32.xlu0 %v992, 96
      %v998 = vpop.permute.xlu0 %997
      %999 = vrot.lane.b32.xlu0 %v996, 96
      %v1000 = vpop.permute.xlu0 %999
      %1001 = vrot.lane.b32.xlu0 %v993, 96
      %v1002 = vpop.permute.xlu0 %1001
      %v1003 = vsel %vm650, %v998, %v1000
      %v1004 = vsel %vm650, %v1000, %v1002
      %1007 = vst [vmem:[#allocation2 + $0x1a0] sm:$0xf] %v1003
      %1008 = vst [vmem:[#allocation2 + $0x1a8] sm:$0xf] %v1004
      %1009 = vst [vmem:[#allocation2 + $0x3d0] sm:$0xf] %v1003
      %1010 = vst [vmem:[#allocation2 + $0x3d8] sm:$0xf] %v1004
      %1011 = vst [vmem:[#allocation2 + $0x600] sm:$0xf] %v1003
      %1012 = vst [vmem:[#allocation2 + $0x608] sm:$0xf] %v1004
      %v1013 = vmul.f32 %v877, %v662
      %v1014 = vmul.f32 %v878, %v660
      %v1017 = vcombine.high %v1013, %v1013
      %1018 = vrot.lane.b32.xlu0 %v1013, 95
      %v1019 = vpop.permute.xlu0 %1018
      %1020 = vrot.lane.b32.xlu0 %v1017, 95
      %v1021 = vpop.permute.xlu0 %1020
      %1022 = vrot.lane.b32.xlu0 %v1014, 95
      %v1023 = vpop.permute.xlu0 %1022
      %v1024 = vsel %vm676, %v1019, %v1021
      %v1025 = vsel %vm676, %v1021, %v1023
      %1028 = vst [vmem:[#allocation2 + $0x1e0] sm:$0xf] %v1024
      %1029 = vst [vmem:[#allocation2 + $0x1e8] sm:$0xf] %v1025
      %1030 = vst [vmem:[#allocation2 + $0x410] sm:$0xf] %v1024
      %1031 = vst [vmem:[#allocation2 + $0x418] sm:$0xf] %v1025
      %1032 = vst [vmem:[#allocation2 + $0x640] sm:$0xf] %v1024
      %1033 = vst [vmem:[#allocation2 + $0x648] sm:$0xf] %v1025
      %v1034 = vmul.f32 %v877, %v688
      %v1035 = vmul.f32 %v878, %v686
      %v1038 = vcombine.high %v1034, %v1034
      %1039 = vrot.lane.b32.xlu0 %v1034, 94
      %v1040 = vpop.permute.xlu0 %1039
      %1041 = vrot.lane.b32.xlu0 %v1038, 94
      %v1042 = vpop.permute.xlu0 %1041
      %1043 = vrot.lane.b32.xlu0 %v1035, 94
      %v1044 = vpop.permute.xlu0 %1043
      %v1045 = vsel %vm702, %v1040, %v1042
      %v1046 = vsel %vm702, %v1042, %v1044
      %1049 = vst [vmem:[#allocation2 + $0x220] sm:$0xf] %v1045
      %1050 = vst [vmem:[#allocation2 + $0x228] sm:$0xf] %v1046
      %1051 = vst [vmem:[#allocation2 + $0x450] sm:$0xf] %v1045
      %1052 = vst [vmem:[#allocation2 + $0x458] sm:$0xf] %v1046
      %1053 = vst [vmem:[#allocation2 + $0x680] sm:$0xf] %v1045
      %1054 = vst [vmem:[#allocation2 + $0x688] sm:$0xf] %v1046
      %s1055 = sadd.s32 %s194, 3
      %s1056 = smul.u32 %s1055, 3
      %s1057 = smul.addr %s1056, 4
      %s1058 = scalar_lea.vmem %s183, %s1057
      %v1059 = vld [vmem:[%s1058] sm:$0xff]
      %v1060 = vld [vmem:[%s1058 + $0x8] sm:$0xf]
      %v1061 = vmul.f32 %v1059, %v503
      %v1063 = vcombine.high %v1061, %v1061
      %1065 = vst [vmem:[#allocation2 + $0x30] sm:$0xf] %v1061
      %1066 = vst [vmem:[#allocation2 + $0x38] sm:$0xf] %v1063
      %1067 = vst [vmem:[#allocation2 + $0x260] sm:$0xf] %v1061
      %1068 = vst [vmem:[#allocation2 + $0x268] sm:$0xf] %v1063
      %1069 = vst [vmem:[#allocation2 + $0x490] sm:$0xf] %v1061
      %1070 = vst [vmem:[#allocation2 + $0x498] sm:$0xf] %v1063
      %v1071 = vmul.f32 %v1059, %v516
      %v1072 = vmul.f32 %v1060, %v514
      %v1075 = vcombine.high %v1071, %v1071
      %1076 = vrot.lane.b32.xlu0 %v1071, 127
      %v1077 = vpop.permute.xlu0 %1076
      %1078 = vrot.lane.b32.xlu0 %v1075, 127
      %v1079 = vpop.permute.xlu0 %1078
      %1080 = vrot.lane.b32.xlu0 %v1072, 127
      %v1081 = vpop.permute.xlu0 %1080
      %v1082 = vsel %vm530, %v1077, %v1079
      %v1083 = vsel %vm530, %v1079, %v1081
      %1086 = vst [vmem:[#allocation2 + $0x70] sm:$0xf] %v1082
      %1087 = vst [vmem:[#allocation2 + $0x78] sm:$0xf] %v1083
      %1088 = vst [vmem:[#allocation2 + $0x2a0] sm:$0xf] %v1082
      %1089 = vst [vmem:[#allocation2 + $0x2a8] sm:$0xf] %v1083
      %1090 = vst [vmem:[#allocation2 + $0x4d0] sm:$0xf] %v1082
      %1091 = vst [vmem:[#allocation2 + $0x4d8] sm:$0xf] %v1083
      %v1092 = vmul.f32 %v1059, %v542
      %v1093 = vmul.f32 %v1060, %v540
      %v1096 = vcombine.high %v1092, %v1092
      %1097 = vrot.lane.b32.xlu0 %v1092, 126
      %v1098 = vpop.permute.xlu0 %1097
      %1099 = vrot.lane.b32.xlu0 %v1096, 126
      %v1100 = vpop.permute.xlu0 %1099
      %1101 = vrot.lane.b32.xlu0 %v1093, 126
      %v1102 = vpop.permute.xlu0 %1101
      %v1103 = vsel %vm556, %v1098, %v1100
      %v1104 = vsel %vm556, %v1100, %v1102
      %1107 = vst [vmem:[#allocation2 + $0xb0] sm:$0xf] %v1103
      %1108 = vst [vmem:[#allocation2 + $0xb8] sm:$0xf] %v1104
      %1109 = vst [vmem:[#allocation2 + $0x2e0] sm:$0xf] %v1103
      %1110 = vst [vmem:[#allocation2 + $0x2e8] sm:$0xf] %v1104
      %1111 = vst [vmem:[#allocation2 + $0x510] sm:$0xf] %v1103
      %1112 = vst [vmem:[#allocation2 + $0x518] sm:$0xf] %v1104
      %v1113 = vmul.f32 %v1059, %v568
      %v1114 = vmul.f32 %v1060, %v566
      %v1117 = vcombine.high %v1113, %v1113
      %1118 = vrot.lane.b32.xlu0 %v1113, 112
      %v1119 = vpop.permute.xlu0 %1118
      %1120 = vrot.lane.b32.xlu0 %v1117, 112
      %v1121 = vpop.permute.xlu0 %1120
      %1122 = vrot.lane.b32.xlu0 %v1114, 112
      %v1123 = vpop.permute.xlu0 %1122
      %v1124 = vsel %vm582, %v1119, %v1121
      %v1125 = vsel %vm582, %v1121, %v1123
      %1128 = vst [vmem:[#allocation2 + $0xf0] sm:$0xf] %v1124
      %1129 = vst [vmem:[#allocation2 + $0xf8] sm:$0xf] %v1125
      %1130 = vst [vmem:[#allocation2 + $0x320] sm:$0xf] %v1124
      %1131 = vst [vmem:[#allocation2 + $0x328] sm:$0xf] %v1125
      %1132 = vst [vmem:[#allocation2 + $0x550] sm:$0xf] %v1124
      %1133 = vst [vmem:[#allocation2 + $0x558] sm:$0xf] %v1125
      %v1136 = vcombine.high %v1059, %v1059
      %1137 = vrot.lane.b32.xlu0 %v1059, 111
      %v1138 = vpop.permute.xlu0 %1137
      %1139 = vrot.lane.b32.xlu0 %v1136, 111
      %v1140 = vpop.permute.xlu0 %1139
      %1141 = vrot.lane.b32.xlu0 %v1060, 111
      %v1142 = vpop.permute.xlu0 %1141
      %v1143 = vsel %vm598, %v1138, %v1140
      %v1144 = vsel %vm598, %v1140, %v1142
      %1147 = vst [vmem:[#allocation2 + $0x130] sm:$0xf] %v1143
      %1148 = vst [vmem:[#allocation2 + $0x138] sm:$0xf] %v1144
      %1149 = vst [vmem:[#allocation2 + $0x360] sm:$0xf] %v1143
      %1150 = vst [vmem:[#allocation2 + $0x368] sm:$0xf] %v1144
      %1151 = vst [vmem:[#allocation2 + $0x590] sm:$0xf] %v1143
      %1152 = vst [vmem:[#allocation2 + $0x598] sm:$0xf] %v1144
      %v1153 = vmul.f32 %v1059, %v610
      %v1154 = vmul.f32 %v1060, %v608
      %v1157 = vcombine.high %v1153, %v1153
      %1158 = vrot.lane.b32.xlu0 %v1153, 110
      %v1159 = vpop.permute.xlu0 %1158
      %1160 = vrot.lane.b32.xlu0 %v1157, 110
      %v1161 = vpop.permute.xlu0 %1160
      %1162 = vrot.lane.b32.xlu0 %v1154, 110
      %v1163 = vpop.permute.xlu0 %1162
      %v1164 = vsel %vm624, %v1159, %v1161
      %v1165 = vsel %vm624, %v1161, %v1163
      %1168 = vst [vmem:[#allocation2 + $0x170] sm:$0xf] %v1164
      %1169 = vst [vmem:[#allocation2 + $0x178] sm:$0xf] %v1165
      %1170 = vst [vmem:[#allocation2 + $0x3a0] sm:$0xf] %v1164
      %1171 = vst [vmem:[#allocation2 + $0x3a8] sm:$0xf] %v1165
      %1172 = vst [vmem:[#allocation2 + $0x5d0] sm:$0xf] %v1164
      %1173 = vst [vmem:[#allocation2 + $0x5d8] sm:$0xf] %v1165
      %v1174 = vmul.f32 %v1059, %v636
      %v1175 = vmul.f32 %v1060, %v634
      %v1178 = vcombine.high %v1174, %v1174
      %1179 = vrot.lane.b32.xlu0 %v1174, 96
      %v1180 = vpop.permute.xlu0 %1179
      %1181 = vrot.lane.b32.xlu0 %v1178, 96
      %v1182 = vpop.permute.xlu0 %1181
      %1183 = vrot.lane.b32.xlu0 %v1175, 96
      %v1184 = vpop.permute.xlu0 %1183
      %v1185 = vsel %vm650, %v1180, %v1182
      %v1186 = vsel %vm650, %v1182, %v1184
      %1189 = vst [vmem:[#allocation2 + $0x1b0] sm:$0xf] %v1185
      %1190 = vst [vmem:[#allocation2 + $0x1b8] sm:$0xf] %v1186
      %1191 = vst [vmem:[#allocation2 + $0x3e0] sm:$0xf] %v1185
      %1192 = vst [vmem:[#allocation2 + $0x3e8] sm:$0xf] %v1186
      %1193 = vst [vmem:[#allocation2 + $0x610] sm:$0xf] %v1185
      %1194 = vst [vmem:[#allocation2 + $0x618] sm:$0xf] %v1186
      %v1195 = vmul.f32 %v1059, %v662
      %v1196 = vmul.f32 %v1060, %v660
      %v1199 = vcombine.high %v1195, %v1195
      %1200 = vrot.lane.b32.xlu0 %v1195, 95
      %v1201 = vpop.permute.xlu0 %1200
      %1202 = vrot.lane.b32.xlu0 %v1199, 95
      %v1203 = vpop.permute.xlu0 %1202
      %1204 = vrot.lane.b32.xlu0 %v1196, 95
      %v1205 = vpop.permute.xlu0 %1204
      %v1206 = vsel %vm676, %v1201, %v1203
      %v1207 = vsel %vm676, %v1203, %v1205
      %1210 = vst [vmem:[#allocation2 + $0x1f0] sm:$0xf] %v1206
      %1211 = vst [vmem:[#allocation2 + $0x1f8] sm:$0xf] %v1207
      %1212 = vst [vmem:[#allocation2 + $0x420] sm:$0xf] %v1206
      %1213 = vst [vmem:[#allocation2 + $0x428] sm:$0xf] %v1207
      %1214 = vst [vmem:[#allocation2 + $0x650] sm:$0xf] %v1206
      %1215 = vst [vmem:[#allocation2 + $0x658] sm:$0xf] %v1207
      %v1216 = vmul.f32 %v1059, %v688
      %v1217 = vmul.f32 %v1060, %v686
      %v1220 = vcombine.high %v1216, %v1216
      %1221 = vrot.lane.b32.xlu0 %v1216, 94
      %v1222 = vpop.permute.xlu0 %1221
      %1223 = vrot.lane.b32.xlu0 %v1220, 94
      %v1224 = vpop.permute.xlu0 %1223
      %1225 = vrot.lane.b32.xlu0 %v1217, 94
      %v1226 = vpop.permute.xlu0 %1225
      %v1227 = vsel %vm702, %v1222, %v1224
      %v1228 = vsel %vm702, %v1224, %v1226
      %1231 = vst [vmem:[#allocation2 + $0x230] sm:$0xf] %v1227
      %1232 = vst [vmem:[#allocation2 + $0x238] sm:$0xf] %v1228
      %1233 = vst [vmem:[#allocation2 + $0x460] sm:$0xf] %v1227
      %1234 = vst [vmem:[#allocation2 + $0x468] sm:$0xf] %v1228
      %1235 = vst [vmem:[#allocation2 + $0x690] sm:$0xf] %v1227
      %1236 = vst [vmem:[#allocation2 + $0x698] sm:$0xf] %v1228
      %s1237 = sadd.s32 %s194, 4
      %s1238 = smul.u32 %s1237, 3
      %s1239 = smul.addr %s1238, 4
      %s1240 = scalar_lea.vmem %s183, %s1239
      %v1241 = vld [vmem:[%s1240] sm:$0xff]
      %v1242 = vld [vmem:[%s1240 + $0x8] sm:$0xf]
      %v1243 = vmul.f32 %v1241, %v503
      %v1245 = vcombine.high %v1243, %v1243
      %1247 = vst [vmem:[#allocation2 + $0x270] sm:$0xf] %v1243
      %1248 = vst [vmem:[#allocation2 + $0x278] sm:$0xf] %v1245
      %1249 = vst [vmem:[#allocation2 + $0x4a0] sm:$0xf] %v1243
      %1250 = vst [vmem:[#allocation2 + $0x4a8] sm:$0xf] %v1245
      %v1251 = vmul.f32 %v1241, %v516
      %v1252 = vmul.f32 %v1242, %v514
      %v1255 = vcombine.high %v1251, %v1251
      %1256 = vrot.lane.b32.xlu0 %v1251, 127
      %v1257 = vpop.permute.xlu0 %1256
      %1258 = vrot.lane.b32.xlu0 %v1255, 127
      %v1259 = vpop.permute.xlu0 %1258
      %1260 = vrot.lane.b32.xlu0 %v1252, 127
      %v1261 = vpop.permute.xlu0 %1260
      %v1262 = vsel %vm530, %v1257, %v1259
      %v1263 = vsel %vm530, %v1259, %v1261
      %1266 = vst [vmem:[#allocation2 + $0x2b0] sm:$0xf] %v1262
      %1267 = vst [vmem:[#allocation2 + $0x2b8] sm:$0xf] %v1263
      %1268 = vst [vmem:[#allocation2 + $0x4e0] sm:$0xf] %v1262
      %1269 = vst [vmem:[#allocation2 + $0x4e8] sm:$0xf] %v1263
      %v1270 = vmul.f32 %v1241, %v542
      %v1271 = vmul.f32 %v1242, %v540
      %v1274 = vcombine.high %v1270, %v1270
      %1275 = vrot.lane.b32.xlu0 %v1270, 126
      %v1276 = vpop.permute.xlu0 %1275
      %1277 = vrot.lane.b32.xlu0 %v1274, 126
      %v1278 = vpop.permute.xlu0 %1277
      %1279 = vrot.lane.b32.xlu0 %v1271, 126
      %v1280 = vpop.permute.xlu0 %1279
      %v1281 = vsel %vm556, %v1276, %v1278
      %v1282 = vsel %vm556, %v1278, %v1280
      %1285 = vst [vmem:[#allocation2 + $0x2f0] sm:$0xf] %v1281
      %1286 = vst [vmem:[#allocation2 + $0x2f8] sm:$0xf] %v1282
      %1287 = vst [vmem:[#allocation2 + $0x520] sm:$0xf] %v1281
      %1288 = vst [vmem:[#allocation2 + $0x528] sm:$0xf] %v1282
      %v1289 = vmul.f32 %v1241, %v568
      %v1290 = vmul.f32 %v1242, %v566
      %v1293 = vcombine.high %v1289, %v1289
      %1294 = vrot.lane.b32.xlu0 %v1289, 112
      %v1295 = vpop.permute.xlu0 %1294
      %1296 = vrot.lane.b32.xlu0 %v1293, 112
      %v1297 = vpop.permute.xlu0 %1296
      %1298 = vrot.lane.b32.xlu0 %v1290, 112
      %v1299 = vpop.permute.xlu0 %1298
      %v1300 = vsel %vm582, %v1295, %v1297
      %v1301 = vsel %vm582, %v1297, %v1299
      %1304 = vst [vmem:[#allocation2 + $0x330] sm:$0xf] %v1300
      %1305 = vst [vmem:[#allocation2 + $0x338] sm:$0xf] %v1301
      %1306 = vst [vmem:[#allocation2 + $0x560] sm:$0xf] %v1300
      %1307 = vst [vmem:[#allocation2 + $0x568] sm:$0xf] %v1301
      %v1310 = vcombine.high %v1241, %v1241
      %1311 = vrot.lane.b32.xlu0 %v1241, 111
      %v1312 = vpop.permute.xlu0 %1311
      %1313 = vrot.lane.b32.xlu0 %v1310, 111
      %v1314 = vpop.permute.xlu0 %1313
      %1315 = vrot.lane.b32.xlu0 %v1242, 111
      %v1316 = vpop.permute.xlu0 %1315
      %v1317 = vsel %vm598, %v1312, %v1314
      %v1318 = vsel %vm598, %v1314, %v1316
      %1321 = vst [vmem:[#allocation2 + $0x370] sm:$0xf] %v1317
      %1322 = vst [vmem:[#allocation2 + $0x378] sm:$0xf] %v1318
      %1323 = vst [vmem:[#allocation2 + $0x5a0] sm:$0xf] %v1317
      %1324 = vst [vmem:[#allocation2 + $0x5a8] sm:$0xf] %v1318
      %v1325 = vmul.f32 %v1241, %v610
      %v1326 = vmul.f32 %v1242, %v608
      %v1329 = vcombine.high %v1325, %v1325
      %1330 = vrot.lane.b32.xlu0 %v1325, 110
      %v1331 = vpop.permute.xlu0 %1330
      %1332 = vrot.lane.b32.xlu0 %v1329, 110
      %v1333 = vpop.permute.xlu0 %1332
      %1334 = vrot.lane.b32.xlu0 %v1326, 110
      %v1335 = vpop.permute.xlu0 %1334
      %v1336 = vsel %vm624, %v1331, %v1333
      %v1337 = vsel %vm624, %v1333, %v1335
      %1340 = vst [vmem:[#allocation2 + $0x3b0] sm:$0xf] %v1336
      %1341 = vst [vmem:[#allocation2 + $0x3b8] sm:$0xf] %v1337
      %1342 = vst [vmem:[#allocation2 + $0x5e0] sm:$0xf] %v1336
      %1343 = vst [vmem:[#allocation2 + $0x5e8] sm:$0xf] %v1337
      %v1344 = vmul.f32 %v1241, %v636
      %v1345 = vmul.f32 %v1242, %v634
      %v1348 = vcombine.high %v1344, %v1344
      %1349 = vrot.lane.b32.xlu0 %v1344, 96
      %v1350 = vpop.permute.xlu0 %1349
      %1351 = vrot.lane.b32.xlu0 %v1348, 96
      %v1352 = vpop.permute.xlu0 %1351
      %1353 = vrot.lane.b32.xlu0 %v1345, 96
      %v1354 = vpop.permute.xlu0 %1353
      %v1355 = vsel %vm650, %v1350, %v1352
      %v1356 = vsel %vm650, %v1352, %v1354
      %1359 = vst [vmem:[#allocation2 + $0x3f0] sm:$0xf] %v1355
      %1360 = vst [vmem:[#allocation2 + $0x3f8] sm:$0xf] %v1356
      %1361 = vst [vmem:[#allocation2 + $0x620] sm:$0xf] %v1355
      %1362 = vst [vmem:[#allocation2 + $0x628] sm:$0xf] %v1356
      %v1363 = vmul.f32 %v1241, %v662
      %v1364 = vmul.f32 %v1242, %v660
      %v1367 = vcombine.high %v1363, %v1363
      %1368 = vrot.lane.b32.xlu0 %v1363, 95
      %v1369 = vpop.permute.xlu0 %1368
      %1370 = vrot.lane.b32.xlu0 %v1367, 95
      %v1371 = vpop.permute.xlu0 %1370
      %1372 = vrot.lane.b32.xlu0 %v1364, 95
      %v1373 = vpop.permute.xlu0 %1372
      %v1374 = vsel %vm676, %v1369, %v1371
      %v1375 = vsel %vm676, %v1371, %v1373
      %1378 = vst [vmem:[#allocation2 + $0x430] sm:$0xf] %v1374
      %1379 = vst [vmem:[#allocation2 + $0x438] sm:$0xf] %v1375
      %1380 = vst [vmem:[#allocation2 + $0x660] sm:$0xf] %v1374
      %1381 = vst [vmem:[#allocation2 + $0x668] sm:$0xf] %v1375
      %v1382 = vmul.f32 %v1241, %v688
      %v1383 = vmul.f32 %v1242, %v686
      %v1386 = vcombine.high %v1382, %v1382
      %1387 = vrot.lane.b32.xlu0 %v1382, 94
      %v1388 = vpop.permute.xlu0 %1387
      %1389 = vrot.lane.b32.xlu0 %v1386, 94
      %v1390 = vpop.permute.xlu0 %1389
      %1391 = vrot.lane.b32.xlu0 %v1383, 94
      %v1392 = vpop.permute.xlu0 %1391
      %v1393 = vsel %vm702, %v1388, %v1390
      %v1394 = vsel %vm702, %v1390, %v1392
      %1397 = vst [vmem:[#allocation2 + $0x470] sm:$0xf] %v1393
      %1398 = vst [vmem:[#allocation2 + $0x478] sm:$0xf] %v1394
      %1399 = vst [vmem:[#allocation2 + $0x6a0] sm:$0xf] %v1393
      %1400 = vst [vmem:[#allocation2 + $0x6a8] sm:$0xf] %v1394
      %s1401 = sadd.s32 %s194, 5
      %s1402 = smul.u32 %s1401, 3
      %s1403 = smul.addr %s1402, 4
      %s1404 = scalar_lea.vmem %s183, %s1403
      %v1405 = vld [vmem:[%s1404] sm:$0xff]
      %v1406 = vld [vmem:[%s1404 + $0x8] sm:$0xf]
      %v1407 = vmul.f32 %v1405, %v503
      %v1409 = vcombine.high %v1407, %v1407
      %1411 = vst [vmem:[#allocation2 + $0x4b0] sm:$0xf] %v1407
      %1412 = vst [vmem:[#allocation2 + $0x4b8] sm:$0xf] %v1409
      %v1413 = vmul.f32 %v1405, %v516
      %v1414 = vmul.f32 %v1406, %v514
      %v1417 = vcombine.high %v1413, %v1413
      %1418 = vrot.lane.b32.xlu0 %v1413, 127
      %v1419 = vpop.permute.xlu0 %1418
      %1420 = vrot.lane.b32.xlu0 %v1417, 127
      %v1421 = vpop.permute.xlu0 %1420
      %1422 = vrot.lane.b32.xlu0 %v1414, 127
      %v1423 = vpop.permute.xlu0 %1422
      %v1424 = vsel %vm530, %v1419, %v1421
      %v1425 = vsel %vm530, %v1421, %v1423
      %1428 = vst [vmem:[#allocation2 + $0x4f0] sm:$0xf] %v1424
      %1429 = vst [vmem:[#allocation2 + $0x4f8] sm:$0xf] %v1425
      %v1430 = vmul.f32 %v1405, %v542
      %v1431 = vmul.f32 %v1406, %v540
      %v1434 = vcombine.high %v1430, %v1430
      %1435 = vrot.lane.b32.xlu0 %v1430, 126
      %v1436 = vpop.permute.xlu0 %1435
      %1437 = vrot.lane.b32.xlu0 %v1434, 126
      %v1438 = vpop.permute.xlu0 %1437
      %1439 = vrot.lane.b32.xlu0 %v1431, 126
      %v1440 = vpop.permute.xlu0 %1439
      %v1441 = vsel %vm556, %v1436, %v1438
      %v1442 = vsel %vm556, %v1438, %v1440
      %1445 = vst [vmem:[#allocation2 + $0x530] sm:$0xf] %v1441
      %1446 = vst [vmem:[#allocation2 + $0x538] sm:$0xf] %v1442
      %v1447 = vmul.f32 %v1405, %v568
      %v1448 = vmul.f32 %v1406, %v566
      %v1451 = vcombine.high %v1447, %v1447
      %1452 = vrot.lane.b32.xlu0 %v1447, 112
      %v1453 = vpop.permute.xlu0 %1452
      %1454 = vrot.lane.b32.xlu0 %v1451, 112
      %v1455 = vpop.permute.xlu0 %1454
      %1456 = vrot.lane.b32.xlu0 %v1448, 112
      %v1457 = vpop.permute.xlu0 %1456
      %v1458 = vsel %vm582, %v1453, %v1455
      %v1459 = vsel %vm582, %v1455, %v1457
      %1462 = vst [vmem:[#allocation2 + $0x570] sm:$0xf] %v1458
      %1463 = vst [vmem:[#allocation2 + $0x578] sm:$0xf] %v1459
      %v1466 = vcombine.high %v1405, %v1405
      %1467 = vrot.lane.b32.xlu0 %v1405, 111
      %v1468 = vpop.permute.xlu0 %1467
      %1469 = vrot.lane.b32.xlu0 %v1466, 111
      %v1470 = vpop.permute.xlu0 %1469
      %1471 = vrot.lane.b32.xlu0 %v1406, 111
      %v1472 = vpop.permute.xlu0 %1471
      %v1473 = vsel %vm598, %v1468, %v1470
      %v1474 = vsel %vm598, %v1470, %v1472
      %1477 = vst [vmem:[#allocation2 + $0x5b0] sm:$0xf] %v1473
      %1478 = vst [vmem:[#allocation2 + $0x5b8] sm:$0xf] %v1474
      %v1479 = vmul.f32 %v1405, %v610
      %v1480 = vmul.f32 %v1406, %v608
      %v1483 = vcombine.high %v1479, %v1479
      %1484 = vrot.lane.b32.xlu0 %v1479, 110
      %v1485 = vpop.permute.xlu0 %1484
      %1486 = vrot.lane.b32.xlu0 %v1483, 110
      %v1487 = vpop.permute.xlu0 %1486
      %1488 = vrot.lane.b32.xlu0 %v1480, 110
      %v1489 = vpop.permute.xlu0 %1488
      %v1490 = vsel %vm624, %v1485, %v1487
      %v1491 = vsel %vm624, %v1487, %v1489
      %1494 = vst [vmem:[#allocation2 + $0x5f0] sm:$0xf] %v1490
      %1495 = vst [vmem:[#allocation2 + $0x5f8] sm:$0xf] %v1491
      %v1496 = vmul.f32 %v1405, %v636
      %v1497 = vmul.f32 %v1406, %v634
      %v1500 = vcombine.high %v1496, %v1496
      %1501 = vrot.lane.b32.xlu0 %v1496, 96
      %v1502 = vpop.permute.xlu0 %1501
      %1503 = vrot.lane.b32.xlu0 %v1500, 96
      %v1504 = vpop.permute.xlu0 %1503
      %1505 = vrot.lane.b32.xlu0 %v1497, 96
      %v1506 = vpop.permute.xlu0 %1505
      %v1507 = vsel %vm650, %v1502, %v1504
      %v1508 = vsel %vm650, %v1504, %v1506
      %1511 = vst [vmem:[#allocation2 + $0x630] sm:$0xf] %v1507
      %1512 = vst [vmem:[#allocation2 + $0x638] sm:$0xf] %v1508
      %v1513 = vmul.f32 %v1405, %v662
      %v1514 = vmul.f32 %v1406, %v660
      %v1517 = vcombine.high %v1513, %v1513
      %1518 = vrot.lane.b32.xlu0 %v1513, 95
      %v1519 = vpop.permute.xlu0 %1518
      %1520 = vrot.lane.b32.xlu0 %v1517, 95
      %v1521 = vpop.permute.xlu0 %1520
      %1522 = vrot.lane.b32.xlu0 %v1514, 95
      %v1523 = vpop.permute.xlu0 %1522
      %v1524 = vsel %vm676, %v1519, %v1521
      %v1525 = vsel %vm676, %v1521, %v1523
      %1528 = vst [vmem:[#allocation2 + $0x670] sm:$0xf] %v1524
      %1529 = vst [vmem:[#allocation2 + $0x678] sm:$0xf] %v1525
      %v1530 = vmul.f32 %v1405, %v688
      %v1531 = vmul.f32 %v1406, %v686
      %v1534 = vcombine.high %v1530, %v1530
      %1535 = vrot.lane.b32.xlu0 %v1530, 94
      %v1536 = vpop.permute.xlu0 %1535
      %1537 = vrot.lane.b32.xlu0 %v1534, 94
      %v1538 = vpop.permute.xlu0 %1537
      %1539 = vrot.lane.b32.xlu0 %v1531, 94
      %v1540 = vpop.permute.xlu0 %1539
      %v1541 = vsel %vm702, %v1536, %v1538
      %v1542 = vsel %vm702, %v1538, %v1540
      %1545 = vst [vmem:[#allocation2 + $0x6b0] sm:$0xf] %v1541
      %1546 = vst [vmem:[#allocation2 + $0x6b8] sm:$0xf] %v1542
      %v1547 = vld [vmem:[%s1] sm:$0xff]
      %v1548 = vld [vmem:[%s1 + $0x8] sm:$0xff]
      %v1549 = vld [vmem:[#allocation2] sm:$0xff]
      %v1550 = vld [vmem:[#allocation2 + $0x8] sm:$0xff]
      %v1551 = vld [vmem:[#allocation2 + $0x10] sm:$0xff]
      %v1552 = vld [vmem:[#allocation2 + $0x18] sm:$0xff]
      %v1553 = vld [vmem:[#allocation2 + $0x20] sm:$0xff]
      %v1554 = vld [vmem:[#allocation2 + $0x28] sm:$0xff]
      %v1555 = vld [vmem:[#allocation2 + $0x30] sm:$0xff]
      %v1556 = vld [vmem:[#allocation2 + $0x38] sm:$0xff]
      %v1557 = vld [vmem:[#allocation2 + $0x40] sm:$0xff]
      %v1558 = vld [vmem:[#allocation2 + $0x48] sm:$0xff]
      %v1559 = vld [vmem:[#allocation2 + $0x50] sm:$0xff]
      %v1560 = vld [vmem:[#allocation2 + $0x58] sm:$0xff]
      %v1561 = vld [vmem:[#allocation2 + $0x60] sm:$0xff]
      %v1562 = vld [vmem:[#allocation2 + $0x68] sm:$0xff]
      %v1563 = vld [vmem:[#allocation2 + $0x70] sm:$0xff]
      %v1564 = vld [vmem:[#allocation2 + $0x78] sm:$0xff]
      %v1565 = vld [vmem:[#allocation2 + $0x80] sm:$0xff]
      %v1566 = vld [vmem:[#allocation2 + $0x88] sm:$0xff]
      %v1567 = vld [vmem:[#allocation2 + $0x90] sm:$0xff]
      %v1568 = vld [vmem:[#allocation2 + $0x98] sm:$0xff]
      %v1569 = vld [vmem:[#allocation2 + $0xa0] sm:$0xff]
      %v1570 = vld [vmem:[#allocation2 + $0xa8] sm:$0xff]
      %v1571 = vld [vmem:[#allocation2 + $0xb0] sm:$0xff]
      %v1572 = vld [vmem:[#allocation2 + $0xb8] sm:$0xff]
      %v1573 = vld [vmem:[#allocation2 + $0xc0] sm:$0xff]
      %v1574 = vld [vmem:[#allocation2 + $0xc8] sm:$0xff]
      %v1575 = vld [vmem:[#allocation2 + $0xd0] sm:$0xff]
      %v1576 = vld [vmem:[#allocation2 + $0xd8] sm:$0xff]
      %v1577 = vld [vmem:[#allocation2 + $0xe0] sm:$0xff]
      %v1578 = vld [vmem:[#allocation2 + $0xe8] sm:$0xff]
      %v1579 = vld [vmem:[#allocation2 + $0xf0] sm:$0xff]
      %v1580 = vld [vmem:[#allocation2 + $0xf8] sm:$0xff]
      %v1581 = vld [vmem:[#allocation2 + $0x100] sm:$0xff]
      %v1582 = vld [vmem:[#allocation2 + $0x108] sm:$0xff]
      %v1583 = vld [vmem:[#allocation2 + $0x110] sm:$0xff]
      %v1584 = vld [vmem:[#allocation2 + $0x118] sm:$0xff]
      %v1585 = vld [vmem:[#allocation2 + $0x120] sm:$0xff]
      %v1586 = vld [vmem:[#allocation2 + $0x128] sm:$0xff]
      %v1587 = vld [vmem:[#allocation2 + $0x130] sm:$0xff]
      %v1588 = vld [vmem:[#allocation2 + $0x138] sm:$0xff]
      %v1589 = vld [vmem:[#allocation2 + $0x140] sm:$0xff]
      %v1590 = vld [vmem:[#allocation2 + $0x148] sm:$0xff]
      %v1591 = vld [vmem:[#allocation2 + $0x150] sm:$0xff]
      %v1592 = vld [vmem:[#allocation2 + $0x158] sm:$0xff]
      %v1593 = vld [vmem:[#allocation2 + $0x160] sm:$0xff]
      %v1594 = vld [vmem:[#allocation2 + $0x168] sm:$0xff]
      %v1595 = vld [vmem:[#allocation2 + $0x170] sm:$0xff]
      %v1596 = vld [vmem:[#allocation2 + $0x178] sm:$0xff]
      %v1597 = vld [vmem:[#allocation2 + $0x180] sm:$0xff]
      %v1598 = vld [vmem:[#allocation2 + $0x188] sm:$0xff]
      %v1599 = vld [vmem:[#allocation2 + $0x190] sm:$0xff]
      %v1600 = vld [vmem:[#allocation2 + $0x198] sm:$0xff]
      %v1601 = vld [vmem:[#allocation2 + $0x1a0] sm:$0xff]
      %v1602 = vld [vmem:[#allocation2 + $0x1a8] sm:$0xff]
      %v1603 = vld [vmem:[#allocation2 + $0x1b0] sm:$0xff]
      %v1604 = vld [vmem:[#allocation2 + $0x1b8] sm:$0xff]
      %v1605 = vld [vmem:[#allocation2 + $0x1c0] sm:$0xff]
      %v1606 = vld [vmem:[#allocation2 + $0x1c8] sm:$0xff]
      %v1607 = vld [vmem:[#allocation2 + $0x1d0] sm:$0xff]
      %v1608 = vld [vmem:[#allocation2 + $0x1d8] sm:$0xff]
      %v1609 = vld [vmem:[#allocation2 + $0x1e0] sm:$0xff]
      %v1610 = vld [vmem:[#allocation2 + $0x1e8] sm:$0xff]
      %v1611 = vld [vmem:[#allocation2 + $0x1f0] sm:$0xff]
      %v1612 = vld [vmem:[#allocation2 + $0x1f8] sm:$0xff]
      %v1613 = vld [vmem:[#allocation2 + $0x200] sm:$0xff]
      %v1614 = vld [vmem:[#allocation2 + $0x208] sm:$0xff]
      %v1615 = vld [vmem:[#allocation2 + $0x210] sm:$0xff]
      %v1616 = vld [vmem:[#allocation2 + $0x218] sm:$0xff]
      %v1617 = vld [vmem:[#allocation2 + $0x220] sm:$0xff]
      %v1618 = vld [vmem:[#allocation2 + $0x228] sm:$0xff]
      %v1619 = vld [vmem:[#allocation2 + $0x230] sm:$0xff]
      %v1620 = vld [vmem:[#allocation2 + $0x238] sm:$0xff]
      %v1621 = vld [vmem:[#allocation2 + $0x240] sm:$0xff]
      %v1622 = vld [vmem:[#allocation2 + $0x248] sm:$0xff]
      %v1623 = vld [vmem:[#allocation2 + $0x250] sm:$0xff]
      %v1624 = vld [vmem:[#allocation2 + $0x258] sm:$0xff]
      %v1625 = vld [vmem:[#allocation2 + $0x260] sm:$0xff]
      %v1626 = vld [vmem:[#allocation2 + $0x268] sm:$0xff]
      %v1627 = vld [vmem:[#allocation2 + $0x270] sm:$0xff]
      %v1628 = vld [vmem:[#allocation2 + $0x278] sm:$0xff]
      %v1629 = vld [vmem:[#allocation2 + $0x280] sm:$0xff]
      %v1630 = vld [vmem:[#allocation2 + $0x288] sm:$0xff]
      %v1631 = vld [vmem:[#allocation2 + $0x290] sm:$0xff]
      %v1632 = vld [vmem:[#allocation2 + $0x298] sm:$0xff]
      %v1633 = vld [vmem:[#allocation2 + $0x2a0] sm:$0xff]
      %v1634 = vld [vmem:[#allocation2 + $0x2a8] sm:$0xff]
      %v1635 = vld [vmem:[#allocation2 + $0x2b0] sm:$0xff]
      %v1636 = vld [vmem:[#allocation2 + $0x2b8] sm:$0xff]
      %v1637 = vld [vmem:[#allocation2 + $0x2c0] sm:$0xff]
      %v1638 = vld [vmem:[#allocation2 + $0x2c8] sm:$0xff]
      %v1639 = vld [vmem:[#allocation2 + $0x2d0] sm:$0xff]
      %v1640 = vld [vmem:[#allocation2 + $0x2d8] sm:$0xff]
      %v1641 = vld [vmem:[#allocation2 + $0x2e0] sm:$0xff]
      %v1642 = vld [vmem:[#allocation2 + $0x2e8] sm:$0xff]
      %v1643 = vld [vmem:[#allocation2 + $0x2f0] sm:$0xff]
      %v1644 = vld [vmem:[#allocation2 + $0x2f8] sm:$0xff]
      %v1645 = vld [vmem:[#allocation2 + $0x300] sm:$0xff]
      %v1646 = vld [vmem:[#allocation2 + $0x308] sm:$0xff]
      %v1647 = vld [vmem:[#allocation2 + $0x310] sm:$0xff]
      %v1648 = vld [vmem:[#allocation2 + $0x318] sm:$0xff]
      %v1649 = vld [vmem:[#allocation2 + $0x320] sm:$0xff]
      %v1650 = vld [vmem:[#allocation2 + $0x328] sm:$0xff]
      %v1651 = vld [vmem:[#allocation2 + $0x330] sm:$0xff]
      %v1652 = vld [vmem:[#allocation2 + $0x338] sm:$0xff]
      %v1653 = vld [vmem:[#allocation2 + $0x340] sm:$0xff]
      %v1654 = vld [vmem:[#allocation2 + $0x348] sm:$0xff]
      %v1655 = vld [vmem:[#allocation2 + $0x350] sm:$0xff]
      %v1656 = vld [vmem:[#allocation2 + $0x358] sm:$0xff]
      %v1657 = vld [vmem:[#allocation2 + $0x360] sm:$0xff]
      %v1658 = vld [vmem:[#allocation2 + $0x368] sm:$0xff]
      %v1659 = vld [vmem:[#allocation2 + $0x370] sm:$0xff]
      %v1660 = vld [vmem:[#allocation2 + $0x378] sm:$0xff]
      %v1661 = vld [vmem:[#allocation2 + $0x380] sm:$0xff]
      %v1662 = vld [vmem:[#allocation2 + $0x388] sm:$0xff]
      %v1663 = vld [vmem:[#allocation2 + $0x390] sm:$0xff]
      %v1664 = vld [vmem:[#allocation2 + $0x398] sm:$0xff]
      %v1665 = vld [vmem:[#allocation2 + $0x3a0] sm:$0xff]
      %v1666 = vld [vmem:[#allocation2 + $0x3a8] sm:$0xff]
      %v1667 = vld [vmem:[#allocation2 + $0x3b0] sm:$0xff]
      %v1668 = vld [vmem:[#allocation2 + $0x3b8] sm:$0xff]
      %v1669 = vld [vmem:[#allocation2 + $0x3c0] sm:$0xff]
      %v1670 = vld [vmem:[#allocation2 + $0x3c8] sm:$0xff]
      %v1671 = vld [vmem:[#allocation2 + $0x3d0] sm:$0xff]
      %v1672 = vld [vmem:[#allocation2 + $0x3d8] sm:$0xff]
      %v1673 = vld [vmem:[#allocation2 + $0x3e0] sm:$0xff]
      %v1674 = vld [vmem:[#allocation2 + $0x3e8] sm:$0xff]
      %v1675 = vld [vmem:[#allocation2 + $0x3f0] sm:$0xff]
      %v1676 = vld [vmem:[#allocation2 + $0x3f8] sm:$0xff]
      %v1677 = vld [vmem:[#allocation2 + $0x400] sm:$0xff]
      %v1678 = vld [vmem:[#allocation2 + $0x408] sm:$0xff]
      %v1679 = vld [vmem:[#allocation2 + $0x410] sm:$0xff]
      %v1680 = vld [vmem:[#allocation2 + $0x418] sm:$0xff]
      %v1681 = vld [vmem:[#allocation2 + $0x420] sm:$0xff]
      %v1682 = vld [vmem:[#allocation2 + $0x428] sm:$0xff]
      %v1683 = vld [vmem:[#allocation2 + $0x430] sm:$0xff]
      %v1684 = vld [vmem:[#allocation2 + $0x438] sm:$0xff]
      %v1685 = vld [vmem:[#allocation2 + $0x440] sm:$0xff]
      %v1686 = vld [vmem:[#allocation2 + $0x448] sm:$0xff]
      %v1687 = vld [vmem:[#allocation2 + $0x450] sm:$0xff]
      %v1688 = vld [vmem:[#allocation2 + $0x458] sm:$0xff]
      %v1689 = vld [vmem:[#allocation2 + $0x460] sm:$0xff]
      %v1690 = vld [vmem:[#allocation2 + $0x468] sm:$0xff]
      %v1691 = vld [vmem:[#allocation2 + $0x470] sm:$0xff]
      %v1692 = vld [vmem:[#allocation2 + $0x478] sm:$0xff]
      %v1693 = vld [vmem:[#allocation2 + $0x480] sm:$0xff]
      %v1694 = vld [vmem:[#allocation2 + $0x488] sm:$0xff]
      %v1695 = vld [vmem:[#allocation2 + $0x490] sm:$0xff]
      %v1696 = vld [vmem:[#allocation2 + $0x498] sm:$0xff]
      %v1697 = vld [vmem:[#allocation2 + $0x4a0] sm:$0xff]
      %v1698 = vld [vmem:[#allocation2 + $0x4a8] sm:$0xff]
      %v1699 = vld [vmem:[#allocation2 + $0x4b0] sm:$0xff]
      %v1700 = vld [vmem:[#allocation2 + $0x4b8] sm:$0xff]
      %v1701 = vld [vmem:[#allocation2 + $0x4c0] sm:$0xff]
      %v1702 = vld [vmem:[#allocation2 + $0x4c8] sm:$0xff]
      %v1703 = vld [vmem:[#allocation2 + $0x4d0] sm:$0xff]
      %v1704 = vld [vmem:[#allocation2 + $0x4d8] sm:$0xff]
      %v1705 = vld [vmem:[#allocation2 + $0x4e0] sm:$0xff]
      %v1706 = vld [vmem:[#allocation2 + $0x4e8] sm:$0xff]
      %v1707 = vld [vmem:[#allocation2 + $0x4f0] sm:$0xff]
      %v1708 = vld [vmem:[#allocation2 + $0x4f8] sm:$0xff]
      %v1709 = vld [vmem:[#allocation2 + $0x500] sm:$0xff]
      %v1710 = vld [vmem:[#allocation2 + $0x508] sm:$0xff]
      %v1711 = vld [vmem:[#allocation2 + $0x510] sm:$0xff]
      %v1712 = vld [vmem:[#allocation2 + $0x518] sm:$0xff]
      %v1713 = vld [vmem:[#allocation2 + $0x520] sm:$0xff]
      %v1714 = vld [vmem:[#allocation2 + $0x528] sm:$0xff]
      %v1715 = vld [vmem:[#allocation2 + $0x530] sm:$0xff]
      %v1716 = vld [vmem:[#allocation2 + $0x538] sm:$0xff]
      %v1717 = vld [vmem:[#allocation2 + $0x540] sm:$0xff]
      %v1718 = vld [vmem:[#allocation2 + $0x548] sm:$0xff]
      %v1719 = vld [vmem:[#allocation2 + $0x550] sm:$0xff]
      %v1720 = vld [vmem:[#allocation2 + $0x558] sm:$0xff]
      %v1721 = vld [vmem:[#allocation2 + $0x560] sm:$0xff]
      %v1722 = vld [vmem:[#allocation2 + $0x568] sm:$0xff]
      %v1723 = vld [vmem:[#allocation2 + $0x570] sm:$0xff]
      %v1724 = vld [vmem:[#allocation2 + $0x578] sm:$0xff]
      %v1725 = vld [vmem:[#allocation2 + $0x580] sm:$0xff]
      %v1726 = vld [vmem:[#allocation2 + $0x588] sm:$0xff]
      %v1727 = vld [vmem:[#allocation2 + $0x590] sm:$0xff]
      %v1728 = vld [vmem:[#allocation2 + $0x598] sm:$0xff]
      %v1729 = vld [vmem:[#allocation2 + $0x5a0] sm:$0xff]
      %v1730 = vld [vmem:[#allocation2 + $0x5a8] sm:$0xff]
      %v1731 = vld [vmem:[#allocation2 + $0x5b0] sm:$0xff]
      %v1732 = vld [vmem:[#allocation2 + $0x5b8] sm:$0xff]
      %v1733 = vld [vmem:[#allocation2 + $0x5c0] sm:$0xff]
      %v1734 = vld [vmem:[#allocation2 + $0x5c8] sm:$0xff]
      %v1735 = vld [vmem:[#allocation2 + $0x5d0] sm:$0xff]
      %v1736 = vld [vmem:[#allocation2 + $0x5d8] sm:$0xff]
      %v1737 = vld [vmem:[#allocation2 + $0x5e0] sm:$0xff]
      %v1738 = vld [vmem:[#allocation2 + $0x5e8] sm:$0xff]
      %v1739 = vld [vmem:[#allocation2 + $0x5f0] sm:$0xff]
      %v1740 = vld [vmem:[#allocation2 + $0x5f8] sm:$0xff]
      %v1741 = vld [vmem:[#allocation2 + $0x600] sm:$0xff]
      %v1742 = vld [vmem:[#allocation2 + $0x608] sm:$0xff]
      %v1743 = vld [vmem:[#allocation2 + $0x610] sm:$0xff]
      %v1744 = vld [vmem:[#allocation2 + $0x618] sm:$0xff]
      %v1745 = vld [vmem:[#allocation2 + $0x620] sm:$0xff]
      %v1746 = vld [vmem:[#allocation2 + $0x628] sm:$0xff]
      %v1747 = vld [vmem:[#allocation2 + $0x630] sm:$0xff]
      %v1748 = vld [vmem:[#allocation2 + $0x638] sm:$0xff]
      %v1749 = vld [vmem:[#allocation2 + $0x640] sm:$0xff]
      %v1750 = vld [vmem:[#allocation2 + $0x648] sm:$0xff]
      %v1751 = vld [vmem:[#allocation2 + $0x650] sm:$0xff]
      %v1752 = vld [vmem:[#allocation2 + $0x658] sm:$0xff]
      %v1753 = vld [vmem:[#allocation2 + $0x660] sm:$0xff]
      %v1754 = vld [vmem:[#allocation2 + $0x668] sm:$0xff]
      %v1755 = vld [vmem:[#allocation2 + $0x670] sm:$0xff]
      %v1756 = vld [vmem:[#allocation2 + $0x678] sm:$0xff]
      %v1757 = vld [vmem:[#allocation2 + $0x680] sm:$0xff]
      %v1758 = vld [vmem:[#allocation2 + $0x688] sm:$0xff]
      %v1759 = vld [vmem:[#allocation2 + $0x690] sm:$0xff]
      %v1760 = vld [vmem:[#allocation2 + $0x698] sm:$0xff]
      %v1761 = vld [vmem:[#allocation2 + $0x6a0] sm:$0xff]
      %v1762 = vld [vmem:[#allocation2 + $0x6a8] sm:$0xff]
      %v1763 = vld [vmem:[#allocation2 + $0x6b0] sm:$0xff]
      %v1764 = vld [vmem:[#allocation2 + $0x6b8] sm:$0xff]
      %vm1765 = vcmask 719872
      %v1767 = vsel %vm1765, %v1548, 0
      %1769 = vmatprep.subr.mxu0 %v1550
      %1770 = vmatpush1.msra.mxu0 %v1549
      %1771 = vmatprep.subr.mxu0 %v1558
      %1772 = vmatpush1.msra.mxu0 %v1557
      %1773 = vmatprep.subr.mxu0 %v1566
      %1774 = vmatpush1.msra.mxu0 %v1565
      %1775 = vmatprep.subr.mxu0 %v1574
      %1776 = vmatpush1.msra.mxu0 %v1573
      %1777 = vmatprep.subr.mxu0 %v1582
      %1778 = vmatpush1.msra.mxu0 %v1581
      %1779 = vmatprep.subr.mxu0 %v1590
      %1780 = vmatpush1.msra.mxu0 %v1589
      %1781 = vmatprep.subr.mxu0 %v1598
      %1782 = vmatpush1.msra.mxu0 %v1597
      %1783 = vmatprep.subr.mxu0 %v1606
      %1784 = vmatpush1.msra.mxu0 %v1605
      %1785 = vmatprep.subr.mxu0 %v1614
      %1786 = vmatpush1.msra.mxu0 %v1613
      %1787 = vmatprep.subr.mxu0 %v1622
      %1788 = vmatpush1.msra.mxu0 %v1621
      %1789 = vmatprep.subr.mxu0 %v1630
      %1790 = vmatpush1.msra.mxu0 %v1629
      %1791 = vmatprep.subr.mxu0 %v1638
      %1792 = vmatpush1.msra.mxu0 %v1637
      %1793 = vmatprep.subr.mxu0 %v1646
      %1794 = vmatpush1.msra.mxu0 %v1645
      %1795 = vmatprep.subr.mxu0 %v1654
      %1796 = vmatpush1.msra.mxu0 %v1653
      %1797 = vmatprep.subr.mxu0 %v1662
      %1798 = vmatpush1.msra.mxu0 %v1661
      %1799 = vmatprep.subr.mxu0 %v1670
      %1800 = vmatpush1.msra.mxu0 %v1669
      %1801 = vmatprep.subr.mxu0 %v1678
      %1802 = vmatpush1.msra.mxu0 %v1677
      %1803 = vmatprep.subr.mxu0 %v1686
      %1804 = vmatpush1.msra.mxu0 %v1685
      %1805 = vmatprep.subr.mxu0 %v1694
      %1806 = vmatpush1.msra.mxu0 %v1693
      %1807 = vmatprep.subr.mxu0 %v1702
      %1808 = vmatpush1.msra.mxu0 %v1701
      %1809 = vmatprep.subr.mxu0 %v1710
      %1810 = vmatpush1.msra.mxu0 %v1709
      %1811 = vmatprep.subr.mxu0 %v1718
      %1812 = vmatpush1.msra.mxu0 %v1717
      %1813 = vmatprep.subr.mxu0 %v1726
      %1814 = vmatpush1.msra.mxu0 %v1725
      %1815 = vmatprep.subr.mxu0 %v1734
      %1816 = vmatpush1.msra.mxu0 %v1733
      %1817 = vmatprep.subr.mxu0 %v1742
      %1818 = vmatpush1.msra.mxu0 %v1741
      %1819 = vmatprep.subr.mxu0 %v1750
      %1820 = vmatpush1.msra.mxu0 %v1749
      %1821 = vmatprep.subr.mxu0 %v1758
      %1822 = vmatpush1.msra.mxu0 %v1757
      %1823 = vmatprep.subr.mxu0 0.0
      %1824 = vmatpush1.msra.mxu0 0.0
      %1825 = vmatprep.subr.mxu0 0.0
      %1826 = vmatpush1.msra.mxu0 0.0
      %1827 = vmatprep.subr.mxu0 0.0
      %1828 = vmatpush1.msra.mxu0 0.0
      %1829 = vmatprep.subr.mxu0 0.0
      %1830 = vmatpush1.msra.mxu0 0.0
      %1831 = vmatprep.subr.mxu0 0.0
      %1832 = vmatpush1.msra.mxu0 0.0
      %1833 = vmatprep.mubr.f32.mxu0 %v1767
      %1834 = vmatmul.mubr.f32.gmra.mrb[0].mxu0 %v1547
      %v1835 = vpop.f32.mrb[0].mxu0
      %v1836 = vadd.f32 0.0, %v1835
      %v1837 = vpop.f32.mrb[0].mxu0
      %v1838 = vadd.f32 0.0, %v1837
      %1839 = vdwg.mxu0
      %1840 = vmatprep.subr.mxu0 %v1552
      %1841 = vmatpush1.msra.mxu0 %v1551
      %1842 = vmatprep.subr.mxu0 %v1560
      %1843 = vmatpush1.msra.mxu0 %v1559
      %1844 = vmatprep.subr.mxu0 %v1568
      %1845 = vmatpush1.msra.mxu0 %v1567
      %1846 = vmatprep.subr.mxu0 %v1576
      %1847 = vmatpush1.msra.mxu0 %v1575
      %1848 = vmatprep.subr.mxu0 %v1584
      %1849 = vmatpush1.msra.mxu0 %v1583
      %1850 = vmatprep.subr.mxu0 %v1592
      %1851 = vmatpush1.msra.mxu0 %v1591
      %1852 = vmatprep.subr.mxu0 %v1600
      %1853 = vmatpush1.msra.mxu0 %v1599
      %1854 = vmatprep.subr.mxu0 %v1608
      %1855 = vmatpush1.msra.mxu0 %v1607
      %1856 = vmatprep.subr.mxu0 %v1616
      %1857 = vmatpush1.msra.mxu0 %v1615
      %1858 = vmatprep.subr.mxu0 %v1624
      %1859 = vmatpush1.msra.mxu0 %v1623
      %1860 = vmatprep.subr.mxu0 %v1632
      %1861 = vmatpush1.msra.mxu0 %v1631
      %1862 = vmatprep.subr.mxu0 %v1640
      %1863 = vmatpush1.msra.mxu0 %v1639
      %1864 = vmatprep.subr.mxu0 %v1648
      %1865 = vmatpush1.msra.mxu0 %v1647
      %1866 = vmatprep.subr.mxu0 %v1656
      %1867 = vmatpush1.msra.mxu0 %v1655
      %1868 = vmatprep.subr.mxu0 %v1664
      %1869 = vmatpush1.msra.mxu0 %v1663
      %1870 = vmatprep.subr.mxu0 %v1672
      %1871 = vmatpush1.msra.mxu0 %v1671
      %1872 = vmatprep.subr.mxu0 %v1680
      %1873 = vmatpush1.msra.mxu0 %v1679
      %1874 = vmatprep.subr.mxu0 %v1688
      %1875 = vmatpush1.msra.mxu0 %v1687
      %1876 = vmatprep.subr.mxu0 %v1696
      %1877 = vmatpush1.msra.mxu0 %v1695
      %1878 = vmatprep.subr.mxu0 %v1704
      %1879 = vmatpush1.msra.mxu0 %v1703
      %1880 = vmatprep.subr.mxu0 %v1712
      %1881 = vmatpush1.msra.mxu0 %v1711
      %1882 = vmatprep.subr.mxu0 %v1720
      %1883 = vmatpush1.msra.mxu0 %v1719
      %1884 = vmatprep.subr.mxu0 %v1728
      %1885 = vmatpush1.msra.mxu0 %v1727
      %1886 = vmatprep.subr.mxu0 %v1736
      %1887 = vmatpush1.msra.mxu0 %v1735
      %1888 = vmatprep.subr.mxu0 %v1744
      %1889 = vmatpush1.msra.mxu0 %v1743
      %1890 = vmatprep.subr.mxu0 %v1752
      %1891 = vmatpush1.msra.mxu0 %v1751
      %1892 = vmatprep.subr.mxu0 %v1760
      %1893 = vmatpush1.msra.mxu0 %v1759
      %1894 = vmatprep.subr.mxu0 0.0
      %1895 = vmatpush1.msra.mxu0 0.0
      %1896 = vmatprep.subr.mxu0 0.0
      %1897 = vmatpush1.msra.mxu0 0.0
      %1898 = vmatprep.subr.mxu0 0.0
      %1899 = vmatpush1.msra.mxu0 0.0
      %1900 = vmatprep.subr.mxu0 0.0
      %1901 = vmatpush1.msra.mxu0 0.0
      %1902 = vmatprep.subr.mxu0 0.0
      %1903 = vmatpush1.msra.mxu0 0.0
      %1904 = vmatprep.mubr.f32.mxu0 %v1767
      %1905 = vmatmul.mubr.f32.gmra.mrb[0].mxu0 %v1547
      %v1906 = vpop.f32.mrb[0].mxu0
      %v1907 = vadd.f32 0.0, %v1906
      %v1908 = vpop.f32.mrb[0].mxu0
      %v1909 = vadd.f32 0.0, %v1908
      %1910 = vdwg.mxu0
      %1911 = vmatprep.subr.mxu0 %v1554
      %1912 = vmatpush1.msra.mxu0 %v1553
      %1913 = vmatprep.subr.mxu0 %v1562
      %1914 = vmatpush1.msra.mxu0 %v1561
      %1915 = vmatprep.subr.mxu0 %v1570
      %1916 = vmatpush1.msra.mxu0 %v1569
      %1917 = vmatprep.subr.mxu0 %v1578
      %1918 = vmatpush1.msra.mxu0 %v1577
      %1919 = vmatprep.subr.mxu0 %v1586
      %1920 = vmatpush1.msra.mxu0 %v1585
      %1921 = vmatprep.subr.mxu0 %v1594
      %1922 = vmatpush1.msra.mxu0 %v1593
      %1923 = vmatprep.subr.mxu0 %v1602
      %1924 = vmatpush1.msra.mxu0 %v1601
      %1925 = vmatprep.subr.mxu0 %v1610
      %1926 = vmatpush1.msra.mxu0 %v1609
      %1927 = vmatprep.subr.mxu0 %v1618
      %1928 = vmatpush1.msra.mxu0 %v1617
      %1929 = vmatprep.subr.mxu0 %v1626
      %1930 = vmatpush1.msra.mxu0 %v1625
      %1931 = vmatprep.subr.mxu0 %v1634
      %1932 = vmatpush1.msra.mxu0 %v1633
      %1933 = vmatprep.subr.mxu0 %v1642
      %1934 = vmatpush1.msra.mxu0 %v1641
      %1935 = vmatprep.subr.mxu0 %v1650
      %1936 = vmatpush1.msra.mxu0 %v1649
      %1937 = vmatprep.subr.mxu0 %v1658
      %1938 = vmatpush1.msra.mxu0 %v1657
      %1939 = vmatprep.subr.mxu0 %v1666
      %1940 = vmatpush1.msra.mxu0 %v1665
      %1941 = vmatprep.subr.mxu0 %v1674
      %1942 = vmatpush1.msra.mxu0 %v1673
      %1943 = vmatprep.subr.mxu0 %v1682
      %1944 = vmatpush1.msra.mxu0 %v1681
      %1945 = vmatprep.subr.mxu0 %v1690
      %1946 = vmatpush1.msra.mxu0 %v1689
      %1947 = vmatprep.subr.mxu0 %v1698
      %1948 = vmatpush1.msra.mxu0 %v1697
      %1949 = vmatprep.subr.mxu0 %v1706
      %1950 = vmatpush1.msra.mxu0 %v1705
      %1951 = vmatprep.subr.mxu0 %v1714
      %1952 = vmatpush1.msra.mxu0 %v1713
      %1953 = vmatprep.subr.mxu0 %v1722
      %1954 = vmatpush1.msra.mxu0 %v1721
      %1955 = vmatprep.subr.mxu0 %v1730
      %1956 = vmatpush1.msra.mxu0 %v1729
      %1957 = vmatprep.subr.mxu0 %v1738
      %1958 = vmatpush1.msra.mxu0 %v1737
      %1959 = vmatprep.subr.mxu0 %v1746
      %1960 = vmatpush1.msra.mxu0 %v1745
      %1961 = vmatprep.subr.mxu0 %v1754
      %1962 = vmatpush1.msra.mxu0 %v1753
      %1963 = vmatprep.subr.mxu0 %v1762
      %1964 = vmatpush1.msra.mxu0 %v1761
      %1965 = vmatprep.subr.mxu0 0.0
      %1966 = vmatpush1.msra.mxu0 0.0
      %1967 = vmatprep.subr.mxu0 0.0
      %1968 = vmatpush1.msra.mxu0 0.0
      %1969 = vmatprep.subr.mxu0 0.0
      %1970 = vmatpush1.msra.mxu0 0.0
      %1971 = vmatprep.subr.mxu0 0.0
      %1972 = vmatpush1.msra.mxu0 0.0
      %1973 = vmatprep.subr.mxu0 0.0
      %1974 = vmatpush1.msra.mxu0 0.0
      %1975 = vmatprep.mubr.f32.mxu0 %v1767
      %1976 = vmatmul.mubr.f32.gmra.mrb[0].mxu0 %v1547
      %v1977 = vpop.f32.mrb[0].mxu0
      %v1978 = vadd.f32 0.0, %v1977
      %v1979 = vpop.f32.mrb[0].mxu0
      %v1980 = vadd.f32 0.0, %v1979
      %1981 = vdwg.mxu0
      %1982 = vmatprep.subr.mxu0 %v1556
      %1983 = vmatpush1.msra.mxu0 %v1555
      %1984 = vmatprep.subr.mxu0 %v1564
      %1985 = vmatpush1.msra.mxu0 %v1563
      %1986 = vmatprep.subr.mxu0 %v1572
      %1987 = vmatpush1.msra.mxu0 %v1571
      %1988 = vmatprep.subr.mxu0 %v1580
      %1989 = vmatpush1.msra.mxu0 %v1579
      %1990 = vmatprep.subr.mxu0 %v1588
      %1991 = vmatpush1.msra.mxu0 %v1587
      %1992 = vmatprep.subr.mxu0 %v1596
      %1993 = vmatpush1.msra.mxu0 %v1595
      %1994 = vmatprep.subr.mxu0 %v1604
      %1995 = vmatpush1.msra.mxu0 %v1603
      %1996 = vmatprep.subr.mxu0 %v1612
      %1997 = vmatpush1.msra.mxu0 %v1611
      %1998 = vmatprep.subr.mxu0 %v1620
      %1999 = vmatpush1.msra.mxu0 %v1619
      %2000 = vmatprep.subr.mxu0 %v1628
      %2001 = vmatpush1.msra.mxu0 %v1627
      %2002 = vmatprep.subr.mxu0 %v1636
      %2003 = vmatpush1.msra.mxu0 %v1635
      %2004 = vmatprep.subr.mxu0 %v1644
      %2005 = vmatpush1.msra.mxu0 %v1643
      %2006 = vmatprep.subr.mxu0 %v1652
      %2007 = vmatpush1.msra.mxu0 %v1651
      %2008 = vmatprep.subr.mxu0 %v1660
      %2009 = vmatpush1.msra.mxu0 %v1659
      %2010 = vmatprep.subr.mxu0 %v1668
      %2011 = vmatpush1.msra.mxu0 %v1667
      %2012 = vmatprep.subr.mxu0 %v1676
      %2013 = vmatpush1.msra.mxu0 %v1675
      %2014 = vmatprep.subr.mxu0 %v1684
      %2015 = vmatpush1.msra.mxu0 %v1683
      %2016 = vmatprep.subr.mxu0 %v1692
      %2017 = vmatpush1.msra.mxu0 %v1691
      %2018 = vmatprep.subr.mxu0 %v1700
      %2019 = vmatpush1.msra.mxu0 %v1699
      %2020 = vmatprep.subr.mxu0 %v1708
      %2021 = vmatpush1.msra.mxu0 %v1707
      %2022 = vmatprep.subr.mxu0 %v1716
      %2023 = vmatpush1.msra.mxu0 %v1715
      %2024 = vmatprep.subr.mxu0 %v1724
      %2025 = vmatpush1.msra.mxu0 %v1723
      %2026 = vmatprep.subr.mxu0 %v1732
      %2027 = vmatpush1.msra.mxu0 %v1731
      %2028 = vmatprep.subr.mxu0 %v1740
      %2029 = vmatpush1.msra.mxu0 %v1739
      %2030 = vmatprep.subr.mxu0 %v1748
      %2031 = vmatpush1.msra.mxu0 %v1747
      %2032 = vmatprep.subr.mxu0 %v1756
      %2033 = vmatpush1.msra.mxu0 %v1755
      %2034 = vmatprep.subr.mxu0 %v1764
      %2035 = vmatpush1.msra.mxu0 %v1763
      %2036 = vmatprep.subr.mxu0 0.0
      %2037 = vmatpush1.msra.mxu0 0.0
      %2038 = vmatprep.subr.mxu0 0.0
      %2039 = vmatpush1.msra.mxu0 0.0
      %2040 = vmatprep.subr.mxu0 0.0
      %2041 = vmatpush1.msra.mxu0 0.0
      %2042 = vmatprep.subr.mxu0 0.0
      %2043 = vmatpush1.msra.mxu0 0.0
      %2044 = vmatprep.subr.mxu0 0.0
      %2045 = vmatpush1.msra.mxu0 0.0
      %2046 = vmatprep.mubr.f32.mxu0 %v1767
      %2047 = vmatmul.mubr.f32.gmra.mrb[0].mxu0 %v1547
      %v2048 = vpop.f32.mrb[0].mxu0
      %v2049 = vadd.f32 0.0, %v2048
      %v2050 = vpop.f32.mrb[0].mxu0
      %v2051 = vadd.f32 0.0, %v2050
      %2052 = vdwg.mxu0
      %vm2053 = vcmp.gt.f32.partialorder %v1836, 0.0
      %vm2054 = vcmp.gt.f32.partialorder %v1838, 0.0
      %vm2055 = vcmp.gt.f32.partialorder %v1907, 0.0
      %vm2056 = vcmp.gt.f32.partialorder %v1909, 0.0
      %vm2057 = vcmp.gt.f32.partialorder %v1978, 0.0
      %vm2058 = vcmp.gt.f32.partialorder %v1980, 0.0
      %vm2059 = vcmp.gt.f32.partialorder %v2049, 0.0
      %vm2060 = vcmp.gt.f32.partialorder %v2051, 0.0
      %v2061 = vmul.f32 %v1836, 0.01
      %v2062 = vmul.f32 %v1838, 0.01
      %v2063 = vmul.f32 %v1907, 0.01
      %v2064 = vmul.f32 %v1909, 0.01
      %v2065 = vmul.f32 %v1978, 0.01
      %v2066 = vmul.f32 %v1980, 0.01
      %v2067 = vmul.f32 %v2049, 0.01
      %v2068 = vmul.f32 %v2051, 0.01
      %v2069 = vsel %vm2053, %v1836, %v2061
      %v2070 = vsel %vm2054, %v1838, %v2062
      %v2071 = vsel %vm2055, %v1907, %v2063
      %v2072 = vsel %vm2056, %v1909, %v2064
      %v2073 = vsel %vm2057, %v1978, %v2065
      %v2074 = vsel %vm2058, %v1980, %v2066
      %v2075 = vsel %vm2059, %v2049, %v2067
      %v2076 = vsel %vm2060, %v2051, %v2068
      %2077 = vst [vmem:[%s192] sm:$0xff] %v2069
      %2078 = vst [vmem:[%s192 + $0x8] sm:$0xff] %v2070
      %2079 = vst [vmem:[%s192 + $0x10] sm:$0xff] %v2071
      %2080 = vst [vmem:[%s192 + $0x18] sm:$0xff] %v2072
      %2081 = vst [vmem:[%s192 + $0x20] sm:$0xff] %v2073
      %2082 = vst [vmem:[%s192 + $0x28] sm:$0xff] %v2074
      %2083 = vst [vmem:[%s192 + $0x30] sm:$0xff] %v2075
      %2084 = vst [vmem:[%s192 + $0x38] sm:$0xff] %v2076
      %s2085 = smul.u32 8, %s19
      %p2086 = scmp.lt.s32.totalorder %s18, 1
      %s2087 = scalar_select %p2086, %s18, 1
      %p2088 = scmp.lt.s32.totalorder %s2085, 7
      %s2089 = scalar_select %p2088, %s2085, 7
      %s2090 = smul.addr %s2087, 8
      %s2091 = sadd.s32 %s2089, %s2090
      %s2092 = smul.addr %s2091, 8
      %s2093 = scalar_lea.vmem %s3, %s2092
      // Predicated region
      $region33: #{conv_bn_re_3dm.1} parent=31 // pred_check
        %p2094 = pneg %p114
      $region34: #{conv_bn_re_3dm.1} parent=31 // pred_check_branch
        %2096 = sbr.rel (%p2094) target = $region36
      $region35: #{conv_bn_re_3dm.1} parent=31 // pred_region
        %s2097 = smul.u32 8, %s19
      $region36: #{conv_bn_re_3dm.1} parent=31 // pred_fallthru
        _
    $region32: #{conv_bn_re_3dm.1} parent=5 // pred_fallthru
      _
    %p2098 = scmp.le.s32.totalorder 2, %s9
    // Predicated region
    $region37: #{conv_bn_re_3dm.1} parent=5 // pred_check
      %p2099 = pneg %p2098
    $region38: #{conv_bn_re_3dm.1} parent=5 // pred_check_branch
      %2101 = sbr.rel (%p2099) target = $region40
    $region39: #{conv_bn_re_3dm.1} parent=5 // pred_region
      %s2102 = ssub.s32 %s9, 2
      // Predicated region
      $region41: #{conv_bn_re_3dm.1} parent=39 // pred_check
        %p2103 = pneg %p120
      $region42: #{conv_bn_re_3dm.1} parent=39 // pred_check_branch
        %2105 = sbr.rel (%p2103) target = $region44
      $region43: #{conv_bn_re_3dm.1} parent=39 // pred_region
        %s2106 = smul.u32 8, %s21
        %p2107 = scmp.lt.s32.totalorder %s20, 1
        %s2108 = scalar_select %p2107, %s20, 1
        %p2109 = scmp.lt.s32.totalorder %s2106, 7
        %s2110 = scalar_select %p2109, %s2106, 7
        %s2111 = smul.addr %s2108, 8
        %s2112 = sadd.s32 %s2110, %s2111
        %s2113 = smul.addr %s2112, 8
        %s2114 = scalar_lea.vmem %s3, %s2113
      $region44: #{conv_bn_re_3dm.1} parent=39 // pred_fallthru
        _
    $region40: #{conv_bn_re_3dm.1} parent=5 // pred_fallthru
      _
  $region6: #{conv_bn_re_3dm.1} parent=0 // loop_footer
    %s13 = sadd.s32 1, %s9
  $region7: #{conv_bn_re_3dm.1} parent=0 // loop_footer_branch
    %8 = sbr.rel target = $region3
  $region8: #{conv_bn_re_3dm.1} parent=0 // loop_exit
    _

</llo_original>
